<compile_context>
chip_gen: v7x
topology: tpu7x:2x2x1
jax: 0.10.0
libtpu: 0.0.40
codegen_flags: <defaults>
</compile_context>

<pallas_src>
import math
from functools import partial

import jax
import jax.numpy as jnp
from jax.experimental import pallas as pl
from jax.experimental.pallas import tpu as pltpu


# ------------------------------------------------------------------ helpers ---

_VMEM_LIMIT = 48 * 1024 * 1024   # < 64 MiB physical on v7x, plenty on v5e/v6e
_NEG_INF = -1e30                 # scores stay fp32, so a finite fp32 min is safe


def _round_up(x, m):
    return ((x + m - 1) // m) * m


def _pad_dim(a, axis, to):
    pad = to - a.shape[axis]
    if pad == 0:
        return a
    cfg = [(0, 0)] * a.ndim
    cfg[axis] = (0, pad)
    return jnp.pad(a, cfg)


# ------------------------------------------------------------- tiled linear ---

def _linear_kernel(x_ref, w_ref, b_ref, o_ref, acc_ref, *, activation):
    @pl.when(pl.program_id(2) == 0)
    def _():
        acc_ref[...] = jnp.zeros_like(acc_ref)

    acc_ref[...] += jnp.dot(x_ref[...], w_ref[...],
                            preferred_element_type=jnp.float32)

    @pl.when(pl.program_id(2) == pl.num_programs(2) - 1)
    def _():
        y = acc_ref[...] + b_ref[...]
        if activation == "relu":
            y = jnp.maximum(y, 0.0)
        o_ref[...] = y.astype(o_ref.dtype)


def pallas_linear(x, w, b, activation=None, out_dtype=jnp.float32):
    """y = act(x @ w + b); x:[M,K], w:[K,N] (any float dtype), b:[N] fp32.

    MXU operands are bf16, accumulation fp32; output dtype selectable so
    consumers that re-cast to bf16 get bf16 straight from the kernel.
    Dims are zero-padded to tile multiples and the result is sliced back.
    """
    M, K = x.shape
    _, N = w.shape
    # Big tiles amortize the ~0.35us per-grid-step overhead; full-K blocks
    # when K fits so the reduction axis is a single step.
    tm = min(512, _round_up(M, 8))
    tn = min(512, _round_up(N, 128))
    kp128 = _round_up(K, 128)
    tk = kp128 if kp128 <= 1024 else 512
    Mp, Np, Kp = _round_up(M, tm), _round_up(N, tn), _round_up(K, tk)

    xb = _pad_dim(_pad_dim(x.astype(jnp.bfloat16), 0, Mp), 1, Kp)
    wb = _pad_dim(_pad_dim(w.astype(jnp.bfloat16), 0, Kp), 1, Np)
    bb = _pad_dim(b.reshape(1, N).astype(jnp.float32), 1, Np)

    gm, gn, gk = Mp // tm, Np // tn, Kp // tk
    out = pl.pallas_call(
        partial(_linear_kernel, activation=activation),
        out_shape=jax.ShapeDtypeStruct((Mp, Np), out_dtype),
        grid=(gm, gn, gk),
        in_specs=[pl.BlockSpec((tm, tk), lambda i, j, k: (i, k)),
                  pl.BlockSpec((tk, tn), lambda i, j, k: (k, j)),
                  pl.BlockSpec((1, tn), lambda i, j, k: (0, j))],
        out_specs=pl.BlockSpec((tm, tn), lambda i, j, k: (i, j)),
        scratch_shapes=[pltpu.VMEM((tm, tn), jnp.float32)],
        compiler_params=pltpu.CompilerParams(
            dimension_semantics=("parallel", "parallel", "arbitrary"),
            vmem_limit_bytes=_VMEM_LIMIT),
        cost_estimate=pl.CostEstimate(
            flops=2 * M * N * K,
            transcendentals=0,
            # count grid re-streaming: x re-read per N-tile, w per M-tile
            bytes_accessed=(gn * Mp * Kp + gm * Kp * Np) * 2
                           + Mp * Np * jnp.dtype(out_dtype).itemsize),
    )(xb, wb, bb)
    return out[:M, :N]


# ---------------------------------------------------- fused residual + LN  ---

def _add_ln_kernel(x_ref, y_ref, g_ref, b_ref, o_ref, *, eps):
    h = x_ref[...].astype(jnp.float32) + y_ref[...].astype(jnp.float32)
    mean = jnp.mean(h, axis=-1, keepdims=True)
    hc = h - mean
    var = jnp.mean(hc * hc, axis=-1, keepdims=True)
    o_ref[...] = hc * jax.lax.rsqrt(var + eps) * g_ref[...] + b_ref[...]


def pallas_add_layernorm(x, y, g, b, eps=1e-5):
    """LayerNorm(x + y) over the last dim; x,y:[M,D]; fp32 math/output."""
    M, D = x.shape
    tm = min(512, _round_up(M, 8))
    Mp = _round_up(M, tm)
    xp = _pad_dim(x, 0, Mp)
    yp = _pad_dim(y, 0, Mp)
    out = pl.pallas_call(
        partial(_add_ln_kernel, eps=eps),
        out_shape=jax.ShapeDtypeStruct((Mp, D), jnp.float32),
        grid=(Mp // tm,),
        in_specs=[pl.BlockSpec((tm, D), lambda i: (i, 0)),
                  pl.BlockSpec((tm, D), lambda i: (i, 0)),
                  pl.BlockSpec((1, D), lambda i: (0, 0)),
                  pl.BlockSpec((1, D), lambda i: (0, 0))],
        out_specs=pl.BlockSpec((tm, D), lambda i: (i, 0)),
        compiler_params=pltpu.CompilerParams(
            dimension_semantics=("parallel",),
            vmem_limit_bytes=_VMEM_LIMIT),
    )(xp, yp, g.reshape(1, D), b.reshape(1, D))
    return out[:M]


# --------------------------------------------- flash-style tiled attention ---

def _flash_attn_kernel(q_ref, k_ref, v_ref, o_ref, m_sc, l_sc, acc_sc,
                       *, causal, sk_len, tq, tkv):
    qi = pl.program_id(1)
    ki = pl.program_id(2)

    @pl.when(ki == 0)
    def _():
        m_sc[...] = jnp.full_like(m_sc, _NEG_INF)
        l_sc[...] = jnp.zeros_like(l_sc)
        acc_sc[...] = jnp.zeros_like(acc_sc)

    def compute():
        q = q_ref[0]                       # (tq, Dh)  bf16, 1/sqrt(Dh) folded in Wq
        k = k_ref[0]                       # (tkv, Dh) bf16
        v = v_ref[0]                       # (tkv, Dh) bf16
        s = jax.lax.dot_general(q, k, (((1,), (1,)), ((), ())),
                                preferred_element_type=jnp.float32)  # (tq, tkv)
        row = qi * tq + jax.lax.broadcasted_iota(jnp.int32, (tq, tkv), 0)
        col = ki * tkv + jax.lax.broadcasted_iota(jnp.int32, (tq, tkv), 1)
        mask = col < sk_len                # key-padding from seq padding
        if causal:
            mask = jnp.logical_and(mask, col <= row)
        s = jnp.where(mask, s, _NEG_INF)   # scores are fp32 -> finite min is safe

        m_prev = m_sc[...]
        m_new = jnp.maximum(m_prev, jnp.max(s, axis=-1, keepdims=True))
        alpha = jnp.exp(m_prev - m_new)
        p = jnp.exp(s - m_new)
        l_sc[...] = alpha * l_sc[...] + jnp.sum(p, axis=-1, keepdims=True)
        acc_sc[...] = alpha * acc_sc[...] + jnp.dot(
            p.astype(v.dtype), v, preferred_element_type=jnp.float32)
        m_sc[...] = m_new

    if causal:
        # skip KV tiles entirely above the diagonal for this Q tile
        @pl.when(ki * tkv <= qi * tq + tq - 1)
        def _():
            compute()
    else:
        compute()

    @pl.when(ki == pl.num_programs(2) - 1)
    def _():
        o_ref[0] = (acc_sc[...] * pl.reciprocal(l_sc[...], approx=True)
                    ).astype(o_ref.dtype)


def pallas_attention(q, k, v, num_heads, causal=False):
    """Multi-head attention; q:[B,Sq,D], k/v:[B,Sk,D] bf16 (heads packed in D).

    Heads are moved to a grid axis (layout [B*H, S, Dh]); online-softmax KV
    tiling bounds VMEM and gives (B*H * Sq_tiles) parallel grid work.
    """
    B, Sq, D = q.shape
    _, Sk, _ = k.shape
    Dh = D // num_heads

    def split_heads(x, S):
        return x.reshape(B, S, num_heads, Dh).transpose(0, 2, 1, 3) \
                .reshape(B * num_heads, S, Dh)

    qh = split_heads(q, Sq)
    kh = split_heads(k, Sk)
    vh = split_heads(v, Sk)

    tq = min(256, _round_up(Sq, 8))
    tkv = min(512, _round_up(Sk, 8))
    Sqp, Skp = _round_up(Sq, tq), _round_up(Sk, tkv)
    qh = _pad_dim(qh, 1, Sqp)
    kh = _pad_dim(kh, 1, Skp)
    vh = _pad_dim(vh, 1, Skp)

    out = pl.pallas_call(
        partial(_flash_attn_kernel, causal=causal, sk_len=Sk, tq=tq, tkv=tkv),
        out_shape=jax.ShapeDtypeStruct((B * num_heads, Sqp, Dh), jnp.bfloat16),
        grid=(B * num_heads, Sqp // tq, Skp // tkv),
        in_specs=[pl.BlockSpec((1, tq, Dh), lambda b, i, j: (b, i, 0)),
                  pl.BlockSpec((1, tkv, Dh), lambda b, i, j: (b, j, 0)),
                  pl.BlockSpec((1, tkv, Dh), lambda b, i, j: (b, j, 0))],
        out_specs=pl.BlockSpec((1, tq, Dh), lambda b, i, j: (b, i, 0)),
        scratch_shapes=[pltpu.VMEM((tq, 1), jnp.float32),
                        pltpu.VMEM((tq, 1), jnp.float32),
                        pltpu.VMEM((tq, Dh), jnp.float32)],
        compiler_params=pltpu.CompilerParams(
            dimension_semantics=("parallel", "parallel", "arbitrary"),
            vmem_limit_bytes=_VMEM_LIMIT),
    )(qh, kh, vh)

    out = out[:, :Sq]
    return out.reshape(B, num_heads, Sq, Dh).transpose(0, 2, 1, 3) \
              .reshape(B, Sq, D)


# ------------------------------------------------ conv front-end (NHWC glue) ---

def _im2col_nhwc(x, k, stride):
    # x: (B, H, W, C) -> cols (B*Ho*Wo, k*k*C), feature order (kh, kw, c)
    B, H, W, C = x.shape
    Ho = (H - k) // stride + 1
    Wo = (W - k) // stride + 1
    patches = []
    for i in range(k):
        for j in range(k):
            patches.append(x[:, i:i + stride * (Ho - 1) + 1:stride,
                               j:j + stride * (Wo - 1) + 1:stride, :])
    cols = jnp.concatenate(patches, axis=-1)            # (B, Ho, Wo, k*k*C)
    return cols.reshape(B * Ho * Wo, k * k * C), Ho, Wo


def conv2d_relu(x, w2, b, *, k=3, stride=2):
    """Conv2d(k=3, stride=2, no padding) + ReLU via im2col + Pallas matmul.

    x is NHWC bf16; w2 is the pre-reshaped (k*k*Cin, Cout) bf16 weight.
    Output stays NHWC bf16 (feeds the next matmul directly).
    """
    B = x.shape[0]
    cols, Ho, Wo = _im2col_nhwc(x, k, stride)
    out = pallas_linear(cols, w2, b, activation="relu", out_dtype=jnp.bfloat16)
    return out.reshape(B, Ho, Wo, w2.shape[1])


# -------------------------------------------------------------- model pieces ---

def sinusoid_pe(S, D):
    pos = jnp.arange(S, dtype=jnp.float32)[:, None]
    i = jnp.arange(D // 2, dtype=jnp.float32)[None, :]
    angle = pos / jnp.power(10000.0, 2.0 * i / D)
    pe = jnp.zeros((S, D), jnp.float32)
    pe = pe.at[:, 0::2].set(jnp.sin(angle))
    pe = pe.at[:, 1::2].set(jnp.cos(angle))
    return pe


def add_ln(x, y, g, b):
    B, S, D = x.shape
    return pallas_add_layernorm(x.reshape(B * S, D), y.reshape(B * S, D),
                                g, b).reshape(B, S, D)


def mha_self(x, p, num_heads, causal=False):
    """Self-attention: pre-fused QKV projection (bf16 out), tiled attention."""
    B, S, D = x.shape
    qkv = pallas_linear(x.reshape(B * S, D), p["wqkv"], p["bqkv"],
                        out_dtype=jnp.bfloat16).reshape(B, S, 3 * D)
    q, k, v = qkv[..., :D], qkv[..., D:2 * D], qkv[..., 2 * D:]
    o = pallas_attention(q, k, v, num_heads, causal=causal)      # bf16
    return pallas_linear(o.reshape(B * S, D), p["wo"], p["bo"]).reshape(B, S, D)


def mha_cross(x_q, x_kv, p, num_heads):
    """Cross-attention: pre-fused KV projection from the encoder output."""
    B, Sq, D = x_q.shape
    _, Sk, _ = x_kv.shape
    q = pallas_linear(x_q.reshape(B * Sq, D), p["wq"], p["bq"],
                      out_dtype=jnp.bfloat16).reshape(B, Sq, D)
    kv = pallas_linear(x_kv.reshape(B * Sk, D), p["wkv"], p["bkv"],
                       out_dtype=jnp.bfloat16).reshape(B, Sk, 2 * D)
    k, v = kv[..., :D], kv[..., D:]
    o = pallas_attention(q, k, v, num_heads)
    return pallas_linear(o.reshape(B * Sq, D), p["wo"], p["bo"]).reshape(B, Sq, D)


def ffn(x, lyr):
    B, S, D = x.shape
    h = pallas_linear(x.reshape(B * S, D), lyr["ffn_w1"], lyr["ffn_b1"],
                      activation="relu", out_dtype=jnp.bfloat16)
    return pallas_linear(h, lyr["ffn_w2"], lyr["ffn_b2"]).reshape(B, S, D)


def transformer_forward(params, padded_input, padded_target, *, num_heads,
                        label_smoothing):
    B, T, F = padded_input.shape
    D = params["in_proj_w"].shape[1]

    # --- conv front-end (2 x Conv2d(3, stride 2) + ReLU), NHWC end-to-end ---
    x = padded_input[..., None].astype(jnp.bfloat16)        # (B, T, F, 1)
    x = conv2d_relu(x, params["conv1_w2"], params["conv1_b"])
    x = conv2d_relu(x, params["conv2_w2"], params["conv2_b"])
    _, T2, F2, C = x.shape
    x = x.reshape(B, T2, F2 * C)
    # sqrt(D) is folded into in_proj at prep time; only the PE add remains.
    x = pallas_linear(x.reshape(B * T2, F2 * C),
                      params["in_proj_w"], params["in_proj_b"]).reshape(B, T2, D)
    x = x + sinusoid_pe(T2, D)[None]

    # --- Transformer encoder (post-norm) ---
    for lyr in params["enc_layers"]:
        y = mha_self(x, lyr["mha"], num_heads)
        x = add_ln(x, y, lyr["ln1_g"], lyr["ln1_b"])
        y = ffn(x, lyr)
        x = add_ln(x, y, lyr["ln2_g"], lyr["ln2_b"])
    enc = x

    # --- Transformer decoder ---
    U = padded_target.shape[1]
    # embedding is pre-scaled by sqrt(D) at prep time
    y = jnp.take(params["emb"], padded_target, axis=0) + sinusoid_pe(U, D)[None]
    for lyr in params["dec_layers"]:
        z = mha_self(y, lyr["self_mha"], num_heads, causal=True)
        y = add_ln(y, z, lyr["ln1_g"], lyr["ln1_b"])
        z = mha_cross(y, enc, lyr["cross_mha"], num_heads)
        y = add_ln(y, z, lyr["ln2_g"], lyr["ln2_b"])
        z = ffn(y, lyr)
        y = add_ln(y, z, lyr["ln3_g"], lyr["ln3_b"])

    V = params["out_w"].shape[1]
    logits = pallas_linear(y.reshape(B * U, D),
                           params["out_w"], params["out_b"]).reshape(B, U, V)

    # label-smoothed cross-entropy (cheap elementwise glue)
    logp = jax.nn.log_softmax(logits, axis=-1)
    tgt_logp = jnp.take_along_axis(logp, padded_target[..., None], axis=-1)[..., 0]
    eps = label_smoothing
    loss = -((1.0 - eps) * tgt_logp + eps * logp.mean(axis=-1)).mean()

    return {"logits": logits, "loss": loss, "encoder_padded_outputs": enc}


# ------------------------------------------------------------------- params ---

class _Keys:
    def __init__(self, key):
        self.key = key

    def __call__(self):
        self.key, sub = jax.random.split(self.key)
        return sub


def _glorot(key, shape, fan_in, fan_out):
    lim = math.sqrt(6.0 / (fan_in + fan_out))
    return jax.random.uniform(key, shape, jnp.float32, -lim, lim)


def _mha_params(kg, D):
    return {n: _glorot(kg(), (D, D), D, D) for n in ("wq", "wk", "wv", "wo")} | \
           {f"b{n}": jnp.zeros((D,), jnp.float32) for n in ("q", "k", "v", "o")}


def init_params(seed, *, D, Dff, V, C1, F, n_enc, n_dec):
    kg = _Keys(jax.random.PRNGKey(seed))
    F1 = (F - 3) // 2 + 1
    F2 = (F1 - 3) // 2 + 1
    p = {
        "conv1_w": _glorot(kg(), (C1, 1, 3, 3), 9, C1 * 9),
        "conv1_b": jnp.zeros((C1,), jnp.float32),
        "conv2_w": _glorot(kg(), (C1, C1, 3, 3), C1 * 9, C1 * 9),
        "conv2_b": jnp.zeros((C1,), jnp.float32),
        "in_proj_w": _glorot(kg(), (C1 * F2, D), C1 * F2, D),
        "in_proj_b": jnp.zeros((D,), jnp.float32),
        "emb": 0.1 * jax.random.normal(kg(), (V, D), jnp.float32),
        "out_w": _glorot(kg(), (D, V), D, V),
        "out_b": jnp.zeros((V,), jnp.float32),
        "enc_layers": [],
        "dec_layers": [],
    }
    for _ in range(n_enc):
        p["enc_layers"].append({
            "mha": _mha_params(kg, D),
            "ffn_w1": _glorot(kg(), (D, Dff), D, Dff), "ffn_b1": jnp.zeros((Dff,), jnp.float32),
            "ffn_w2": _glorot(kg(), (Dff, D), Dff, D), "ffn_b2": jnp.zeros((D,), jnp.float32),
            "ln1_g": jnp.ones((D,), jnp.float32), "ln1_b": jnp.zeros((D,), jnp.float32),
            "ln2_g": jnp.ones((D,), jnp.float32), "ln2_b": jnp.zeros((D,), jnp.float32),
        })
    for _ in range(n_dec):
        p["dec_layers"].append({
            "self_mha": _mha_params(kg, D),
            "cross_mha": _mha_params(kg, D),
            "ffn_w1": _glorot(kg(), (D, Dff), D, Dff), "ffn_b1": jnp.zeros((Dff,), jnp.float32),
            "ffn_w2": _glorot(kg(), (Dff, D), Dff, D), "ffn_b2": jnp.zeros((D,), jnp.float32),
            "ln1_g": jnp.ones((D,), jnp.float32), "ln1_b": jnp.zeros((D,), jnp.float32),
            "ln2_g": jnp.ones((D,), jnp.float32), "ln2_b": jnp.zeros((D,), jnp.float32),
            "ln3_g": jnp.ones((D,), jnp.float32), "ln3_b": jnp.zeros((D,), jnp.float32),
        })
    return p


def prepare_params(p, *, num_heads):
    """One-time weight prep OUTSIDE jit: bf16 casts, Q/K/V (and K/V)
    concatenation, 1/sqrt(Dh) folded into Wq, sqrt(D) folded into
    in_proj / embedding, conv weights reshaped for NHWC im2col."""
    D = p["in_proj_w"].shape[1]
    Dh = D // num_heads
    qs = 1.0 / math.sqrt(Dh)
    ds = math.sqrt(D)
    bf = lambda a: a.astype(jnp.bfloat16)

    def conv_w(w):   # (Cout, Cin, kh, kw) -> (kh*kw*Cin, Cout) bf16
        Cout, Cin, kh, kw = w.shape
        return bf(w.transpose(0, 2, 3, 1).reshape(Cout, kh * kw * Cin).T)

    def self_mha(m):
        return {"wqkv": bf(jnp.concatenate([m["wq"] * qs, m["wk"], m["wv"]], axis=1)),
                "bqkv": jnp.concatenate([m["bq"] * qs, m["bk"], m["bv"]], axis=0),
                "wo": bf(m["wo"]), "bo": m["bo"]}

    def cross_mha(m):
        return {"wq": bf(m["wq"] * qs), "bq": m["bq"] * qs,
                "wkv": bf(jnp.concatenate([m["wk"], m["wv"]], axis=1)),
                "bkv": jnp.concatenate([m["bk"], m["bv"]], axis=0),
                "wo": bf(m["wo"]), "bo": m["bo"]}

    out = {
        "conv1_w2": conv_w(p["conv1_w"]), "conv1_b": p["conv1_b"],
        "conv2_w2": conv_w(p["conv2_w"]), "conv2_b": p["conv2_b"],
        "in_proj_w": bf(p["in_proj_w"] * ds), "in_proj_b": p["in_proj_b"] * ds,
        "emb": p["emb"] * ds,
        "out_w": bf(p["out_w"]), "out_b": p["out_b"],
        "enc_layers": [], "dec_layers": [],
    }
    for lyr in p["enc_layers"]:
        out["enc_layers"].append({
            "mha": self_mha(lyr["mha"]),
            "ffn_w1": bf(lyr["ffn_w1"]), "ffn_b1": lyr["ffn_b1"],
            "ffn_w2": bf(lyr["ffn_w2"]), "ffn_b2": lyr["ffn_b2"],
            "ln1_g": lyr["ln1_g"], "ln1_b": lyr["ln1_b"],
            "ln2_g": lyr["ln2_g"], "ln2_b": lyr["ln2_b"],
        })
    for lyr in p["dec_layers"]:
        out["dec_layers"].append({
            "self_mha": self_mha(lyr["self_mha"]),
            "cross_mha": cross_mha(lyr["cross_mha"]),
            "ffn_w1": bf(lyr["ffn_w1"]), "ffn_b1": lyr["ffn_b1"],
            "ffn_w2": bf(lyr["ffn_w2"]), "ffn_b2": lyr["ffn_b2"],
            "ln1_g": lyr["ln1_g"], "ln1_b": lyr["ln1_b"],
            "ln2_g": lyr["ln2_g"], "ln2_b": lyr["ln2_b"],
            "ln3_g": lyr["ln3_g"], "ln3_b": lyr["ln3_b"],
        })
    return out


# --------------------------------------------------------------------- main ---

if __name__ == "__main__":
    B, T, F = 2, 32, 16          # padded_input: [batch, frames, mel-bins]
    U, V = 8, 16                 # padded_target: [batch, label-len], vocab
    D, Dff, H, C1 = 32, 64, 4, 4

    raw = init_params(0, D=D, Dff=Dff, V=V, C1=C1, F=F, n_enc=1, n_dec=1)
    params = prepare_params(raw, num_heads=H)    # one-time weight prep

    key = jax.random.PRNGKey(0)
    k1, k2 = jax.random.split(key)
    padded_input = jax.random.normal(k1, (B, T, F), jnp.float32)
    padded_target = jax.random.randint(k2, (B, U), 0, V, jnp.int32)

    fwd = jax.jit(partial(transformer_forward, num_heads=H, label_smoothing=0.1))
    out = fwd(params, padded_input, padded_target)
    jax.block_until_ready(out)

    assert out["logits"].shape == (B, U, V)
    assert jnp.isfinite(out["loss"])
    print("KERNEL_OK")
</pallas_src>

<mosaic_0001>
module attributes {stable_mosaic.version = 11 : i64} {
  func.func @_linear_kernel(%arg0: i32, %arg1: i32, %arg2: i32, %arg3: memref<216x128xbf16, #tpu.memory_space<vmem>>, %arg4: memref<128x128xbf16, #tpu.memory_space<vmem>>, %arg5: memref<1x128xf32, #tpu.memory_space<vmem>>, %arg6: memref<216x128xbf16, #tpu.memory_space<vmem>>, %arg7: memref<216x128xf32, #tpu.memory_space<vmem>>) attributes {dimension_semantics = [#tpu.dimension_semantics<parallel>, #tpu.dimension_semantics<parallel>, #tpu.dimension_semantics<arbitrary>], iteration_bounds = array<i64: 1, 1, 1>, scalar_prefetch = 0 : i64, scratch_operands = 1 : i64, tpu.core_type = #tpu.core_type<tc>, window_params = [{transform_indices = @transform_0, window_bounds = array<i64: 216, 128>}, {transform_indices = @transform_1, window_bounds = array<i64: 128, 128>}, {transform_indices = @transform_2, window_bounds = array<i64: 1, 128>}, {transform_indices = @transform_3, window_bounds = array<i64: 216, 128>}]} {
    %c0_i32 = arith.constant 0 : i32
    %0 = arith.cmpi eq, %arg2, %c0_i32 : i32
    %1 = arith.extui %0 : i1 to i32
    %c0_i32_0 = arith.constant 0 : i32
    %2 = arith.cmpi ne, %1, %c0_i32_0 : i32
    scf.if %2 {
      %cst_10 = arith.constant 0.000000e+00 : f32
      %12 = vector.broadcast %cst_10 : f32 to vector<216x128xf32>
      %c0_11 = arith.constant 0 : index
      %c0_12 = arith.constant 0 : index
      %13 = vector.load %arg7[%c0_11, %c0_12] : memref<216x128xf32, #tpu.memory_space<vmem>>, vector<216x128xf32>
      tpu.vector_store %arg7[%c0_11, %c0_12], %12 {strides = array<i32>} : memref<216x128xf32, #tpu.memory_space<vmem>>, vector<216x128xf32>,
    } else {
    }
    %c0 = arith.constant 0 : index
    %c0_1 = arith.constant 0 : index
    %3 = vector.load %arg7[%c0, %c0_1] : memref<216x128xf32, #tpu.memory_space<vmem>>, vector<216x128xf32>
    %c0_2 = arith.constant 0 : index
    %c0_3 = arith.constant 0 : index
    %4 = vector.load %arg3[%c0_2, %c0_3] : memref<216x128xbf16, #tpu.memory_space<vmem>>, vector<216x128xbf16>
    %c0_4 = arith.constant 0 : index
    %c0_5 = arith.constant 0 : index
    %5 = vector.load %arg4[%c0_4, %c0_5] : memref<128x128xbf16, #tpu.memory_space<vmem>>, vector<128x128xbf16>
    %cst = arith.constant dense<0.000000e+00> : vector<216x128xf32>
    %6 = tpu.matmul %4, %5, %cst {dimension_numbers = #tpu.dot_dimension_numbers<[1], [0], [0], [1], [0, 0, 1, 1], [], []>} : vector<216x128xbf16>, vector<128x128xbf16>, vector<216x128xf32> -> vector<216x128xf32>
    %7 = arith.addf %3, %6 : vector<216x128xf32>
    %c0_6 = arith.constant 0 : index
    %c0_7 = arith.constant 0 : index
    %8 = vector.load %arg7[%c0_6, %c0_7] : memref<216x128xf32, #tpu.memory_space<vmem>>, vector<216x128xf32>
    tpu.vector_store %arg7[%c0_6, %c0_7], %7 {strides = array<i32>} : memref<216x128xf32, #tpu.memory_space<vmem>>, vector<216x128xf32>,
    %c0_i32_8 = arith.constant 0 : i32
    %9 = arith.cmpi eq, %arg2, %c0_i32_8 : i32
    %10 = arith.extui %9 : i1 to i32
    %c0_i32_9 = arith.constant 0 : i32
    %11 = arith.cmpi ne, %10, %c0_i32_9 : i32
    scf.if %11 {
      %c0_10 = arith.constant 0 : index
      %c0_11 = arith.constant 0 : index
      %12 = vector.load %arg7[%c0_10, %c0_11] : memref<216x128xf32, #tpu.memory_space<vmem>>, vector<216x128xf32>
      %c0_12 = arith.constant 0 : index
      %c0_13 = arith.constant 0 : index
      %13 = vector.load %arg5[%c0_12, %c0_13] : memref<1x128xf32, #tpu.memory_space<vmem>>, vector<1x128xf32>
      %14 = vector.broadcast %13 : vector<1x128xf32> to vector<216x128xf32>
      %15 = arith.addf %12, %14 : vector<216x128xf32>
      %cst_14 = arith.constant 0.000000e+00 : f32
      %16 = vector.broadcast %cst_14 : f32 to vector<216x128xf32>
      %17 = arith.maximumf %15, %16 : vector<216x128xf32>
      %18 = arith.truncf %17 : vector<216x128xf32> to vector<216x128xbf16>
      %c0_15 = arith.constant 0 : index
      %c0_16 = arith.constant 0 : index
      %19 = vector.load %arg6[%c0_15, %c0_16] : memref<216x128xbf16, #tpu.memory_space<vmem>>, vector<216x128xbf16>
      tpu.vector_store %arg6[%c0_15, %c0_16], %18 {strides = array<i32>} : memref<216x128xbf16, #tpu.memory_space<vmem>>, vector<216x128xbf16>,
    } else {
    }
    return
  }
  func.func @transform_0(%arg0: i32, %arg1: i32, %arg2: i32) -> (i32, i32) {
    %c0_i32 = arith.constant 0 : i32
    return %arg0, %arg2 : i32, i32
  }
  func.func @transform_1(%arg0: i32, %arg1: i32, %arg2: i32) -> (i32, i32) {
    %c0_i32 = arith.constant 0 : i32
    return %arg2, %arg1 : i32, i32
  }
  func.func @transform_2(%arg0: i32, %arg1: i32, %arg2: i32) -> (i32, i32) {
    %c0_i32 = arith.constant 0 : i32
    %c0_i32_0 = arith.constant 0 : i32
    return %c0_i32, %arg1 : i32, i32
  }
  func.func @transform_3(%arg0: i32, %arg1: i32, %arg2: i32) -> (i32, i32) {
    %c0_i32 = arith.constant 0 : i32
    return %arg0, %arg1 : i32, i32
  }
}

module attributes {stable_mosaic.version = 11 : i64} {
  func.func @_linear_kernel(%arg0: i32, %arg1: i32, %arg2: i32, %arg3: memref<48x128xbf16, #tpu.memory_space<vmem>>, %arg4: memref<128x128xbf16, #tpu.memory_space<vmem>>, %arg5: memref<1x128xf32, #tpu.memory_space<vmem>>, %arg6: memref<48x128xbf16, #tpu.memory_space<vmem>>, %arg7: memref<48x128xf32, #tpu.memory_space<vmem>>) attributes {dimension_semantics = [#tpu.dimension_semantics<parallel>, #tpu.dimension_semantics<parallel>, #tpu.dimension_semantics<arbitrary>], iteration_bounds = array<i64: 1, 1, 1>, scalar_prefetch = 0 : i64, scratch_operands = 1 : i64, tpu.core_type = #tpu.core_type<tc>, window_params = [{transform_indices = @transform_0, window_bounds = array<i64: 48, 128>}, {transform_indices = @transform_1, window_bounds = array<i64: 128, 128>}, {transform_indices = @transform_2, window_bounds = array<i64: 1, 128>}, {transform_indices = @transform_3, window_bounds = array<i64: 48, 128>}]} {
    %c0_i32 = arith.constant 0 : i32
    %0 = arith.cmpi eq, %arg2, %c0_i32 : i32
    %1 = arith.extui %0 : i1 to i32
    %c0_i32_0 = arith.constant 0 : i32
    %2 = arith.cmpi ne, %1, %c0_i32_0 : i32
    scf.if %2 {
      %cst_10 = arith.constant 0.000000e+00 : f32
      %12 = vector.broadcast %cst_10 : f32 to vector<48x128xf32>
      %c0_11 = arith.constant 0 : index
      %c0_12 = arith.constant 0 : index
      %13 = vector.load %arg7[%c0_11, %c0_12] : memref<48x128xf32, #tpu.memory_space<vmem>>, vector<48x128xf32>
      tpu.vector_store %arg7[%c0_11, %c0_12], %12 {strides = array<i32>} : memref<48x128xf32, #tpu.memory_space<vmem>>, vector<48x128xf32>,
    } else {
    }
    %c0 = arith.constant 0 : index
    %c0_1 = arith.constant 0 : index
    %3 = vector.load %arg7[%c0, %c0_1] : memref<48x128xf32, #tpu.memory_space<vmem>>, vector<48x128xf32>
    %c0_2 = arith.constant 0 : index
    %c0_3 = arith.constant 0 : index
    %4 = vector.load %arg3[%c0_2, %c0_3] : memref<48x128xbf16, #tpu.memory_space<vmem>>, vector<48x128xbf16>
    %c0_4 = arith.constant 0 : index
    %c0_5 = arith.constant 0 : index
    %5 = vector.load %arg4[%c0_4, %c0_5] : memref<128x128xbf16, #tpu.memory_space<vmem>>, vector<128x128xbf16>
    %cst = arith.constant dense<0.000000e+00> : vector<48x128xf32>
    %6 = tpu.matmul %4, %5, %cst {dimension_numbers = #tpu.dot_dimension_numbers<[1], [0], [0], [1], [0, 0, 1, 1], [], []>} : vector<48x128xbf16>, vector<128x128xbf16>, vector<48x128xf32> -> vector<48x128xf32>
    %7 = arith.addf %3, %6 : vector<48x128xf32>
    %c0_6 = arith.constant 0 : index
    %c0_7 = arith.constant 0 : index
    %8 = vector.load %arg7[%c0_6, %c0_7] : memref<48x128xf32, #tpu.memory_space<vmem>>, vector<48x128xf32>
    tpu.vector_store %arg7[%c0_6, %c0_7], %7 {strides = array<i32>} : memref<48x128xf32, #tpu.memory_space<vmem>>, vector<48x128xf32>,
    %c0_i32_8 = arith.constant 0 : i32
    %9 = arith.cmpi eq, %arg2, %c0_i32_8 : i32
    %10 = arith.extui %9 : i1 to i32
    %c0_i32_9 = arith.constant 0 : i32
    %11 = arith.cmpi ne, %10, %c0_i32_9 : i32
    scf.if %11 {
      %c0_10 = arith.constant 0 : index
      %c0_11 = arith.constant 0 : index
      %12 = vector.load %arg7[%c0_10, %c0_11] : memref<48x128xf32, #tpu.memory_space<vmem>>, vector<48x128xf32>
      %c0_12 = arith.constant 0 : index
      %c0_13 = arith.constant 0 : index
      %13 = vector.load %arg5[%c0_12, %c0_13] : memref<1x128xf32, #tpu.memory_space<vmem>>, vector<1x128xf32>
      %14 = vector.broadcast %13 : vector<1x128xf32> to vector<48x128xf32>
      %15 = arith.addf %12, %14 : vector<48x128xf32>
      %cst_14 = arith.constant 0.000000e+00 : f32
      %16 = vector.broadcast %cst_14 : f32 to vector<48x128xf32>
      %17 = arith.maximumf %15, %16 : vector<48x128xf32>
      %18 = arith.truncf %17 : vector<48x128xf32> to vector<48x128xbf16>
      %c0_15 = arith.constant 0 : index
      %c0_16 = arith.constant 0 : index
      %19 = vector.load %arg6[%c0_15, %c0_16] : memref<48x128xbf16, #tpu.memory_space<vmem>>, vector<48x128xbf16>
      tpu.vector_store %arg6[%c0_15, %c0_16], %18 {strides = array<i32>} : memref<48x128xbf16, #tpu.memory_space<vmem>>, vector<48x128xbf16>,
    } else {
    }
    return
  }
  func.func @transform_0(%arg0: i32, %arg1: i32, %arg2: i32) -> (i32, i32) {
    %c0_i32 = arith.constant 0 : i32
    return %arg0, %arg2 : i32, i32
  }
  func.func @transform_1(%arg0: i32, %arg1: i32, %arg2: i32) -> (i32, i32) {
    %c0_i32 = arith.constant 0 : i32
    return %arg2, %arg1 : i32, i32
  }
  func.func @transform_2(%arg0: i32, %arg1: i32, %arg2: i32) -> (i32, i32) {
    %c0_i32 = arith.constant 0 : i32
    %c0_i32_0 = arith.constant 0 : i32
    return %c0_i32, %arg1 : i32, i32
  }
  func.func @transform_3(%arg0: i32, %arg1: i32, %arg2: i32) -> (i32, i32) {
    %c0_i32 = arith.constant 0 : i32
    return %arg0, %arg1 : i32, i32
  }
}

module attributes {stable_mosaic.version = 11 : i64} {
  func.func @_linear_kernel(%arg0: i32, %arg1: i32, %arg2: i32, %arg3: memref<16x128xbf16, #tpu.memory_space<vmem>>, %arg4: memref<128x128xbf16, #tpu.memory_space<vmem>>, %arg5: memref<1x128xf32, #tpu.memory_space<vmem>>, %arg6: memref<16x128xf32, #tpu.memory_space<vmem>>, %arg7: memref<16x128xf32, #tpu.memory_space<vmem>>) attributes {dimension_semantics = [#tpu.dimension_semantics<parallel>, #tpu.dimension_semantics<parallel>, #tpu.dimension_semantics<arbitrary>], iteration_bounds = array<i64: 1, 1, 1>, scalar_prefetch = 0 : i64, scratch_operands = 1 : i64, tpu.core_type = #tpu.core_type<tc>, window_params = [{transform_indices = @transform_0, window_bounds = array<i64: 16, 128>}, {transform_indices = @transform_1, window_bounds = array<i64: 128, 128>}, {transform_indices = @transform_2, window_bounds = array<i64: 1, 128>}, {transform_indices = @transform_3, window_bounds = array<i64: 16, 128>}]} {
    %c0_i32 = arith.constant 0 : i32
    %0 = arith.cmpi eq, %arg2, %c0_i32 : i32
    %1 = arith.extui %0 : i1 to i32
    %c0_i32_0 = arith.constant 0 : i32
    %2 = arith.cmpi ne, %1, %c0_i32_0 : i32
    scf.if %2 {
      %cst_10 = arith.constant 0.000000e+00 : f32
      %12 = vector.broadcast %cst_10 : f32 to vector<16x128xf32>
      %c0_11 = arith.constant 0 : index
      %c0_12 = arith.constant 0 : index
      %13 = vector.load %arg7[%c0_11, %c0_12] : memref<16x128xf32, #tpu.memory_space<vmem>>, vector<16x128xf32>
      tpu.vector_store %arg7[%c0_11, %c0_12], %12 {strides = array<i32>} : memref<16x128xf32, #tpu.memory_space<vmem>>, vector<16x128xf32>,
    } else {
    }
    %c0 = arith.constant 0 : index
    %c0_1 = arith.constant 0 : index
    %3 = vector.load %arg7[%c0, %c0_1] : memref<16x128xf32, #tpu.memory_space<vmem>>, vector<16x128xf32>
    %c0_2 = arith.constant 0 : index
    %c0_3 = arith.constant 0 : index
    %4 = vector.load %arg3[%c0_2, %c0_3] : memref<16x128xbf16, #tpu.memory_space<vmem>>, vector<16x128xbf16>
    %c0_4 = arith.constant 0 : index
    %c0_5 = arith.constant 0 : index
    %5 = vector.load %arg4[%c0_4, %c0_5] : memref<128x128xbf16, #tpu.memory_space<vmem>>, vector<128x128xbf16>
    %cst = arith.constant dense<0.000000e+00> : vector<16x128xf32>
    %6 = tpu.matmul %4, %5, %cst {dimension_numbers = #tpu.dot_dimension_numbers<[1], [0], [0], [1], [0, 0, 1, 1], [], []>} : vector<16x128xbf16>, vector<128x128xbf16>, vector<16x128xf32> -> vector<16x128xf32>
    %7 = arith.addf %3, %6 : vector<16x128xf32>
    %c0_6 = arith.constant 0 : index
    %c0_7 = arith.constant 0 : index
    %8 = vector.load %arg7[%c0_6, %c0_7] : memref<16x128xf32, #tpu.memory_space<vmem>>, vector<16x128xf32>
    tpu.vector_store %arg7[%c0_6, %c0_7], %7 {strides = array<i32>} : memref<16x128xf32, #tpu.memory_space<vmem>>, vector<16x128xf32>,
    %c0_i32_8 = arith.constant 0 : i32
    %9 = arith.cmpi eq, %arg2, %c0_i32_8 : i32
    %10 = arith.extui %9 : i1 to i32
    %c0_i32_9 = arith.constant 0 : i32
    %11 = arith.cmpi ne, %10, %c0_i32_9 : i32
    scf.if %11 {
      %c0_10 = arith.constant 0 : index
      %c0_11 = arith.constant 0 : index
      %12 = vector.load %arg7[%c0_10, %c0_11] : memref<16x128xf32, #tpu.memory_space<vmem>>, vector<16x128xf32>
      %c0_12 = arith.constant 0 : index
      %c0_13 = arith.constant 0 : index
      %13 = vector.load %arg5[%c0_12, %c0_13] : memref<1x128xf32, #tpu.memory_space<vmem>>, vector<1x128xf32>
      %14 = vector.broadcast %13 : vector<1x128xf32> to vector<16x128xf32>
      %15 = arith.addf %12, %14 : vector<16x128xf32>
      %c0_14 = arith.constant 0 : index
      %c0_15 = arith.constant 0 : index
      %16 = vector.load %arg6[%c0_14, %c0_15] : memref<16x128xf32, #tpu.memory_space<vmem>>, vector<16x128xf32>
      tpu.vector_store %arg6[%c0_14, %c0_15], %15 {strides = array<i32>} : memref<16x128xf32, #tpu.memory_space<vmem>>, vector<16x128xf32>,
    } else {
    }
    return
  }
  func.func @transform_0(%arg0: i32, %arg1: i32, %arg2: i32) -> (i32, i32) {
    %c0_i32 = arith.constant 0 : i32
    return %arg0, %arg2 : i32, i32
  }
  func.func @transform_1(%arg0: i32, %arg1: i32, %arg2: i32) -> (i32, i32) {
    %c0_i32 = arith.constant 0 : i32
    return %arg2, %arg1 : i32, i32
  }
  func.func @transform_2(%arg0: i32, %arg1: i32, %arg2: i32) -> (i32, i32) {
    %c0_i32 = arith.constant 0 : i32
    %c0_i32_0 = arith.constant 0 : i32
    return %c0_i32, %arg1 : i32, i32
  }
  func.func @transform_3(%arg0: i32, %arg1: i32, %arg2: i32) -> (i32, i32) {
    %c0_i32 = arith.constant 0 : i32
    return %arg0, %arg1 : i32, i32
  }
}

module attributes {stable_mosaic.version = 11 : i64} {
  func.func @_linear_kernel(%arg0: i32, %arg1: i32, %arg2: i32, %arg3: memref<16x128xbf16, #tpu.memory_space<vmem>>, %arg4: memref<128x128xbf16, #tpu.memory_space<vmem>>, %arg5: memref<1x128xf32, #tpu.memory_space<vmem>>, %arg6: memref<16x128xbf16, #tpu.memory_space<vmem>>, %arg7: memref<16x128xf32, #tpu.memory_space<vmem>>) attributes {dimension_semantics = [#tpu.dimension_semantics<parallel>, #tpu.dimension_semantics<parallel>, #tpu.dimension_semantics<arbitrary>], iteration_bounds = array<i64: 1, 1, 1>, scalar_prefetch = 0 : i64, scratch_operands = 1 : i64, tpu.core_type = #tpu.core_type<tc>, window_params = [{transform_indices = @transform_0, window_bounds = array<i64: 16, 128>}, {transform_indices = @transform_1, window_bounds = array<i64: 128, 128>}, {transform_indices = @transform_2, window_bounds = array<i64: 1, 128>}, {transform_indices = @transform_3, window_bounds = array<i64: 16, 128>}]} {
    %c0_i32 = arith.constant 0 : i32
    %0 = arith.cmpi eq, %arg2, %c0_i32 : i32
    %1 = arith.extui %0 : i1 to i32
    %c0_i32_0 = arith.constant 0 : i32
    %2 = arith.cmpi ne, %1, %c0_i32_0 : i32
    scf.if %2 {
      %cst_10 = arith.constant 0.000000e+00 : f32
      %12 = vector.broadcast %cst_10 : f32 to vector<16x128xf32>
      %c0_11 = arith.constant 0 : index
      %c0_12 = arith.constant 0 : index
      %13 = vector.load %arg7[%c0_11, %c0_12] : memref<16x128xf32, #tpu.memory_space<vmem>>, vector<16x128xf32>
      tpu.vector_store %arg7[%c0_11, %c0_12], %12 {strides = array<i32>} : memref<16x128xf32, #tpu.memory_space<vmem>>, vector<16x128xf32>,
    } else {
    }
    %c0 = arith.constant 0 : index
    %c0_1 = arith.constant 0 : index
    %3 = vector.load %arg7[%c0, %c0_1] : memref<16x128xf32, #tpu.memory_space<vmem>>, vector<16x128xf32>
    %c0_2 = arith.constant 0 : index
    %c0_3 = arith.constant 0 : index
    %4 = vector.load %arg3[%c0_2, %c0_3] : memref<16x128xbf16, #tpu.memory_space<vmem>>, vector<16x128xbf16>
    %c0_4 = arith.constant 0 : index
    %c0_5 = arith.constant 0 : index
    %5 = vector.load %arg4[%c0_4, %c0_5] : memref<128x128xbf16, #tpu.memory_space<vmem>>, vector<128x128xbf16>
    %cst = arith.constant dense<0.000000e+00> : vector<16x128xf32>
    %6 = tpu.matmul %4, %5, %cst {dimension_numbers = #tpu.dot_dimension_numbers<[1], [0], [0], [1], [0, 0, 1, 1], [], []>} : vector<16x128xbf16>, vector<128x128xbf16>, vector<16x128xf32> -> vector<16x128xf32>
    %7 = arith.addf %3, %6 : vector<16x128xf32>
    %c0_6 = arith.constant 0 : index
    %c0_7 = arith.constant 0 : index
    %8 = vector.load %arg7[%c0_6, %c0_7] : memref<16x128xf32, #tpu.memory_space<vmem>>, vector<16x128xf32>
    tpu.vector_store %arg7[%c0_6, %c0_7], %7 {strides = array<i32>} : memref<16x128xf32, #tpu.memory_space<vmem>>, vector<16x128xf32>,
    %c0_i32_8 = arith.constant 0 : i32
    %9 = arith.cmpi eq, %arg2, %c0_i32_8 : i32
    %10 = arith.extui %9 : i1 to i32
    %c0_i32_9 = arith.constant 0 : i32
    %11 = arith.cmpi ne, %10, %c0_i32_9 : i32
    scf.if %11 {
      %c0_10 = arith.constant 0 : index
      %c0_11 = arith.constant 0 : index
      %12 = vector.load %arg7[%c0_10, %c0_11] : memref<16x128xf32, #tpu.memory_space<vmem>>, vector<16x128xf32>
      %c0_12 = arith.constant 0 : index
      %c0_13 = arith.constant 0 : index
      %13 = vector.load %arg5[%c0_12, %c0_13] : memref<1x128xf32, #tpu.memory_space<vmem>>, vector<1x128xf32>
      %14 = vector.broadcast %13 : vector<1x128xf32> to vector<16x128xf32>
      %15 = arith.addf %12, %14 : vector<16x128xf32>
      %16 = arith.truncf %15 : vector<16x128xf32> to vector<16x128xbf16>
      %c0_14 = arith.constant 0 : index
      %c0_15 = arith.constant 0 : index
      %17 = vector.load %arg6[%c0_14, %c0_15] : memref<16x128xbf16, #tpu.memory_space<vmem>>, vector<16x128xbf16>
      tpu.vector_store %arg6[%c0_14, %c0_15], %16 {strides = array<i32>} : memref<16x128xbf16, #tpu.memory_space<vmem>>, vector<16x128xbf16>,
    } else {
    }
    return
  }
  func.func @transform_0(%arg0: i32, %arg1: i32, %arg2: i32) -> (i32, i32) {
    %c0_i32 = arith.constant 0 : i32
    return %arg0, %arg2 : i32, i32
  }
  func.func @transform_1(%arg0: i32, %arg1: i32, %arg2: i32) -> (i32, i32) {
    %c0_i32 = arith.constant 0 : i32
    return %arg2, %arg1 : i32, i32
  }
  func.func @transform_2(%arg0: i32, %arg1: i32, %arg2: i32) -> (i32, i32) {
    %c0_i32 = arith.constant 0 : i32
    %c0_i32_0 = arith.constant 0 : i32
    return %c0_i32, %arg1 : i32, i32
  }
  func.func @transform_3(%arg0: i32, %arg1: i32, %arg2: i32) -> (i32, i32) {
    %c0_i32 = arith.constant 0 : i32
    return %arg0, %arg1 : i32, i32
  }
}

module attributes {stable_mosaic.version = 11 : i64} {
  func.func @_flash_attn_kernel(%arg0: i32, %arg1: i32, %arg2: i32, %arg3: memref<1x8x8xbf16, #tpu.memory_space<vmem>>, %arg4: memref<1x8x8xbf16, #tpu.memory_space<vmem>>, %arg5: memref<1x8x8xbf16, #tpu.memory_space<vmem>>, %arg6: memref<1x8x8xbf16, #tpu.memory_space<vmem>>, %arg7: memref<8x1xf32, #tpu.memory_space<vmem>>, %arg8: memref<8x1xf32, #tpu.memory_space<vmem>>, %arg9: memref<8x8xf32, #tpu.memory_space<vmem>>) attributes {dimension_semantics = [#tpu.dimension_semantics<parallel>, #tpu.dimension_semantics<parallel>, #tpu.dimension_semantics<arbitrary>], iteration_bounds = array<i64: 8, 1, 1>, scalar_prefetch = 0 : i64, scratch_operands = 3 : i64, tpu.core_type = #tpu.core_type<tc>, window_params = [{transform_indices = @transform_0, window_bounds = array<i64: 1, 8, 8>}, {transform_indices = @transform_1, window_bounds = array<i64: 1, 8, 8>}, {transform_indices = @transform_2, window_bounds = array<i64: 1, 8, 8>}, {transform_indices = @transform_3, window_bounds = array<i64: 1, 8, 8>}]} {
    %c0_i32 = arith.constant 0 : i32
    %0 = arith.cmpi eq, %arg2, %c0_i32 : i32
    %1 = arith.extui %0 : i1 to i32
    %c0_i32_0 = arith.constant 0 : i32
    %2 = arith.cmpi ne, %1, %c0_i32_0 : i32
    scf.if %2 {
      %cst_27 = arith.constant -1.000000e+30 : f32
      %44 = vector.broadcast %cst_27 : f32 to vector<8x1xf32>
      %c0_28 = arith.constant 0 : index
      %c0_29 = arith.constant 0 : index
      %45 = vector.load %arg7[%c0_28, %c0_29] : memref<8x1xf32, #tpu.memory_space<vmem>>, vector<8x1xf32>
      tpu.vector_store %arg7[%c0_28, %c0_29], %44 {strides = array<i32>} : memref<8x1xf32, #tpu.memory_space<vmem>>, vector<8x1xf32>,
      %cst_30 = arith.constant 0.000000e+00 : f32
      %46 = vector.broadcast %cst_30 : f32 to vector<8x1xf32>
      %c0_31 = arith.constant 0 : index
      %c0_32 = arith.constant 0 : index
      %47 = vector.load %arg8[%c0_31, %c0_32] : memref<8x1xf32, #tpu.memory_space<vmem>>, vector<8x1xf32>
      tpu.vector_store %arg8[%c0_31, %c0_32], %46 {strides = array<i32>} : memref<8x1xf32, #tpu.memory_space<vmem>>, vector<8x1xf32>,
      %cst_33 = arith.constant 0.000000e+00 : f32
      %48 = vector.broadcast %cst_33 : f32 to vector<8x8xf32>
      %c0_34 = arith.constant 0 : index
      %c0_35 = arith.constant 0 : index
      %49 = vector.load %arg9[%c0_34, %c0_35] : memref<8x8xf32, #tpu.memory_space<vmem>>, vector<8x8xf32>
      tpu.vector_store %arg9[%c0_34, %c0_35], %48 {strides = array<i32>} : memref<8x8xf32, #tpu.memory_space<vmem>>, vector<8x8xf32>,
    } else {
    }
    %c0 = arith.constant 0 : index
    %c0_1 = arith.constant 0 : index
    %c0_2 = arith.constant 0 : index
    %3 = vector.load %arg3[%c0, %c0_1, %c0_2] : memref<1x8x8xbf16, #tpu.memory_space<vmem>>, vector<1x8x8xbf16>
    %4 = vector.shape_cast %3 : vector<1x8x8xbf16> to vector<8x8xbf16>
    %c0_3 = arith.constant 0 : index
    %c0_4 = arith.constant 0 : index
    %c0_5 = arith.constant 0 : index
    %5 = vector.load %arg4[%c0_3, %c0_4, %c0_5] : memref<1x8x8xbf16, #tpu.memory_space<vmem>>, vector<1x8x8xbf16>
    %6 = vector.shape_cast %5 : vector<1x8x8xbf16> to vector<8x8xbf16>
    %c0_6 = arith.constant 0 : index
    %c0_7 = arith.constant 0 : index
    %c0_8 = arith.constant 0 : index
    %7 = vector.load %arg5[%c0_6, %c0_7, %c0_8] : memref<1x8x8xbf16, #tpu.memory_space<vmem>>, vector<1x8x8xbf16>
    %8 = vector.shape_cast %7 : vector<1x8x8xbf16> to vector<8x8xbf16>
    %cst = arith.constant dense<0.000000e+00> : vector<8x8xf32>
    %9 = tpu.matmul %4, %6, %cst {dimension_numbers = #tpu.dot_dimension_numbers<[1], [1], [0], [0], [0, 0, 1, 0], [], []>} : vector<8x8xbf16>, vector<8x8xbf16>, vector<8x8xf32> -> vector<8x8xf32>
    %c8_i32 = arith.constant 8 : i32
    %10 = arith.muli %arg2, %c8_i32 : i32
    %11 = tpu.iota {dimensions = array<i32: 1>} : vector<8x8xi32>
    %12 = vector.broadcast %10 : i32 to vector<8x8xi32>
    %13 = arith.addi %12, %11 : vector<8x8xi32>
    %c7_i32 = arith.constant 7 : i32
    %14 = vector.broadcast %c7_i32 : i32 to vector<8x8xi32>
    %15 = arith.cmpi slt, %13, %14 : vector<8x8xi32>
    %cst_9 = arith.constant -1.000000e+30 : f32
    %16 = vector.broadcast %cst_9 : f32 to vector<8x8xf32>
    %17 = arith.select %15, %9, %16 : vector<8x8xi1>, vector<8x8xf32>
    %c0_10 = arith.constant 0 : index
    %c0_11 = arith.constant 0 : index
    %18 = vector.load %arg7[%c0_10, %c0_11] : memref<8x1xf32, #tpu.memory_space<vmem>>, vector<8x1xf32>
    %cst_12 = arith.constant dense<0xFF800000> : vector<8xf32>
    %19 = vector.multi_reduction <maximumf>, %17, %cst_12 [1] : vector<8x8xf32> to vector<8xf32>
    %20 = vector.shape_cast %19 : vector<8xf32> to vector<8x1xf32>
    %21 = arith.maximumf %18, %20 : vector<8x1xf32>
    %22 = arith.subf %18, %21 : vector<8x1xf32>
    %23 = math.exp %22 : vector<8x1xf32>
    %24 = vector.broadcast %21 : vector<8x1xf32> to vector<8x8xf32>
    %25 = arith.subf %17, %24 : vector<8x8xf32>
    %26 = math.exp %25 : vector<8x8xf32>
    %c0_13 = arith.constant 0 : index
    %c0_14 = arith.constant 0 : index
    %27 = vector.load %arg8[%c0_13, %c0_14] : memref<8x1xf32, #tpu.memory_space<vmem>>, vector<8x1xf32>
    %28 = arith.mulf %23, %27 : vector<8x1xf32>
    %cst_15 = arith.constant dense<0.000000e+00> : vector<8xf32>
    %29 = vector.multi_reduction <add>, %26, %cst_15 [1] : vector<8x8xf32> to vector<8xf32>
    %30 = vector.shape_cast %29 : vector<8xf32> to vector<8x1xf32>
    %31 = arith.addf %28, %30 : vector<8x1xf32>
    %c0_16 = arith.constant 0 : index
    %c0_17 = arith.constant 0 : index
    %32 = vector.load %arg8[%c0_16, %c0_17] : memref<8x1xf32, #tpu.memory_space<vmem>>, vector<8x1xf32>
    tpu.vector_store %arg8[%c0_16, %c0_17], %31 {strides = array<i32>} : memref<8x1xf32, #tpu.memory_space<vmem>>, vector<8x1xf32>,
    %c0_18 = arith.constant 0 : index
    %c0_19 = arith.constant 0 : index
    %33 = vector.load %arg9[%c0_18, %c0_19] : memref<8x8xf32, #tpu.memory_space<vmem>>, vector<8x8xf32>
    %34 = vector.broadcast %23 : vector<8x1xf32> to vector<8x8xf32>
    %35 = arith.mulf %34, %33 : vector<8x8xf32>
    %36 = arith.truncf %26 : vector<8x8xf32> to vector<8x8xbf16>
    %cst_20 = arith.constant dense<0.000000e+00> : vector<8x8xf32>
    %37 = tpu.matmul %36, %8, %cst_20 {dimension_numbers = #tpu.dot_dimension_numbers<[1], [0], [0], [1], [0, 0, 1, 1], [], []>} : vector<8x8xbf16>, vector<8x8xbf16>, vector<8x8xf32> -> vector<8x8xf32>
    %38 = arith.addf %35, %37 : vector<8x8xf32>
    %c0_21 = arith.constant 0 : index
    %c0_22 = arith.constant 0 : index
    %39 = vector.load %arg9[%c0_21, %c0_22] : memref<8x8xf32, #tpu.memory_space<vmem>>, vector<8x8xf32>
    tpu.vector_store %arg9[%c0_21, %c0_22], %38 {strides = array<i32>} : memref<8x8xf32, #tpu.memory_space<vmem>>, vector<8x8xf32>,
    %c0_23 = arith.constant 0 : index
    %c0_24 = arith.constant 0 : index
    %40 = vector.load %arg7[%c0_23, %c0_24] : memref<8x1xf32, #tpu.memory_space<vmem>>, vector<8x1xf32>
    tpu.vector_store %arg7[%c0_23, %c0_24], %21 {strides = array<i32>} : memref<8x1xf32, #tpu.memory_space<vmem>>, vector<8x1xf32>,
    %c0_i32_25 = arith.constant 0 : i32
    %41 = arith.cmpi eq, %arg2, %c0_i32_25 : i32
    %42 = arith.extui %41 : i1 to i32
    %c0_i32_26 = arith.constant 0 : i32
    %43 = arith.cmpi ne, %42, %c0_i32_26 : i32
    scf.if %43 {
      %c0_27 = arith.constant 0 : index
      %c0_28 = arith.constant 0 : index
      %44 = vector.load %arg9[%c0_27, %c0_28] : memref<8x8xf32, #tpu.memory_space<vmem>>, vector<8x8xf32>
      %c0_29 = arith.constant 0 : index
      %c0_30 = arith.constant 0 : index
      %45 = vector.load %arg8[%c0_29, %c0_30] : memref<8x1xf32, #tpu.memory_space<vmem>>, vector<8x1xf32>
      %46 = tpu.reciprocal %45 {approx = true} : vector<8x1xf32> -> vector<8x1xf32>
      %47 = vector.broadcast %46 : vector<8x1xf32> to vector<8x8xf32>
      %48 = arith.mulf %44, %47 : vector<8x8xf32>
      %49 = arith.truncf %48 : vector<8x8xf32> to vector<8x8xbf16>
      %c0_31 = arith.constant 0 : index
      %c0_32 = arith.constant 0 : index
      %c0_33 = arith.constant 0 : index
      %50 = vector.load %arg6[%c0_31, %c0_32, %c0_33] : memref<1x8x8xbf16, #tpu.memory_space<vmem>>, vector<1x8x8xbf16>
      %51 = vector.shape_cast %50 : vector<1x8x8xbf16> to vector<8x8xbf16>
      %52 = vector.shape_cast %49 : vector<8x8xbf16> to vector<1x8x8xbf16>
      tpu.vector_store %arg6[%c0_31, %c0_32, %c0_33], %52 {strides = array<i32>} : memref<1x8x8xbf16, #tpu.memory_space<vmem>>, vector<1x8x8xbf16>,
    } else {
    }
    return
  }
  func.func @transform_0(%arg0: i32, %arg1: i32, %arg2: i32) -> (i32, i32, i32) {
    %c0_i32 = arith.constant 0 : i32
    %c0_i32_0 = arith.constant 0 : i32
    return %arg0, %arg1, %c0_i32 : i32, i32, i32
  }
  func.func @transform_1(%arg0: i32, %arg1: i32, %arg2: i32) -> (i32, i32, i32) {
    %c0_i32 = arith.constant 0 : i32
    %c0_i32_0 = arith.constant 0 : i32
    return %arg0, %arg2, %c0_i32 : i32, i32, i32
  }
  func.func @transform_2(%arg0: i32, %arg1: i32, %arg2: i32) -> (i32, i32, i32) {
    %c0_i32 = arith.constant 0 : i32
    %c0_i32_0 = arith.constant 0 : i32
    return %arg0, %arg2, %c0_i32 : i32, i32, i32
  }
  func.func @transform_3(%arg0: i32, %arg1: i32, %arg2: i32) -> (i32, i32, i32) {
    %c0_i32 = arith.constant 0 : i32
    %c0_i32_0 = arith.constant 0 : i32
    return %arg0, %arg1, %c0_i32 : i32, i32, i32
  }
}

module attributes {stable_mosaic.version = 11 : i64} {
  func.func @_linear_kernel(%arg0: i32, %arg1: i32, %arg2: i32, %arg3: memref<16x128xbf16, #tpu.memory_space<vmem>>, %arg4: memref<128x128xbf16, #tpu.memory_space<vmem>>, %arg5: memref<1x128xf32, #tpu.memory_space<vmem>>, %arg6: memref<16x128xf32, #tpu.memory_space<vmem>>, %arg7: memref<16x128xf32, #tpu.memory_space<vmem>>) attributes {dimension_semantics = [#tpu.dimension_semantics<parallel>, #tpu.dimension_semantics<parallel>, #tpu.dimension_semantics<arbitrary>], iteration_bounds = array<i64: 1, 1, 1>, scalar_prefetch = 0 : i64, scratch_operands = 1 : i64, tpu.core_type = #tpu.core_type<tc>, window_params = [{transform_indices = @transform_0, window_bounds = array<i64: 16, 128>}, {transform_indices = @transform_1, window_bounds = array<i64: 128, 128>}, {transform_indices = @transform_2, window_bounds = array<i64: 1, 128>}, {transform_indices = @transform_3, window_bounds = array<i64: 16, 128>}]} {
    %c0_i32 = arith.constant 0 : i32
    %0 = arith.cmpi eq, %arg2, %c0_i32 : i32
    %1 = arith.extui %0 : i1 to i32
    %c0_i32_0 = arith.constant 0 : i32
    %2 = arith.cmpi ne, %1, %c0_i32_0 : i32
    scf.if %2 {
      %cst_10 = arith.constant 0.000000e+00 : f32
      %12 = vector.broadcast %cst_10 : f32 to vector<16x128xf32>
      %c0_11 = arith.constant 0 : index
      %c0_12 = arith.constant 0 : index
      %13 = vector.load %arg7[%c0_11, %c0_12] : memref<16x128xf32, #tpu.memory_space<vmem>>, vector<16x128xf32>
      tpu.vector_store %arg7[%c0_11, %c0_12], %12 {strides = array<i32>} : memref<16x128xf32, #tpu.memory_space<vmem>>, vector<16x128xf32>,
    } else {
    }
    %c0 = arith.constant 0 : index
    %c0_1 = arith.constant 0 : index
    %3 = vector.load %arg7[%c0, %c0_1] : memref<16x128xf32, #tpu.memory_space<vmem>>, vector<16x128xf32>
    %c0_2 = arith.constant 0 : index
    %c0_3 = arith.constant 0 : index
    %4 = vector.load %arg3[%c0_2, %c0_3] : memref<16x128xbf16, #tpu.memory_space<vmem>>, vector<16x128xbf16>
    %c0_4 = arith.constant 0 : index
    %c0_5 = arith.constant 0 : index
    %5 = vector.load %arg4[%c0_4, %c0_5] : memref<128x128xbf16, #tpu.memory_space<vmem>>, vector<128x128xbf16>
    %cst = arith.constant dense<0.000000e+00> : vector<16x128xf32>
    %6 = tpu.matmul %4, %5, %cst {dimension_numbers = #tpu.dot_dimension_numbers<[1], [0], [0], [1], [0, 0, 1, 1], [], []>} : vector<16x128xbf16>, vector<128x128xbf16>, vector<16x128xf32> -> vector<16x128xf32>
    %7 = arith.addf %3, %6 : vector<16x128xf32>
    %c0_6 = arith.constant 0 : index
    %c0_7 = arith.constant 0 : index
    %8 = vector.load %arg7[%c0_6, %c0_7] : memref<16x128xf32, #tpu.memory_space<vmem>>, vector<16x128xf32>
    tpu.vector_store %arg7[%c0_6, %c0_7], %7 {strides = array<i32>} : memref<16x128xf32, #tpu.memory_space<vmem>>, vector<16x128xf32>,
    %c0_i32_8 = arith.constant 0 : i32
    %9 = arith.cmpi eq, %arg2, %c0_i32_8 : i32
    %10 = arith.extui %9 : i1 to i32
    %c0_i32_9 = arith.constant 0 : i32
    %11 = arith.cmpi ne, %10, %c0_i32_9 : i32
    scf.if %11 {
      %c0_10 = arith.constant 0 : index
      %c0_11 = arith.constant 0 : index
      %12 = vector.load %arg7[%c0_10, %c0_11] : memref<16x128xf32, #tpu.memory_space<vmem>>, vector<16x128xf32>
      %c0_12 = arith.constant 0 : index
      %c0_13 = arith.constant 0 : index
      %13 = vector.load %arg5[%c0_12, %c0_13] : memref<1x128xf32, #tpu.memory_space<vmem>>, vector<1x128xf32>
      %14 = vector.broadcast %13 : vector<1x128xf32> to vector<16x128xf32>
      %15 = arith.addf %12, %14 : vector<16x128xf32>
      %c0_14 = arith.constant 0 : index
      %c0_15 = arith.constant 0 : index
      %16 = vector.load %arg6[%c0_14, %c0_15] : memref<16x128xf32, #tpu.memory_space<vmem>>, vector<16x128xf32>
      tpu.vector_store %arg6[%c0_14, %c0_15], %15 {strides = array<i32>} : memref<16x128xf32, #tpu.memory_space<vmem>>, vector<16x128xf32>,
    } else {
    }
    return
  }
  func.func @transform_0(%arg0: i32, %arg1: i32, %arg2: i32) -> (i32, i32) {
    %c0_i32 = arith.constant 0 : i32
    return %arg0, %arg2 : i32, i32
  }
  func.func @transform_1(%arg0: i32, %arg1: i32, %arg2: i32) -> (i32, i32) {
    %c0_i32 = arith.constant 0 : i32
    return %arg2, %arg1 : i32, i32
  }
  func.func @transform_2(%arg0: i32, %arg1: i32, %arg2: i32) -> (i32, i32) {
    %c0_i32 = arith.constant 0 : i32
    %c0_i32_0 = arith.constant 0 : i32
    return %c0_i32, %arg1 : i32, i32
  }
  func.func @transform_3(%arg0: i32, %arg1: i32, %arg2: i32) -> (i32, i32) {
    %c0_i32 = arith.constant 0 : i32
    return %arg0, %arg1 : i32, i32
  }
}

module attributes {stable_mosaic.version = 11 : i64} {
  func.func @_add_ln_kernel(%arg0: i32, %arg1: memref<16x32xf32, #tpu.memory_space<vmem>>, %arg2: memref<16x32xf32, #tpu.memory_space<vmem>>, %arg3: memref<1x32xf32, #tpu.memory_space<vmem>>, %arg4: memref<1x32xf32, #tpu.memory_space<vmem>>, %arg5: memref<16x32xf32, #tpu.memory_space<vmem>>) attributes {dimension_semantics = [#tpu.dimension_semantics<parallel>], iteration_bounds = array<i64: 1>, scalar_prefetch = 0 : i64, scratch_operands = 0 : i64, tpu.core_type = #tpu.core_type<tc>, window_params = [{transform_indices = @transform_0, window_bounds = array<i64: 16, 32>}, {transform_indices = @transform_1, window_bounds = array<i64: 16, 32>}, {pipeline_mode = #tpu.pipeline_mode<synchronous>, transform_indices = @transform_2, window_bounds = array<i64: 1, 32>}, {pipeline_mode = #tpu.pipeline_mode<synchronous>, transform_indices = @transform_3, window_bounds = array<i64: 1, 32>}, {transform_indices = @transform_4, window_bounds = array<i64: 16, 32>}]} {
    %c0 = arith.constant 0 : index
    %c0_0 = arith.constant 0 : index
    %0 = vector.load %arg1[%c0, %c0_0] : memref<16x32xf32, #tpu.memory_space<vmem>>, vector<16x32xf32>
    %c0_1 = arith.constant 0 : index
    %c0_2 = arith.constant 0 : index
    %1 = vector.load %arg2[%c0_1, %c0_2] : memref<16x32xf32, #tpu.memory_space<vmem>>, vector<16x32xf32>
    %2 = arith.addf %0, %1 : vector<16x32xf32>
    %cst = arith.constant dense<0.000000e+00> : vector<16xf32>
    %3 = vector.multi_reduction <add>, %2, %cst [1] : vector<16x32xf32> to vector<16xf32>
    %4 = vector.shape_cast %3 : vector<16xf32> to vector<16x1xf32>
    %cst_3 = arith.constant 3.200000e+01 : f32
    %5 = vector.broadcast %cst_3 : f32 to vector<16x1xf32>
    %6 = arith.divf %4, %5 : vector<16x1xf32>
    %7 = vector.broadcast %6 : vector<16x1xf32> to vector<16x32xf32>
    %8 = arith.subf %2, %7 : vector<16x32xf32>
    %9 = arith.mulf %8, %8 : vector<16x32xf32>
    %cst_4 = arith.constant dense<0.000000e+00> : vector<16xf32>
    %10 = vector.multi_reduction <add>, %9, %cst_4 [1] : vector<16x32xf32> to vector<16xf32>
    %11 = vector.shape_cast %10 : vector<16xf32> to vector<16x1xf32>
    %cst_5 = arith.constant 3.200000e+01 : f32
    %12 = vector.broadcast %cst_5 : f32 to vector<16x1xf32>
    %13 = arith.divf %11, %12 : vector<16x1xf32>
    %cst_6 = arith.constant 9.99999974E-6 : f32
    %14 = vector.broadcast %cst_6 : f32 to vector<16x1xf32>
    %15 = arith.addf %13, %14 : vector<16x1xf32>
    %16 = math.rsqrt %15 : vector<16x1xf32>
    %17 = vector.broadcast %16 : vector<16x1xf32> to vector<16x32xf32>
    %18 = arith.mulf %8, %17 : vector<16x32xf32>
    %c0_7 = arith.constant 0 : index
    %c0_8 = arith.constant 0 : index
    %19 = vector.load %arg3[%c0_7, %c0_8] : memref<1x32xf32, #tpu.memory_space<vmem>>, vector<1x32xf32>
    %20 = vector.broadcast %19 : vector<1x32xf32> to vector<16x32xf32>
    %21 = arith.mulf %18, %20 : vector<16x32xf32>
    %c0_9 = arith.constant 0 : index
    %c0_10 = arith.constant 0 : index
    %22 = vector.load %arg4[%c0_9, %c0_10] : memref<1x32xf32, #tpu.memory_space<vmem>>, vector<1x32xf32>
    %23 = vector.broadcast %22 : vector<1x32xf32> to vector<16x32xf32>
    %24 = arith.addf %21, %23 : vector<16x32xf32>
    %c0_11 = arith.constant 0 : index
    %c0_12 = arith.constant 0 : index
    %25 = vector.load %arg5[%c0_11, %c0_12] : memref<16x32xf32, #tpu.memory_space<vmem>>, vector<16x32xf32>
    tpu.vector_store %arg5[%c0_11, %c0_12], %24 {strides = array<i32>} : memref<16x32xf32, #tpu.memory_space<vmem>>, vector<16x32xf32>,
    return
  }
  func.func @transform_0(%arg0: i32) -> (i32, i32) {
    %c0_i32 = arith.constant 0 : i32
    %c0_i32_0 = arith.constant 0 : i32
    return %arg0, %c0_i32 : i32, i32
  }
  func.func @transform_1(%arg0: i32) -> (i32, i32) {
    %c0_i32 = arith.constant 0 : i32
    %c0_i32_0 = arith.constant 0 : i32
    return %arg0, %c0_i32 : i32, i32
  }
  func.func @transform_2(%arg0: i32) -> (i32, i32) {
    %c0_i32 = arith.constant 0 : i32
    %c0_i32_0 = arith.constant 0 : i32
    %c0_i32_1 = arith.constant 0 : i32
    return %c0_i32, %c0_i32_0 : i32, i32
  }
  func.func @transform_3(%arg0: i32) -> (i32, i32) {
    %c0_i32 = arith.constant 0 : i32
    %c0_i32_0 = arith.constant 0 : i32
    %c0_i32_1 = arith.constant 0 : i32
    return %c0_i32, %c0_i32_0 : i32, i32
  }
  func.func @transform_4(%arg0: i32) -> (i32, i32) {
    %c0_i32 = arith.constant 0 : i32
    %c0_i32_0 = arith.constant 0 : i32
    return %arg0, %c0_i32 : i32, i32
  }
}

module attributes {stable_mosaic.version = 11 : i64} {
  func.func @_linear_kernel(%arg0: i32, %arg1: i32, %arg2: i32, %arg3: memref<16x128xbf16, #tpu.memory_space<vmem>>, %arg4: memref<128x128xbf16, #tpu.memory_space<vmem>>, %arg5: memref<1x128xf32, #tpu.memory_space<vmem>>, %arg6: memref<16x128xbf16, #tpu.memory_space<vmem>>, %arg7: memref<16x128xf32, #tpu.memory_space<vmem>>) attributes {dimension_semantics = [#tpu.dimension_semantics<parallel>, #tpu.dimension_semantics<parallel>, #tpu.dimension_semantics<arbitrary>], iteration_bounds = array<i64: 1, 1, 1>, scalar_prefetch = 0 : i64, scratch_operands = 1 : i64, tpu.core_type = #tpu.core_type<tc>, window_params = [{transform_indices = @transform_0, window_bounds = array<i64: 16, 128>}, {transform_indices = @transform_1, window_bounds = array<i64: 128, 128>}, {transform_indices = @transform_2, window_bounds = array<i64: 1, 128>}, {transform_indices = @transform_3, window_bounds = array<i64: 16, 128>}]} {
    %c0_i32 = arith.constant 0 : i32
    %0 = arith.cmpi eq, %arg2, %c0_i32 : i32
    %1 = arith.extui %0 : i1 to i32
    %c0_i32_0 = arith.constant 0 : i32
    %2 = arith.cmpi ne, %1, %c0_i32_0 : i32
    scf.if %2 {
      %cst_10 = arith.constant 0.000000e+00 : f32
      %12 = vector.broadcast %cst_10 : f32 to vector<16x128xf32>
      %c0_11 = arith.constant 0 : index
      %c0_12 = arith.constant 0 : index
      %13 = vector.load %arg7[%c0_11, %c0_12] : memref<16x128xf32, #tpu.memory_space<vmem>>, vector<16x128xf32>
      tpu.vector_store %arg7[%c0_11, %c0_12], %12 {strides = array<i32>} : memref<16x128xf32, #tpu.memory_space<vmem>>, vector<16x128xf32>,
    } else {
    }
    %c0 = arith.constant 0 : index
    %c0_1 = arith.constant 0 : index
    %3 = vector.load %arg7[%c0, %c0_1] : memref<16x128xf32, #tpu.memory_space<vmem>>, vector<16x128xf32>
    %c0_2 = arith.constant 0 : index
    %c0_3 = arith.constant 0 : index
    %4 = vector.load %arg3[%c0_2, %c0_3] : memref<16x128xbf16, #tpu.memory_space<vmem>>, vector<16x128xbf16>
    %c0_4 = arith.constant 0 : index
    %c0_5 = arith.constant 0 : index
    %5 = vector.load %arg4[%c0_4, %c0_5] : memref<128x128xbf16, #tpu.memory_space<vmem>>, vector<128x128xbf16>
    %cst = arith.constant dense<0.000000e+00> : vector<16x128xf32>
    %6 = tpu.matmul %4, %5, %cst {dimension_numbers = #tpu.dot_dimension_numbers<[1], [0], [0], [1], [0, 0, 1, 1], [], []>} : vector<16x128xbf16>, vector<128x128xbf16>, vector<16x128xf32> -> vector<16x128xf32>
    %7 = arith.addf %3, %6 : vector<16x128xf32>
    %c0_6 = arith.constant 0 : index
    %c0_7 = arith.constant 0 : index
    %8 = vector.load %arg7[%c0_6, %c0_7] : memref<16x128xf32, #tpu.memory_space<vmem>>, vector<16x128xf32>
    tpu.vector_store %arg7[%c0_6, %c0_7], %7 {strides = array<i32>} : memref<16x128xf32, #tpu.memory_space<vmem>>, vector<16x128xf32>,
    %c0_i32_8 = arith.constant 0 : i32
    %9 = arith.cmpi eq, %arg2, %c0_i32_8 : i32
    %10 = arith.extui %9 : i1 to i32
    %c0_i32_9 = arith.constant 0 : i32
    %11 = arith.cmpi ne, %10, %c0_i32_9 : i32
    scf.if %11 {
      %c0_10 = arith.constant 0 : index
      %c0_11 = arith.constant 0 : index
      %12 = vector.load %arg7[%c0_10, %c0_11] : memref<16x128xf32, #tpu.memory_space<vmem>>, vector<16x128xf32>
      %c0_12 = arith.constant 0 : index
      %c0_13 = arith.constant 0 : index
      %13 = vector.load %arg5[%c0_12, %c0_13] : memref<1x128xf32, #tpu.memory_space<vmem>>, vector<1x128xf32>
      %14 = vector.broadcast %13 : vector<1x128xf32> to vector<16x128xf32>
      %15 = arith.addf %12, %14 : vector<16x128xf32>
      %cst_14 = arith.constant 0.000000e+00 : f32
      %16 = vector.broadcast %cst_14 : f32 to vector<16x128xf32>
      %17 = arith.maximumf %15, %16 : vector<16x128xf32>
      %18 = arith.truncf %17 : vector<16x128xf32> to vector<16x128xbf16>
      %c0_15 = arith.constant 0 : index
      %c0_16 = arith.constant 0 : index
      %19 = vector.load %arg6[%c0_15, %c0_16] : memref<16x128xbf16, #tpu.memory_space<vmem>>, vector<16x128xbf16>
      tpu.vector_store %arg6[%c0_15, %c0_16], %18 {strides = array<i32>} : memref<16x128xbf16, #tpu.memory_space<vmem>>, vector<16x128xbf16>,
    } else {
    }
    return
  }
  func.func @transform_0(%arg0: i32, %arg1: i32, %arg2: i32) -> (i32, i32) {
    %c0_i32 = arith.constant 0 : i32
    return %arg0, %arg2 : i32, i32
  }
  func.func @transform_1(%arg0: i32, %arg1: i32, %arg2: i32) -> (i32, i32) {
    %c0_i32 = arith.constant 0 : i32
    return %arg2, %arg1 : i32, i32
  }
  func.func @transform_2(%arg0: i32, %arg1: i32, %arg2: i32) -> (i32, i32) {
    %c0_i32 = arith.constant 0 : i32
    %c0_i32_0 = arith.constant 0 : i32
    return %c0_i32, %arg1 : i32, i32
  }
  func.func @transform_3(%arg0: i32, %arg1: i32, %arg2: i32) -> (i32, i32) {
    %c0_i32 = arith.constant 0 : i32
    return %arg0, %arg1 : i32, i32
  }
}

module attributes {stable_mosaic.version = 11 : i64} {
  func.func @_linear_kernel(%arg0: i32, %arg1: i32, %arg2: i32, %arg3: memref<16x128xbf16, #tpu.memory_space<vmem>>, %arg4: memref<128x128xbf16, #tpu.memory_space<vmem>>, %arg5: memref<1x128xf32, #tpu.memory_space<vmem>>, %arg6: memref<16x128xbf16, #tpu.memory_space<vmem>>, %arg7: memref<16x128xf32, #tpu.memory_space<vmem>>) attributes {dimension_semantics = [#tpu.dimension_semantics<parallel>, #tpu.dimension_semantics<parallel>, #tpu.dimension_semantics<arbitrary>], iteration_bounds = array<i64: 1, 1, 1>, scalar_prefetch = 0 : i64, scratch_operands = 1 : i64, tpu.core_type = #tpu.core_type<tc>, window_params = [{transform_indices = @transform_0, window_bounds = array<i64: 16, 128>}, {transform_indices = @transform_1, window_bounds = array<i64: 128, 128>}, {transform_indices = @transform_2, window_bounds = array<i64: 1, 128>}, {transform_indices = @transform_3, window_bounds = array<i64: 16, 128>}]} {
    %c0_i32 = arith.constant 0 : i32
    %0 = arith.cmpi eq, %arg2, %c0_i32 : i32
    %1 = arith.extui %0 : i1 to i32
    %c0_i32_0 = arith.constant 0 : i32
    %2 = arith.cmpi ne, %1, %c0_i32_0 : i32
    scf.if %2 {
      %cst_10 = arith.constant 0.000000e+00 : f32
      %12 = vector.broadcast %cst_10 : f32 to vector<16x128xf32>
      %c0_11 = arith.constant 0 : index
      %c0_12 = arith.constant 0 : index
      %13 = vector.load %arg7[%c0_11, %c0_12] : memref<16x128xf32, #tpu.memory_space<vmem>>, vector<16x128xf32>
      tpu.vector_store %arg7[%c0_11, %c0_12], %12 {strides = array<i32>} : memref<16x128xf32, #tpu.memory_space<vmem>>, vector<16x128xf32>,
    } else {
    }
    %c0 = arith.constant 0 : index
    %c0_1 = arith.constant 0 : index
    %3 = vector.load %arg7[%c0, %c0_1] : memref<16x128xf32, #tpu.memory_space<vmem>>, vector<16x128xf32>
    %c0_2 = arith.constant 0 : index
    %c0_3 = arith.constant 0 : index
    %4 = vector.load %arg3[%c0_2, %c0_3] : memref<16x128xbf16, #tpu.memory_space<vmem>>, vector<16x128xbf16>
    %c0_4 = arith.constant 0 : index
    %c0_5 = arith.constant 0 : index
    %5 = vector.load %arg4[%c0_4, %c0_5] : memref<128x128xbf16, #tpu.memory_space<vmem>>, vector<128x128xbf16>
    %cst = arith.constant dense<0.000000e+00> : vector<16x128xf32>
    %6 = tpu.matmul %4, %5, %cst {dimension_numbers = #tpu.dot_dimension_numbers<[1], [0], [0], [1], [0, 0, 1, 1], [], []>} : vector<16x128xbf16>, vector<128x128xbf16>, vector<16x128xf32> -> vector<16x128xf32>
    %7 = arith.addf %3, %6 : vector<16x128xf32>
    %c0_6 = arith.constant 0 : index
    %c0_7 = arith.constant 0 : index
    %8 = vector.load %arg7[%c0_6, %c0_7] : memref<16x128xf32, #tpu.memory_space<vmem>>, vector<16x128xf32>
    tpu.vector_store %arg7[%c0_6, %c0_7], %7 {strides = array<i32>} : memref<16x128xf32, #tpu.memory_space<vmem>>, vector<16x128xf32>,
    %c0_i32_8 = arith.constant 0 : i32
    %9 = arith.cmpi eq, %arg2, %c0_i32_8 : i32
    %10 = arith.extui %9 : i1 to i32
    %c0_i32_9 = arith.constant 0 : i32
    %11 = arith.cmpi ne, %10, %c0_i32_9 : i32
    scf.if %11 {
      %c0_10 = arith.constant 0 : index
      %c0_11 = arith.constant 0 : index
      %12 = vector.load %arg7[%c0_10, %c0_11] : memref<16x128xf32, #tpu.memory_space<vmem>>, vector<16x128xf32>
      %c0_12 = arith.constant 0 : index
      %c0_13 = arith.constant 0 : index
      %13 = vector.load %arg5[%c0_12, %c0_13] : memref<1x128xf32, #tpu.memory_space<vmem>>, vector<1x128xf32>
      %14 = vector.broadcast %13 : vector<1x128xf32> to vector<16x128xf32>
      %15 = arith.addf %12, %14 : vector<16x128xf32>
      %16 = arith.truncf %15 : vector<16x128xf32> to vector<16x128xbf16>
      %c0_14 = arith.constant 0 : index
      %c0_15 = arith.constant 0 : index
      %17 = vector.load %arg6[%c0_14, %c0_15] : memref<16x128xbf16, #tpu.memory_space<vmem>>, vector<16x128xbf16>
      tpu.vector_store %arg6[%c0_14, %c0_15], %16 {strides = array<i32>} : memref<16x128xbf16, #tpu.memory_space<vmem>>, vector<16x128xbf16>,
    } else {
    }
    return
  }
  func.func @transform_0(%arg0: i32, %arg1: i32, %arg2: i32) -> (i32, i32) {
    %c0_i32 = arith.constant 0 : i32
    return %arg0, %arg2 : i32, i32
  }
  func.func @transform_1(%arg0: i32, %arg1: i32, %arg2: i32) -> (i32, i32) {
    %c0_i32 = arith.constant 0 : i32
    return %arg2, %arg1 : i32, i32
  }
  func.func @transform_2(%arg0: i32, %arg1: i32, %arg2: i32) -> (i32, i32) {
    %c0_i32 = arith.constant 0 : i32
    %c0_i32_0 = arith.constant 0 : i32
    return %c0_i32, %arg1 : i32, i32
  }
  func.func @transform_3(%arg0: i32, %arg1: i32, %arg2: i32) -> (i32, i32) {
    %c0_i32 = arith.constant 0 : i32
    return %arg0, %arg1 : i32, i32
  }
}

module attributes {stable_mosaic.version = 11 : i64} {
  func.func @_linear_kernel(%arg0: i32, %arg1: i32, %arg2: i32, %arg3: memref<16x128xbf16, #tpu.memory_space<vmem>>, %arg4: memref<128x128xbf16, #tpu.memory_space<vmem>>, %arg5: memref<1x128xf32, #tpu.memory_space<vmem>>, %arg6: memref<16x128xf32, #tpu.memory_space<vmem>>, %arg7: memref<16x128xf32, #tpu.memory_space<vmem>>) attributes {dimension_semantics = [#tpu.dimension_semantics<parallel>, #tpu.dimension_semantics<parallel>, #tpu.dimension_semantics<arbitrary>], iteration_bounds = array<i64: 1, 1, 1>, scalar_prefetch = 0 : i64, scratch_operands = 1 : i64, tpu.core_type = #tpu.core_type<tc>, window_params = [{transform_indices = @transform_0, window_bounds = array<i64: 16, 128>}, {transform_indices = @transform_1, window_bounds = array<i64: 128, 128>}, {transform_indices = @transform_2, window_bounds = array<i64: 1, 128>}, {transform_indices = @transform_3, window_bounds = array<i64: 16, 128>}]} {
    %c0_i32 = arith.constant 0 : i32
    %0 = arith.cmpi eq, %arg2, %c0_i32 : i32
    %1 = arith.extui %0 : i1 to i32
    %c0_i32_0 = arith.constant 0 : i32
    %2 = arith.cmpi ne, %1, %c0_i32_0 : i32
    scf.if %2 {
      %cst_10 = arith.constant 0.000000e+00 : f32
      %12 = vector.broadcast %cst_10 : f32 to vector<16x128xf32>
      %c0_11 = arith.constant 0 : index
      %c0_12 = arith.constant 0 : index
      %13 = vector.load %arg7[%c0_11, %c0_12] : memref<16x128xf32, #tpu.memory_space<vmem>>, vector<16x128xf32>
      tpu.vector_store %arg7[%c0_11, %c0_12], %12 {strides = array<i32>} : memref<16x128xf32, #tpu.memory_space<vmem>>, vector<16x128xf32>,
    } else {
    }
    %c0 = arith.constant 0 : index
    %c0_1 = arith.constant 0 : index
    %3 = vector.load %arg7[%c0, %c0_1] : memref<16x128xf32, #tpu.memory_space<vmem>>, vector<16x128xf32>
    %c0_2 = arith.constant 0 : index
    %c0_3 = arith.constant 0 : index
    %4 = vector.load %arg3[%c0_2, %c0_3] : memref<16x128xbf16, #tpu.memory_space<vmem>>, vector<16x128xbf16>
    %c0_4 = arith.constant 0 : index
    %c0_5 = arith.constant 0 : index
    %5 = vector.load %arg4[%c0_4, %c0_5] : memref<128x128xbf16, #tpu.memory_space<vmem>>, vector<128x128xbf16>
    %cst = arith.constant dense<0.000000e+00> : vector<16x128xf32>
    %6 = tpu.matmul %4, %5, %cst {dimension_numbers = #tpu.dot_dimension_numbers<[1], [0], [0], [1], [0, 0, 1, 1], [], []>} : vector<16x128xbf16>, vector<128x128xbf16>, vector<16x128xf32> -> vector<16x128xf32>
    %7 = arith.addf %3, %6 : vector<16x128xf32>
    %c0_6 = arith.constant 0 : index
    %c0_7 = arith.constant 0 : index
    %8 = vector.load %arg7[%c0_6, %c0_7] : memref<16x128xf32, #tpu.memory_space<vmem>>, vector<16x128xf32>
    tpu.vector_store %arg7[%c0_6, %c0_7], %7 {strides = array<i32>} : memref<16x128xf32, #tpu.memory_space<vmem>>, vector<16x128xf32>,
    %c0_i32_8 = arith.constant 0 : i32
    %9 = arith.cmpi eq, %arg2, %c0_i32_8 : i32
    %10 = arith.extui %9 : i1 to i32
    %c0_i32_9 = arith.constant 0 : i32
    %11 = arith.cmpi ne, %10, %c0_i32_9 : i32
    scf.if %11 {
      %c0_10 = arith.constant 0 : index
      %c0_11 = arith.constant 0 : index
      %12 = vector.load %arg7[%c0_10, %c0_11] : memref<16x128xf32, #tpu.memory_space<vmem>>, vector<16x128xf32>
      %c0_12 = arith.constant 0 : index
      %c0_13 = arith.constant 0 : index
      %13 = vector.load %arg5[%c0_12, %c0_13] : memref<1x128xf32, #tpu.memory_space<vmem>>, vector<1x128xf32>
      %14 = vector.broadcast %13 : vector<1x128xf32> to vector<16x128xf32>
      %15 = arith.addf %12, %14 : vector<16x128xf32>
      %c0_14 = arith.constant 0 : index
      %c0_15 = arith.constant 0 : index
      %16 = vector.load %arg6[%c0_14, %c0_15] : memref<16x128xf32, #tpu.memory_space<vmem>>, vector<16x128xf32>
      tpu.vector_store %arg6[%c0_14, %c0_15], %15 {strides = array<i32>} : memref<16x128xf32, #tpu.memory_space<vmem>>, vector<16x128xf32>,
    } else {
    }
    return
  }
  func.func @transform_0(%arg0: i32, %arg1: i32, %arg2: i32) -> (i32, i32) {
    %c0_i32 = arith.constant 0 : i32
    return %arg0, %arg2 : i32, i32
  }
  func.func @transform_1(%arg0: i32, %arg1: i32, %arg2: i32) -> (i32, i32) {
    %c0_i32 = arith.constant 0 : i32
    return %arg2, %arg1 : i32, i32
  }
  func.func @transform_2(%arg0: i32, %arg1: i32, %arg2: i32) -> (i32, i32) {
    %c0_i32 = arith.constant 0 : i32
    %c0_i32_0 = arith.constant 0 : i32
    return %c0_i32, %arg1 : i32, i32
  }
  func.func @transform_3(%arg0: i32, %arg1: i32, %arg2: i32) -> (i32, i32) {
    %c0_i32 = arith.constant 0 : i32
    return %arg0, %arg1 : i32, i32
  }
}

module attributes {stable_mosaic.version = 11 : i64} {
  func.func @_linear_kernel(%arg0: i32, %arg1: i32, %arg2: i32, %arg3: memref<16x128xbf16, #tpu.memory_space<vmem>>, %arg4: memref<128x128xbf16, #tpu.memory_space<vmem>>, %arg5: memref<1x128xf32, #tpu.memory_space<vmem>>, %arg6: memref<16x128xbf16, #tpu.memory_space<vmem>>, %arg7: memref<16x128xf32, #tpu.memory_space<vmem>>) attributes {dimension_semantics = [#tpu.dimension_semantics<parallel>, #tpu.dimension_semantics<parallel>, #tpu.dimension_semantics<arbitrary>], iteration_bounds = array<i64: 1, 1, 1>, scalar_prefetch = 0 : i64, scratch_operands = 1 : i64, tpu.core_type = #tpu.core_type<tc>, window_params = [{transform_indices = @transform_0, window_bounds = array<i64: 16, 128>}, {transform_indices = @transform_1, window_bounds = array<i64: 128, 128>}, {transform_indices = @transform_2, window_bounds = array<i64: 1, 128>}, {transform_indices = @transform_3, window_bounds = array<i64: 16, 128>}]} {
    %c0_i32 = arith.constant 0 : i32
    %0 = arith.cmpi eq, %arg2, %c0_i32 : i32
    %1 = arith.extui %0 : i1 to i32
    %c0_i32_0 = arith.constant 0 : i32
    %2 = arith.cmpi ne, %1, %c0_i32_0 : i32
    scf.if %2 {
      %cst_10 = arith.constant 0.000000e+00 : f32
      %12 = vector.broadcast %cst_10 : f32 to vector<16x128xf32>
      %c0_11 = arith.constant 0 : index
      %c0_12 = arith.constant 0 : index
      %13 = vector.load %arg7[%c0_11, %c0_12] : memref<16x128xf32, #tpu.memory_space<vmem>>, vector<16x128xf32>
      tpu.vector_store %arg7[%c0_11, %c0_12], %12 {strides = array<i32>} : memref<16x128xf32, #tpu.memory_space<vmem>>, vector<16x128xf32>,
    } else {
    }
    %c0 = arith.constant 0 : index
    %c0_1 = arith.constant 0 : index
    %3 = vector.load %arg7[%c0, %c0_1] : memref<16x128xf32, #tpu.memory_space<vmem>>, vector<16x128xf32>
    %c0_2 = arith.constant 0 : index
    %c0_3 = arith.constant 0 : index
    %4 = vector.load %arg3[%c0_2, %c0_3] : memref<16x128xbf16, #tpu.memory_space<vmem>>, vector<16x128xbf16>
    %c0_4 = arith.constant 0 : index
    %c0_5 = arith.constant 0 : index
    %5 = vector.load %arg4[%c0_4, %c0_5] : memref<128x128xbf16, #tpu.memory_space<vmem>>, vector<128x128xbf16>
    %cst = arith.constant dense<0.000000e+00> : vector<16x128xf32>
    %6 = tpu.matmul %4, %5, %cst {dimension_numbers = #tpu.dot_dimension_numbers<[1], [0], [0], [1], [0, 0, 1, 1], [], []>} : vector<16x128xbf16>, vector<128x128xbf16>, vector<16x128xf32> -> vector<16x128xf32>
    %7 = arith.addf %3, %6 : vector<16x128xf32>
    %c0_6 = arith.constant 0 : index
    %c0_7 = arith.constant 0 : index
    %8 = vector.load %arg7[%c0_6, %c0_7] : memref<16x128xf32, #tpu.memory_space<vmem>>, vector<16x128xf32>
    tpu.vector_store %arg7[%c0_6, %c0_7], %7 {strides = array<i32>} : memref<16x128xf32, #tpu.memory_space<vmem>>, vector<16x128xf32>,
    %c0_i32_8 = arith.constant 0 : i32
    %9 = arith.cmpi eq, %arg2, %c0_i32_8 : i32
    %10 = arith.extui %9 : i1 to i32
    %c0_i32_9 = arith.constant 0 : i32
    %11 = arith.cmpi ne, %10, %c0_i32_9 : i32
    scf.if %11 {
      %c0_10 = arith.constant 0 : index
      %c0_11 = arith.constant 0 : index
      %12 = vector.load %arg7[%c0_10, %c0_11] : memref<16x128xf32, #tpu.memory_space<vmem>>, vector<16x128xf32>
      %c0_12 = arith.constant 0 : index
      %c0_13 = arith.constant 0 : index
      %13 = vector.load %arg5[%c0_12, %c0_13] : memref<1x128xf32, #tpu.memory_space<vmem>>, vector<1x128xf32>
      %14 = vector.broadcast %13 : vector<1x128xf32> to vector<16x128xf32>
      %15 = arith.addf %12, %14 : vector<16x128xf32>
      %16 = arith.truncf %15 : vector<16x128xf32> to vector<16x128xbf16>
      %c0_14 = arith.constant 0 : index
      %c0_15 = arith.constant 0 : index
      %17 = vector.load %arg6[%c0_14, %c0_15] : memref<16x128xbf16, #tpu.memory_space<vmem>>, vector<16x128xbf16>
      tpu.vector_store %arg6[%c0_14, %c0_15], %16 {strides = array<i32>} : memref<16x128xbf16, #tpu.memory_space<vmem>>, vector<16x128xbf16>,
    } else {
    }
    return
  }
  func.func @transform_0(%arg0: i32, %arg1: i32, %arg2: i32) -> (i32, i32) {
    %c0_i32 = arith.constant 0 : i32
    return %arg0, %arg2 : i32, i32
  }
  func.func @transform_1(%arg0: i32, %arg1: i32, %arg2: i32) -> (i32, i32) {
    %c0_i32 = arith.constant 0 : i32
    return %arg2, %arg1 : i32, i32
  }
  func.func @transform_2(%arg0: i32, %arg1: i32, %arg2: i32) -> (i32, i32) {
    %c0_i32 = arith.constant 0 : i32
    %c0_i32_0 = arith.constant 0 : i32
    return %c0_i32, %arg1 : i32, i32
  }
  func.func @transform_3(%arg0: i32, %arg1: i32, %arg2: i32) -> (i32, i32) {
    %c0_i32 = arith.constant 0 : i32
    return %arg0, %arg1 : i32, i32
  }
}

module attributes {stable_mosaic.version = 11 : i64} {
  func.func @_flash_attn_kernel(%arg0: i32, %arg1: i32, %arg2: i32, %arg3: memref<1x8x8xbf16, #tpu.memory_space<vmem>>, %arg4: memref<1x8x8xbf16, #tpu.memory_space<vmem>>, %arg5: memref<1x8x8xbf16, #tpu.memory_space<vmem>>, %arg6: memref<1x8x8xbf16, #tpu.memory_space<vmem>>, %arg7: memref<8x1xf32, #tpu.memory_space<vmem>>, %arg8: memref<8x1xf32, #tpu.memory_space<vmem>>, %arg9: memref<8x8xf32, #tpu.memory_space<vmem>>) attributes {dimension_semantics = [#tpu.dimension_semantics<parallel>, #tpu.dimension_semantics<parallel>, #tpu.dimension_semantics<arbitrary>], iteration_bounds = array<i64: 8, 1, 1>, scalar_prefetch = 0 : i64, scratch_operands = 3 : i64, tpu.core_type = #tpu.core_type<tc>, window_params = [{transform_indices = @transform_0, window_bounds = array<i64: 1, 8, 8>}, {transform_indices = @transform_1, window_bounds = array<i64: 1, 8, 8>}, {transform_indices = @transform_2, window_bounds = array<i64: 1, 8, 8>}, {transform_indices = @transform_3, window_bounds = array<i64: 1, 8, 8>}]} {
    %c0_i32 = arith.constant 0 : i32
    %0 = arith.cmpi eq, %arg2, %c0_i32 : i32
    %1 = arith.extui %0 : i1 to i32
    %c0_i32_0 = arith.constant 0 : i32
    %2 = arith.cmpi ne, %1, %c0_i32_0 : i32
    scf.if %2 {
      %cst = arith.constant -1.000000e+30 : f32
      %13 = vector.broadcast %cst : f32 to vector<8x1xf32>
      %c0 = arith.constant 0 : index
      %c0_6 = arith.constant 0 : index
      %14 = vector.load %arg7[%c0, %c0_6] : memref<8x1xf32, #tpu.memory_space<vmem>>, vector<8x1xf32>
      tpu.vector_store %arg7[%c0, %c0_6], %13 {strides = array<i32>} : memref<8x1xf32, #tpu.memory_space<vmem>>, vector<8x1xf32>,
      %cst_7 = arith.constant 0.000000e+00 : f32
      %15 = vector.broadcast %cst_7 : f32 to vector<8x1xf32>
      %c0_8 = arith.constant 0 : index
      %c0_9 = arith.constant 0 : index
      %16 = vector.load %arg8[%c0_8, %c0_9] : memref<8x1xf32, #tpu.memory_space<vmem>>, vector<8x1xf32>
      tpu.vector_store %arg8[%c0_8, %c0_9], %15 {strides = array<i32>} : memref<8x1xf32, #tpu.memory_space<vmem>>, vector<8x1xf32>,
      %cst_10 = arith.constant 0.000000e+00 : f32
      %17 = vector.broadcast %cst_10 : f32 to vector<8x8xf32>
      %c0_11 = arith.constant 0 : index
      %c0_12 = arith.constant 0 : index
      %18 = vector.load %arg9[%c0_11, %c0_12] : memref<8x8xf32, #tpu.memory_space<vmem>>, vector<8x8xf32>
      tpu.vector_store %arg9[%c0_11, %c0_12], %17 {strides = array<i32>} : memref<8x8xf32, #tpu.memory_space<vmem>>, vector<8x8xf32>,
    } else {
    }
    %c8_i32 = arith.constant 8 : i32
    %3 = arith.muli %arg2, %c8_i32 : i32
    %c8_i32_1 = arith.constant 8 : i32
    %4 = arith.muli %arg1, %c8_i32_1 : i32
    %c8_i32_2 = arith.constant 8 : i32
    %5 = arith.addi %4, %c8_i32_2 : i32
    %c1_i32 = arith.constant 1 : i32
    %6 = arith.subi %5, %c1_i32 : i32
    %7 = arith.cmpi sle, %3, %6 : i32
    %8 = arith.extui %7 : i1 to i32
    %c0_i32_3 = arith.constant 0 : i32
    %9 = arith.cmpi ne, %8, %c0_i32_3 : i32
    scf.if %9 {
      %c0 = arith.constant 0 : index
      %c0_6 = arith.constant 0 : index
      %c0_7 = arith.constant 0 : index
      %13 = vector.load %arg3[%c0, %c0_6, %c0_7] : memref<1x8x8xbf16, #tpu.memory_space<vmem>>, vector<1x8x8xbf16>
      %14 = vector.shape_cast %13 : vector<1x8x8xbf16> to vector<8x8xbf16>
      %c0_8 = arith.constant 0 : index
      %c0_9 = arith.constant 0 : index
      %c0_10 = arith.constant 0 : index
      %15 = vector.load %arg4[%c0_8, %c0_9, %c0_10] : memref<1x8x8xbf16, #tpu.memory_space<vmem>>, vector<1x8x8xbf16>
      %16 = vector.shape_cast %15 : vector<1x8x8xbf16> to vector<8x8xbf16>
      %c0_11 = arith.constant 0 : index
      %c0_12 = arith.constant 0 : index
      %c0_13 = arith.constant 0 : index
      %17 = vector.load %arg5[%c0_11, %c0_12, %c0_13] : memref<1x8x8xbf16, #tpu.memory_space<vmem>>, vector<1x8x8xbf16>
      %18 = vector.shape_cast %17 : vector<1x8x8xbf16> to vector<8x8xbf16>
      %cst = arith.constant dense<0.000000e+00> : vector<8x8xf32>
      %19 = tpu.matmul %14, %16, %cst {dimension_numbers = #tpu.dot_dimension_numbers<[1], [1], [0], [0], [0, 0, 1, 0], [], []>} : vector<8x8xbf16>, vector<8x8xbf16>, vector<8x8xf32> -> vector<8x8xf32>
      %c8_i32_14 = arith.constant 8 : i32
      %20 = arith.muli %arg1, %c8_i32_14 : i32
      %21 = tpu.iota {dimensions = array<i32: 0>} : vector<8x8xi32>
      %22 = vector.broadcast %20 : i32 to vector<8x8xi32>
      %23 = arith.addi %22, %21 : vector<8x8xi32>
      %c8_i32_15 = arith.constant 8 : i32
      %24 = arith.muli %arg2, %c8_i32_15 : i32
      %25 = tpu.iota {dimensions = array<i32: 1>} : vector<8x8xi32>
      %26 = vector.broadcast %24 : i32 to vector<8x8xi32>
      %27 = arith.addi %26, %25 : vector<8x8xi32>
      %c8_i32_16 = arith.constant 8 : i32
      %28 = vector.broadcast %c8_i32_16 : i32 to vector<8x8xi32>
      %29 = arith.cmpi slt, %27, %28 : vector<8x8xi32>
      %30 = arith.cmpi sle, %27, %23 : vector<8x8xi32>
      %31 = arith.andi %29, %30 : vector<8x8xi1>
      %cst_17 = arith.constant -1.000000e+30 : f32
      %32 = vector.broadcast %cst_17 : f32 to vector<8x8xf32>
      %33 = arith.select %31, %19, %32 : vector<8x8xi1>, vector<8x8xf32>
      %c0_18 = arith.constant 0 : index
      %c0_19 = arith.constant 0 : index
      %34 = vector.load %arg7[%c0_18, %c0_19] : memref<8x1xf32, #tpu.memory_space<vmem>>, vector<8x1xf32>
      %cst_20 = arith.constant dense<0xFF800000> : vector<8xf32>
      %35 = vector.multi_reduction <maximumf>, %33, %cst_20 [1] : vector<8x8xf32> to vector<8xf32>
      %36 = vector.shape_cast %35 : vector<8xf32> to vector<8x1xf32>
      %37 = arith.maximumf %34, %36 : vector<8x1xf32>
      %38 = arith.subf %34, %37 : vector<8x1xf32>
      %39 = math.exp %38 : vector<8x1xf32>
      %40 = vector.broadcast %37 : vector<8x1xf32> to vector<8x8xf32>
      %41 = arith.subf %33, %40 : vector<8x8xf32>
      %42 = math.exp %41 : vector<8x8xf32>
      %c0_21 = arith.constant 0 : index
      %c0_22 = arith.constant 0 : index
      %43 = vector.load %arg8[%c0_21, %c0_22] : memref<8x1xf32, #tpu.memory_space<vmem>>, vector<8x1xf32>
      %44 = arith.mulf %39, %43 : vector<8x1xf32>
      %cst_23 = arith.constant dense<0.000000e+00> : vector<8xf32>
      %45 = vector.multi_reduction <add>, %42, %cst_23 [1] : vector<8x8xf32> to vector<8xf32>
      %46 = vector.shape_cast %45 : vector<8xf32> to vector<8x1xf32>
      %47 = arith.addf %44, %46 : vector<8x1xf32>
      %c0_24 = arith.constant 0 : index
      %c0_25 = arith.constant 0 : index
      %48 = vector.load %arg8[%c0_24, %c0_25] : memref<8x1xf32, #tpu.memory_space<vmem>>, vector<8x1xf32>
      tpu.vector_store %arg8[%c0_24, %c0_25], %47 {strides = array<i32>} : memref<8x1xf32, #tpu.memory_space<vmem>>, vector<8x1xf32>,
      %c0_26 = arith.constant 0 : index
      %c0_27 = arith.constant 0 : index
      %49 = vector.load %arg9[%c0_26, %c0_27] : memref<8x8xf32, #tpu.memory_space<vmem>>, vector<8x8xf32>
      %50 = vector.broadcast %39 : vector<8x1xf32> to vector<8x8xf32>
      %51 = arith.mulf %50, %49 : vector<8x8xf32>
      %52 = arith.truncf %42 : vector<8x8xf32> to vector<8x8xbf16>
      %cst_28 = arith.constant dense<0.000000e+00> : vector<8x8xf32>
      %53 = tpu.matmul %52, %18, %cst_28 {dimension_numbers = #tpu.dot_dimension_numbers<[1], [0], [0], [1], [0, 0, 1, 1], [], []>} : vector<8x8xbf16>, vector<8x8xbf16>, vector<8x8xf32> -> vector<8x8xf32>
      %54 = arith.addf %51, %53 : vector<8x8xf32>
      %c0_29 = arith.constant 0 : index
      %c0_30 = arith.constant 0 : index
      %55 = vector.load %arg9[%c0_29, %c0_30] : memref<8x8xf32, #tpu.memory_space<vmem>>, vector<8x8xf32>
      tpu.vector_store %arg9[%c0_29, %c0_30], %54 {strides = array<i32>} : memref<8x8xf32, #tpu.memory_space<vmem>>, vector<8x8xf32>,
      %c0_31 = arith.constant 0 : index
      %c0_32 = arith.constant 0 : index
      %56 = vector.load %arg7[%c0_31, %c0_32] : memref<8x1xf32, #tpu.memory_space<vmem>>, vector<8x1xf32>
      tpu.vector_store %arg7[%c0_31, %c0_32], %37 {strides = array<i32>} : memref<8x1xf32, #tpu.memory_space<vmem>>, vector<8x1xf32>,
    } else {
    }
    %c0_i32_4 = arith.constant 0 : i32
    %10 = arith.cmpi eq, %arg2, %c0_i32_4 : i32
    %11 = arith.extui %10 : i1 to i32
    %c0_i32_5 = arith.constant 0 : i32
    %12 = arith.cmpi ne, %11, %c0_i32_5 : i32
    scf.if %12 {
      %c0 = arith.constant 0 : index
      %c0_6 = arith.constant 0 : index
      %13 = vector.load %arg9[%c0, %c0_6] : memref<8x8xf32, #tpu.memory_space<vmem>>, vector<8x8xf32>
      %c0_7 = arith.constant 0 : index
      %c0_8 = arith.constant 0 : index
      %14 = vector.load %arg8[%c0_7, %c0_8] : memref<8x1xf32, #tpu.memory_space<vmem>>, vector<8x1xf32>
      %15 = tpu.reciprocal %14 {approx = true} : vector<8x1xf32> -> vector<8x1xf32>
      %16 = vector.broadcast %15 : vector<8x1xf32> to vector<8x8xf32>
      %17 = arith.mulf %13, %16 : vector<8x8xf32>
      %18 = arith.truncf %17 : vector<8x8xf32> to vector<8x8xbf16>
      %c0_9 = arith.constant 0 : index
      %c0_10 = arith.constant 0 : index
      %c0_11 = arith.constant 0 : index
      %19 = vector.load %arg6[%c0_9, %c0_10, %c0_11] : memref<1x8x8xbf16, #tpu.memory_space<vmem>>, vector<1x8x8xbf16>
      %20 = vector.shape_cast %19 : vector<1x8x8xbf16> to vector<8x8xbf16>
      %21 = vector.shape_cast %18 : vector<8x8xbf16> to vector<1x8x8xbf16>
      tpu.vector_store %arg6[%c0_9, %c0_10, %c0_11], %21 {strides = array<i32>} : memref<1x8x8xbf16, #tpu.memory_space<vmem>>, vector<1x8x8xbf16>,
    } else {
    }
    return
  }
  func.func @transform_0(%arg0: i32, %arg1: i32, %arg2: i32) -> (i32, i32, i32) {
    %c0_i32 = arith.constant 0 : i32
    %c0_i32_0 = arith.constant 0 : i32
    return %arg0, %arg1, %c0_i32 : i32, i32, i32
  }
  func.func @transform_1(%arg0: i32, %arg1: i32, %arg2: i32) -> (i32, i32, i32) {
    %c0_i32 = arith.constant 0 : i32
    %c0_i32_0 = arith.constant 0 : i32
    return %arg0, %arg2, %c0_i32 : i32, i32, i32
  }
  func.func @transform_2(%arg0: i32, %arg1: i32, %arg2: i32) -> (i32, i32, i32) {
    %c0_i32 = arith.constant 0 : i32
    %c0_i32_0 = arith.constant 0 : i32
    return %arg0, %arg2, %c0_i32 : i32, i32, i32
  }
  func.func @transform_3(%arg0: i32, %arg1: i32, %arg2: i32) -> (i32, i32, i32) {
    %c0_i32 = arith.constant 0 : i32
    %c0_i32_0 = arith.constant 0 : i32
    return %arg0, %arg1, %c0_i32 : i32, i32, i32
  }
}

module attributes {stable_mosaic.version = 11 : i64} {
  func.func @_linear_kernel(%arg0: i32, %arg1: i32, %arg2: i32, %arg3: memref<16x128xbf16, #tpu.memory_space<vmem>>, %arg4: memref<128x128xbf16, #tpu.memory_space<vmem>>, %arg5: memref<1x128xf32, #tpu.memory_space<vmem>>, %arg6: memref<16x128xf32, #tpu.memory_space<vmem>>, %arg7: memref<16x128xf32, #tpu.memory_space<vmem>>) attributes {dimension_semantics = [#tpu.dimension_semantics<parallel>, #tpu.dimension_semantics<parallel>, #tpu.dimension_semantics<arbitrary>], iteration_bounds = array<i64: 1, 1, 1>, scalar_prefetch = 0 : i64, scratch_operands = 1 : i64, tpu.core_type = #tpu.core_type<tc>, window_params = [{transform_indices = @transform_0, window_bounds = array<i64: 16, 128>}, {transform_indices = @transform_1, window_bounds = array<i64: 128, 128>}, {transform_indices = @transform_2, window_bounds = array<i64: 1, 128>}, {transform_indices = @transform_3, window_bounds = array<i64: 16, 128>}]} {
    %c0_i32 = arith.constant 0 : i32
    %0 = arith.cmpi eq, %arg2, %c0_i32 : i32
    %1 = arith.extui %0 : i1 to i32
    %c0_i32_0 = arith.constant 0 : i32
    %2 = arith.cmpi ne, %1, %c0_i32_0 : i32
    scf.if %2 {
      %cst_10 = arith.constant 0.000000e+00 : f32
      %12 = vector.broadcast %cst_10 : f32 to vector<16x128xf32>
      %c0_11 = arith.constant 0 : index
      %c0_12 = arith.constant 0 : index
      %13 = vector.load %arg7[%c0_11, %c0_12] : memref<16x128xf32, #tpu.memory_space<vmem>>, vector<16x128xf32>
      tpu.vector_store %arg7[%c0_11, %c0_12], %12 {strides = array<i32>} : memref<16x128xf32, #tpu.memory_space<vmem>>, vector<16x128xf32>,
    } else {
    }
    %c0 = arith.constant 0 : index
    %c0_1 = arith.constant 0 : index
    %3 = vector.load %arg7[%c0, %c0_1] : memref<16x128xf32, #tpu.memory_space<vmem>>, vector<16x128xf32>
    %c0_2 = arith.constant 0 : index
    %c0_3 = arith.constant 0 : index
    %4 = vector.load %arg3[%c0_2, %c0_3] : memref<16x128xbf16, #tpu.memory_space<vmem>>, vector<16x128xbf16>
    %c0_4 = arith.constant 0 : index
    %c0_5 = arith.constant 0 : index
    %5 = vector.load %arg4[%c0_4, %c0_5] : memref<128x128xbf16, #tpu.memory_space<vmem>>, vector<128x128xbf16>
    %cst = arith.constant dense<0.000000e+00> : vector<16x128xf32>
    %6 = tpu.matmul %4, %5, %cst {dimension_numbers = #tpu.dot_dimension_numbers<[1], [0], [0], [1], [0, 0, 1, 1], [], []>} : vector<16x128xbf16>, vector<128x128xbf16>, vector<16x128xf32> -> vector<16x128xf32>
    %7 = arith.addf %3, %6 : vector<16x128xf32>
    %c0_6 = arith.constant 0 : index
    %c0_7 = arith.constant 0 : index
    %8 = vector.load %arg7[%c0_6, %c0_7] : memref<16x128xf32, #tpu.memory_space<vmem>>, vector<16x128xf32>
    tpu.vector_store %arg7[%c0_6, %c0_7], %7 {strides = array<i32>} : memref<16x128xf32, #tpu.memory_space<vmem>>, vector<16x128xf32>,
    %c0_i32_8 = arith.constant 0 : i32
    %9 = arith.cmpi eq, %arg2, %c0_i32_8 : i32
    %10 = arith.extui %9 : i1 to i32
    %c0_i32_9 = arith.constant 0 : i32
    %11 = arith.cmpi ne, %10, %c0_i32_9 : i32
    scf.if %11 {
      %c0_10 = arith.constant 0 : index
      %c0_11 = arith.constant 0 : index
      %12 = vector.load %arg7[%c0_10, %c0_11] : memref<16x128xf32, #tpu.memory_space<vmem>>, vector<16x128xf32>
      %c0_12 = arith.constant 0 : index
      %c0_13 = arith.constant 0 : index
      %13 = vector.load %arg5[%c0_12, %c0_13] : memref<1x128xf32, #tpu.memory_space<vmem>>, vector<1x128xf32>
      %14 = vector.broadcast %13 : vector<1x128xf32> to vector<16x128xf32>
      %15 = arith.addf %12, %14 : vector<16x128xf32>
      %c0_14 = arith.constant 0 : index
      %c0_15 = arith.constant 0 : index
      %16 = vector.load %arg6[%c0_14, %c0_15] : memref<16x128xf32, #tpu.memory_space<vmem>>, vector<16x128xf32>
      tpu.vector_store %arg6[%c0_14, %c0_15], %15 {strides = array<i32>} : memref<16x128xf32, #tpu.memory_space<vmem>>, vector<16x128xf32>,
    } else {
    }
    return
  }
  func.func @transform_0(%arg0: i32, %arg1: i32, %arg2: i32) -> (i32, i32) {
    %c0_i32 = arith.constant 0 : i32
    return %arg0, %arg2 : i32, i32
  }
  func.func @transform_1(%arg0: i32, %arg1: i32, %arg2: i32) -> (i32, i32) {
    %c0_i32 = arith.constant 0 : i32
    return %arg2, %arg1 : i32, i32
  }
  func.func @transform_2(%arg0: i32, %arg1: i32, %arg2: i32) -> (i32, i32) {
    %c0_i32 = arith.constant 0 : i32
    %c0_i32_0 = arith.constant 0 : i32
    return %c0_i32, %arg1 : i32, i32
  }
  func.func @transform_3(%arg0: i32, %arg1: i32, %arg2: i32) -> (i32, i32) {
    %c0_i32 = arith.constant 0 : i32
    return %arg0, %arg1 : i32, i32
  }
}

module attributes {stable_mosaic.version = 11 : i64} {
  func.func @_linear_kernel(%arg0: i32, %arg1: i32, %arg2: i32, %arg3: memref<16x128xbf16, #tpu.memory_space<vmem>>, %arg4: memref<128x128xbf16, #tpu.memory_space<vmem>>, %arg5: memref<1x128xf32, #tpu.memory_space<vmem>>, %arg6: memref<16x128xbf16, #tpu.memory_space<vmem>>, %arg7: memref<16x128xf32, #tpu.memory_space<vmem>>) attributes {dimension_semantics = [#tpu.dimension_semantics<parallel>, #tpu.dimension_semantics<parallel>, #tpu.dimension_semantics<arbitrary>], iteration_bounds = array<i64: 1, 1, 1>, scalar_prefetch = 0 : i64, scratch_operands = 1 : i64, tpu.core_type = #tpu.core_type<tc>, window_params = [{transform_indices = @transform_0, window_bounds = array<i64: 16, 128>}, {transform_indices = @transform_1, window_bounds = array<i64: 128, 128>}, {transform_indices = @transform_2, window_bounds = array<i64: 1, 128>}, {transform_indices = @transform_3, window_bounds = array<i64: 16, 128>}]} {
    %c0_i32 = arith.constant 0 : i32
    %0 = arith.cmpi eq, %arg2, %c0_i32 : i32
    %1 = arith.extui %0 : i1 to i32
    %c0_i32_0 = arith.constant 0 : i32
    %2 = arith.cmpi ne, %1, %c0_i32_0 : i32
    scf.if %2 {
      %cst_10 = arith.constant 0.000000e+00 : f32
      %12 = vector.broadcast %cst_10 : f32 to vector<16x128xf32>
      %c0_11 = arith.constant 0 : index
      %c0_12 = arith.constant 0 : index
      %13 = vector.load %arg7[%c0_11, %c0_12] : memref<16x128xf32, #tpu.memory_space<vmem>>, vector<16x128xf32>
      tpu.vector_store %arg7[%c0_11, %c0_12], %12 {strides = array<i32>} : memref<16x128xf32, #tpu.memory_space<vmem>>, vector<16x128xf32>,
    } else {
    }
    %c0 = arith.constant 0 : index
    %c0_1 = arith.constant 0 : index
    %3 = vector.load %arg7[%c0, %c0_1] : memref<16x128xf32, #tpu.memory_space<vmem>>, vector<16x128xf32>
    %c0_2 = arith.constant 0 : index
    %c0_3 = arith.constant 0 : index
    %4 = vector.load %arg3[%c0_2, %c0_3] : memref<16x128xbf16, #tpu.memory_space<vmem>>, vector<16x128xbf16>
    %c0_4 = arith.constant 0 : index
    %c0_5 = arith.constant 0 : index
    %5 = vector.load %arg4[%c0_4, %c0_5] : memref<128x128xbf16, #tpu.memory_space<vmem>>, vector<128x128xbf16>
    %cst = arith.constant dense<0.000000e+00> : vector<16x128xf32>
    %6 = tpu.matmul %4, %5, %cst {dimension_numbers = #tpu.dot_dimension_numbers<[1], [0], [0], [1], [0, 0, 1, 1], [], []>} : vector<16x128xbf16>, vector<128x128xbf16>, vector<16x128xf32> -> vector<16x128xf32>
    %7 = arith.addf %3, %6 : vector<16x128xf32>
    %c0_6 = arith.constant 0 : index
    %c0_7 = arith.constant 0 : index
    %8 = vector.load %arg7[%c0_6, %c0_7] : memref<16x128xf32, #tpu.memory_space<vmem>>, vector<16x128xf32>
    tpu.vector_store %arg7[%c0_6, %c0_7], %7 {strides = array<i32>} : memref<16x128xf32, #tpu.memory_space<vmem>>, vector<16x128xf32>,
    %c0_i32_8 = arith.constant 0 : i32
    %9 = arith.cmpi eq, %arg2, %c0_i32_8 : i32
    %10 = arith.extui %9 : i1 to i32
    %c0_i32_9 = arith.constant 0 : i32
    %11 = arith.cmpi ne, %10, %c0_i32_9 : i32
    scf.if %11 {
      %c0_10 = arith.constant 0 : index
      %c0_11 = arith.constant 0 : index
      %12 = vector.load %arg7[%c0_10, %c0_11] : memref<16x128xf32, #tpu.memory_space<vmem>>, vector<16x128xf32>
      %c0_12 = arith.constant 0 : index
      %c0_13 = arith.constant 0 : index
      %13 = vector.load %arg5[%c0_12, %c0_13] : memref<1x128xf32, #tpu.memory_space<vmem>>, vector<1x128xf32>
      %14 = vector.broadcast %13 : vector<1x128xf32> to vector<16x128xf32>
      %15 = arith.addf %12, %14 : vector<16x128xf32>
      %16 = arith.truncf %15 : vector<16x128xf32> to vector<16x128xbf16>
      %c0_14 = arith.constant 0 : index
      %c0_15 = arith.constant 0 : index
      %17 = vector.load %arg6[%c0_14, %c0_15] : memref<16x128xbf16, #tpu.memory_space<vmem>>, vector<16x128xbf16>
      tpu.vector_store %arg6[%c0_14, %c0_15], %16 {strides = array<i32>} : memref<16x128xbf16, #tpu.memory_space<vmem>>, vector<16x128xbf16>,
    } else {
    }
    return
  }
  func.func @transform_0(%arg0: i32, %arg1: i32, %arg2: i32) -> (i32, i32) {
    %c0_i32 = arith.constant 0 : i32
    return %arg0, %arg2 : i32, i32
  }
  func.func @transform_1(%arg0: i32, %arg1: i32, %arg2: i32) -> (i32, i32) {
    %c0_i32 = arith.constant 0 : i32
    return %arg2, %arg1 : i32, i32
  }
  func.func @transform_2(%arg0: i32, %arg1: i32, %arg2: i32) -> (i32, i32) {
    %c0_i32 = arith.constant 0 : i32
    %c0_i32_0 = arith.constant 0 : i32
    return %c0_i32, %arg1 : i32, i32
  }
  func.func @transform_3(%arg0: i32, %arg1: i32, %arg2: i32) -> (i32, i32) {
    %c0_i32 = arith.constant 0 : i32
    return %arg0, %arg1 : i32, i32
  }
}

module attributes {stable_mosaic.version = 11 : i64} {
  func.func @_linear_kernel(%arg0: i32, %arg1: i32, %arg2: i32, %arg3: memref<16x128xbf16, #tpu.memory_space<vmem>>, %arg4: memref<128x128xbf16, #tpu.memory_space<vmem>>, %arg5: memref<1x128xf32, #tpu.memory_space<vmem>>, %arg6: memref<16x128xbf16, #tpu.memory_space<vmem>>, %arg7: memref<16x128xf32, #tpu.memory_space<vmem>>) attributes {dimension_semantics = [#tpu.dimension_semantics<parallel>, #tpu.dimension_semantics<parallel>, #tpu.dimension_semantics<arbitrary>], iteration_bounds = array<i64: 1, 1, 1>, scalar_prefetch = 0 : i64, scratch_operands = 1 : i64, tpu.core_type = #tpu.core_type<tc>, window_params = [{transform_indices = @transform_0, window_bounds = array<i64: 16, 128>}, {transform_indices = @transform_1, window_bounds = array<i64: 128, 128>}, {transform_indices = @transform_2, window_bounds = array<i64: 1, 128>}, {transform_indices = @transform_3, window_bounds = array<i64: 16, 128>}]} {
    %c0_i32 = arith.constant 0 : i32
    %0 = arith.cmpi eq, %arg2, %c0_i32 : i32
    %1 = arith.extui %0 : i1 to i32
    %c0_i32_0 = arith.constant 0 : i32
    %2 = arith.cmpi ne, %1, %c0_i32_0 : i32
    scf.if %2 {
      %cst_10 = arith.constant 0.000000e+00 : f32
      %12 = vector.broadcast %cst_10 : f32 to vector<16x128xf32>
      %c0_11 = arith.constant 0 : index
      %c0_12 = arith.constant 0 : index
      %13 = vector.load %arg7[%c0_11, %c0_12] : memref<16x128xf32, #tpu.memory_space<vmem>>, vector<16x128xf32>
      tpu.vector_store %arg7[%c0_11, %c0_12], %12 {strides = array<i32>} : memref<16x128xf32, #tpu.memory_space<vmem>>, vector<16x128xf32>,
    } else {
    }
    %c0 = arith.constant 0 : index
    %c0_1 = arith.constant 0 : index
    %3 = vector.load %arg7[%c0, %c0_1] : memref<16x128xf32, #tpu.memory_space<vmem>>, vector<16x128xf32>
    %c0_2 = arith.constant 0 : index
    %c0_3 = arith.constant 0 : index
    %4 = vector.load %arg3[%c0_2, %c0_3] : memref<16x128xbf16, #tpu.memory_space<vmem>>, vector<16x128xbf16>
    %c0_4 = arith.constant 0 : index
    %c0_5 = arith.constant 0 : index
    %5 = vector.load %arg4[%c0_4, %c0_5] : memref<128x128xbf16, #tpu.memory_space<vmem>>, vector<128x128xbf16>
    %cst = arith.constant dense<0.000000e+00> : vector<16x128xf32>
    %6 = tpu.matmul %4, %5, %cst {dimension_numbers = #tpu.dot_dimension_numbers<[1], [0], [0], [1], [0, 0, 1, 1], [], []>} : vector<16x128xbf16>, vector<128x128xbf16>, vector<16x128xf32> -> vector<16x128xf32>
    %7 = arith.addf %3, %6 : vector<16x128xf32>
    %c0_6 = arith.constant 0 : index
    %c0_7 = arith.constant 0 : index
    %8 = vector.load %arg7[%c0_6, %c0_7] : memref<16x128xf32, #tpu.memory_space<vmem>>, vector<16x128xf32>
    tpu.vector_store %arg7[%c0_6, %c0_7], %7 {strides = array<i32>} : memref<16x128xf32, #tpu.memory_space<vmem>>, vector<16x128xf32>,
    %c0_i32_8 = arith.constant 0 : i32
    %9 = arith.cmpi eq, %arg2, %c0_i32_8 : i32
    %10 = arith.extui %9 : i1 to i32
    %c0_i32_9 = arith.constant 0 : i32
    %11 = arith.cmpi ne, %10, %c0_i32_9 : i32
    scf.if %11 {
      %c0_10 = arith.constant 0 : index
      %c0_11 = arith.constant 0 : index
      %12 = vector.load %arg7[%c0_10, %c0_11] : memref<16x128xf32, #tpu.memory_space<vmem>>, vector<16x128xf32>
      %c0_12 = arith.constant 0 : index
      %c0_13 = arith.constant 0 : index
      %13 = vector.load %arg5[%c0_12, %c0_13] : memref<1x128xf32, #tpu.memory_space<vmem>>, vector<1x128xf32>
      %14 = vector.broadcast %13 : vector<1x128xf32> to vector<16x128xf32>
      %15 = arith.addf %12, %14 : vector<16x128xf32>
      %cst_14 = arith.constant 0.000000e+00 : f32
      %16 = vector.broadcast %cst_14 : f32 to vector<16x128xf32>
      %17 = arith.maximumf %15, %16 : vector<16x128xf32>
      %18 = arith.truncf %17 : vector<16x128xf32> to vector<16x128xbf16>
      %c0_15 = arith.constant 0 : index
      %c0_16 = arith.constant 0 : index
      %19 = vector.load %arg6[%c0_15, %c0_16] : memref<16x128xbf16, #tpu.memory_space<vmem>>, vector<16x128xbf16>
      tpu.vector_store %arg6[%c0_15, %c0_16], %18 {strides = array<i32>} : memref<16x128xbf16, #tpu.memory_space<vmem>>, vector<16x128xbf16>,
    } else {
    }
    return
  }
  func.func @transform_0(%arg0: i32, %arg1: i32, %arg2: i32) -> (i32, i32) {
    %c0_i32 = arith.constant 0 : i32
    return %arg0, %arg2 : i32, i32
  }
  func.func @transform_1(%arg0: i32, %arg1: i32, %arg2: i32) -> (i32, i32) {
    %c0_i32 = arith.constant 0 : i32
    return %arg2, %arg1 : i32, i32
  }
  func.func @transform_2(%arg0: i32, %arg1: i32, %arg2: i32) -> (i32, i32) {
    %c0_i32 = arith.constant 0 : i32
    %c0_i32_0 = arith.constant 0 : i32
    return %c0_i32, %arg1 : i32, i32
  }
  func.func @transform_3(%arg0: i32, %arg1: i32, %arg2: i32) -> (i32, i32) {
    %c0_i32 = arith.constant 0 : i32
    return %arg0, %arg1 : i32, i32
  }
}

module attributes {stable_mosaic.version = 11 : i64} {
  func.func @_linear_kernel(%arg0: i32, %arg1: i32, %arg2: i32, %arg3: memref<16x128xbf16, #tpu.memory_space<vmem>>, %arg4: memref<128x128xbf16, #tpu.memory_space<vmem>>, %arg5: memref<1x128xf32, #tpu.memory_space<vmem>>, %arg6: memref<16x128xf32, #tpu.memory_space<vmem>>, %arg7: memref<16x128xf32, #tpu.memory_space<vmem>>) attributes {dimension_semantics = [#tpu.dimension_semantics<parallel>, #tpu.dimension_semantics<parallel>, #tpu.dimension_semantics<arbitrary>], iteration_bounds = array<i64: 1, 1, 1>, scalar_prefetch = 0 : i64, scratch_operands = 1 : i64, tpu.core_type = #tpu.core_type<tc>, window_params = [{transform_indices = @transform_0, window_bounds = array<i64: 16, 128>}, {transform_indices = @transform_1, window_bounds = array<i64: 128, 128>}, {transform_indices = @transform_2, window_bounds = array<i64: 1, 128>}, {transform_indices = @transform_3, window_bounds = array<i64: 16, 128>}]} {
    %c0_i32 = arith.constant 0 : i32
    %0 = arith.cmpi eq, %arg2, %c0_i32 : i32
    %1 = arith.extui %0 : i1 to i32
    %c0_i32_0 = arith.constant 0 : i32
    %2 = arith.cmpi ne, %1, %c0_i32_0 : i32
    scf.if %2 {
      %cst_10 = arith.constant 0.000000e+00 : f32
      %12 = vector.broadcast %cst_10 : f32 to vector<16x128xf32>
      %c0_11 = arith.constant 0 : index
      %c0_12 = arith.constant 0 : index
      %13 = vector.load %arg7[%c0_11, %c0_12] : memref<16x128xf32, #tpu.memory_space<vmem>>, vector<16x128xf32>
      tpu.vector_store %arg7[%c0_11, %c0_12], %12 {strides = array<i32>} : memref<16x128xf32, #tpu.memory_space<vmem>>, vector<16x128xf32>,
    } else {
    }
    %c0 = arith.constant 0 : index
    %c0_1 = arith.constant 0 : index
    %3 = vector.load %arg7[%c0, %c0_1] : memref<16x128xf32, #tpu.memory_space<vmem>>, vector<16x128xf32>
    %c0_2 = arith.constant 0 : index
    %c0_3 = arith.constant 0 : index
    %4 = vector.load %arg3[%c0_2, %c0_3] : memref<16x128xbf16, #tpu.memory_space<vmem>>, vector<16x128xbf16>
    %c0_4 = arith.constant 0 : index
    %c0_5 = arith.constant 0 : index
    %5 = vector.load %arg4[%c0_4, %c0_5] : memref<128x128xbf16, #tpu.memory_space<vmem>>, vector<128x128xbf16>
    %cst = arith.constant dense<0.000000e+00> : vector<16x128xf32>
    %6 = tpu.matmul %4, %5, %cst {dimension_numbers = #tpu.dot_dimension_numbers<[1], [0], [0], [1], [0, 0, 1, 1], [], []>} : vector<16x128xbf16>, vector<128x128xbf16>, vector<16x128xf32> -> vector<16x128xf32>
    %7 = arith.addf %3, %6 : vector<16x128xf32>
    %c0_6 = arith.constant 0 : index
    %c0_7 = arith.constant 0 : index
    %8 = vector.load %arg7[%c0_6, %c0_7] : memref<16x128xf32, #tpu.memory_space<vmem>>, vector<16x128xf32>
    tpu.vector_store %arg7[%c0_6, %c0_7], %7 {strides = array<i32>} : memref<16x128xf32, #tpu.memory_space<vmem>>, vector<16x128xf32>,
    %c0_i32_8 = arith.constant 0 : i32
    %9 = arith.cmpi eq, %arg2, %c0_i32_8 : i32
    %10 = arith.extui %9 : i1 to i32
    %c0_i32_9 = arith.constant 0 : i32
    %11 = arith.cmpi ne, %10, %c0_i32_9 : i32
    scf.if %11 {
      %c0_10 = arith.constant 0 : index
      %c0_11 = arith.constant 0 : index
      %12 = vector.load %arg7[%c0_10, %c0_11] : memref<16x128xf32, #tpu.memory_space<vmem>>, vector<16x128xf32>
      %c0_12 = arith.constant 0 : index
      %c0_13 = arith.constant 0 : index
      %13 = vector.load %arg5[%c0_12, %c0_13] : memref<1x128xf32, #tpu.memory_space<vmem>>, vector<1x128xf32>
      %14 = vector.broadcast %13 : vector<1x128xf32> to vector<16x128xf32>
      %15 = arith.addf %12, %14 : vector<16x128xf32>
      %c0_14 = arith.constant 0 : index
      %c0_15 = arith.constant 0 : index
      %16 = vector.load %arg6[%c0_14, %c0_15] : memref<16x128xf32, #tpu.memory_space<vmem>>, vector<16x128xf32>
      tpu.vector_store %arg6[%c0_14, %c0_15], %15 {strides = array<i32>} : memref<16x128xf32, #tpu.memory_space<vmem>>, vector<16x128xf32>,
    } else {
    }
    return
  }
  func.func @transform_0(%arg0: i32, %arg1: i32, %arg2: i32) -> (i32, i32) {
    %c0_i32 = arith.constant 0 : i32
    return %arg0, %arg2 : i32, i32
  }
  func.func @transform_1(%arg0: i32, %arg1: i32, %arg2: i32) -> (i32, i32) {
    %c0_i32 = arith.constant 0 : i32
    return %arg2, %arg1 : i32, i32
  }
  func.func @transform_2(%arg0: i32, %arg1: i32, %arg2: i32) -> (i32, i32) {
    %c0_i32 = arith.constant 0 : i32
    %c0_i32_0 = arith.constant 0 : i32
    return %c0_i32, %arg1 : i32, i32
  }
  func.func @transform_3(%arg0: i32, %arg1: i32, %arg2: i32) -> (i32, i32) {
    %c0_i32 = arith.constant 0 : i32
    return %arg0, %arg1 : i32, i32
  }
}

module attributes {stable_mosaic.version = 11 : i64} {
  func.func @_linear_kernel(%arg0: i32, %arg1: i32, %arg2: i32, %arg3: memref<16x128xbf16, #tpu.memory_space<vmem>>, %arg4: memref<128x128xbf16, #tpu.memory_space<vmem>>, %arg5: memref<1x128xf32, #tpu.memory_space<vmem>>, %arg6: memref<16x128xf32, #tpu.memory_space<vmem>>, %arg7: memref<16x128xf32, #tpu.memory_space<vmem>>) attributes {dimension_semantics = [#tpu.dimension_semantics<parallel>, #tpu.dimension_semantics<parallel>, #tpu.dimension_semantics<arbitrary>], iteration_bounds = array<i64: 1, 1, 1>, scalar_prefetch = 0 : i64, scratch_operands = 1 : i64, tpu.core_type = #tpu.core_type<tc>, window_params = [{transform_indices = @transform_0, window_bounds = array<i64: 16, 128>}, {transform_indices = @transform_1, window_bounds = array<i64: 128, 128>}, {transform_indices = @transform_2, window_bounds = array<i64: 1, 128>}, {transform_indices = @transform_3, window_bounds = array<i64: 16, 128>}]} {
    %c0_i32 = arith.constant 0 : i32
    %0 = arith.cmpi eq, %arg2, %c0_i32 : i32
    %1 = arith.extui %0 : i1 to i32
    %c0_i32_0 = arith.constant 0 : i32
    %2 = arith.cmpi ne, %1, %c0_i32_0 : i32
    scf.if %2 {
      %cst_10 = arith.constant 0.000000e+00 : f32
      %12 = vector.broadcast %cst_10 : f32 to vector<16x128xf32>
      %c0_11 = arith.constant 0 : index
      %c0_12 = arith.constant 0 : index
      %13 = vector.load %arg7[%c0_11, %c0_12] : memref<16x128xf32, #tpu.memory_space<vmem>>, vector<16x128xf32>
      tpu.vector_store %arg7[%c0_11, %c0_12], %12 {strides = array<i32>} : memref<16x128xf32, #tpu.memory_space<vmem>>, vector<16x128xf32>,
    } else {
    }
    %c0 = arith.constant 0 : index
    %c0_1 = arith.constant 0 : index
    %3 = vector.load %arg7[%c0, %c0_1] : memref<16x128xf32, #tpu.memory_space<vmem>>, vector<16x128xf32>
    %c0_2 = arith.constant 0 : index
    %c0_3 = arith.constant 0 : index
    %4 = vector.load %arg3[%c0_2, %c0_3] : memref<16x128xbf16, #tpu.memory_space<vmem>>, vector<16x128xbf16>
    %c0_4 = arith.constant 0 : index
    %c0_5 = arith.constant 0 : index
    %5 = vector.load %arg4[%c0_4, %c0_5] : memref<128x128xbf16, #tpu.memory_space<vmem>>, vector<128x128xbf16>
    %cst = arith.constant dense<0.000000e+00> : vector<16x128xf32>
    %6 = tpu.matmul %4, %5, %cst {dimension_numbers = #tpu.dot_dimension_numbers<[1], [0], [0], [1], [0, 0, 1, 1], [], []>} : vector<16x128xbf16>, vector<128x128xbf16>, vector<16x128xf32> -> vector<16x128xf32>
    %7 = arith.addf %3, %6 : vector<16x128xf32>
    %c0_6 = arith.constant 0 : index
    %c0_7 = arith.constant 0 : index
    %8 = vector.load %arg7[%c0_6, %c0_7] : memref<16x128xf32, #tpu.memory_space<vmem>>, vector<16x128xf32>
    tpu.vector_store %arg7[%c0_6, %c0_7], %7 {strides = array<i32>} : memref<16x128xf32, #tpu.memory_space<vmem>>, vector<16x128xf32>,
    %c0_i32_8 = arith.constant 0 : i32
    %9 = arith.cmpi eq, %arg2, %c0_i32_8 : i32
    %10 = arith.extui %9 : i1 to i32
    %c0_i32_9 = arith.constant 0 : i32
    %11 = arith.cmpi ne, %10, %c0_i32_9 : i32
    scf.if %11 {
      %c0_10 = arith.constant 0 : index
      %c0_11 = arith.constant 0 : index
      %12 = vector.load %arg7[%c0_10, %c0_11] : memref<16x128xf32, #tpu.memory_space<vmem>>, vector<16x128xf32>
      %c0_12 = arith.constant 0 : index
      %c0_13 = arith.constant 0 : index
      %13 = vector.load %arg5[%c0_12, %c0_13] : memref<1x128xf32, #tpu.memory_space<vmem>>, vector<1x128xf32>
      %14 = vector.broadcast %13 : vector<1x128xf32> to vector<16x128xf32>
      %15 = arith.addf %12, %14 : vector<16x128xf32>
      %c0_14 = arith.constant 0 : index
      %c0_15 = arith.constant 0 : index
      %16 = vector.load %arg6[%c0_14, %c0_15] : memref<16x128xf32, #tpu.memory_space<vmem>>, vector<16x128xf32>
      tpu.vector_store %arg6[%c0_14, %c0_15], %15 {strides = array<i32>} : memref<16x128xf32, #tpu.memory_space<vmem>>, vector<16x128xf32>,
    } else {
    }
    return
  }
  func.func @transform_0(%arg0: i32, %arg1: i32, %arg2: i32) -> (i32, i32) {
    %c0_i32 = arith.constant 0 : i32
    return %arg0, %arg2 : i32, i32
  }
  func.func @transform_1(%arg0: i32, %arg1: i32, %arg2: i32) -> (i32, i32) {
    %c0_i32 = arith.constant 0 : i32
    return %arg2, %arg1 : i32, i32
  }
  func.func @transform_2(%arg0: i32, %arg1: i32, %arg2: i32) -> (i32, i32) {
    %c0_i32 = arith.constant 0 : i32
    %c0_i32_0 = arith.constant 0 : i32
    return %c0_i32, %arg1 : i32, i32
  }
  func.func @transform_3(%arg0: i32, %arg1: i32, %arg2: i32) -> (i32, i32) {
    %c0_i32 = arith.constant 0 : i32
    return %arg0, %arg1 : i32, i32
  }
}

</mosaic_0001>

<llo_original>
// kernel: transformer_forward.23
$region0: #{transformer_forward.23}
  #allocation0 [shape = 'u32[]', space=smem, size = 0x4, offset = 0x4, fixed_abs, tag = 'smem constant byte address 0x4 - core index']
  #allocation1 [shape = 'u32[144,128]{1,0:T(1,128)}', space=vmem, size = 0x12000, scoped, tag = 'internal scratch']
  #allocation2 [shape = 'f32[216,128]{1,0:T(8,128)}', space=vmem, size = 0x1b000, scoped, tag = 'scratch operand']
  %s0 = inlined_call_operand.vmem [shape: bf16[216,128], index: 0, kind: input, shape index: {}]
  %s1 = inlined_call_operand.vmem [shape: bf16[128,128], index: 1, kind: input, shape index: {}]
  %s2 = inlined_call_operand.vmem [shape: f32[1,128], index: 2, kind: input, shape index: {}]
  %s3 = inlined_call_operand.vmem [shape: bf16[216,128], index: 3, kind: output, shape index: {}]
  %s4 = sld [smem:[#allocation0]]
  $region30: #{transformer_forward.23} parent=0
    _
  %s6 = ssub.s32 1, %s4
  %s7 = scalar_select 0, %s6, %s4
  // Predicated region
  $region2: #{transformer_forward.23} parent=0 // pred_check
    _
  $region3: #{transformer_forward.23} parent=0 // pred_check_branch
    %9 = sbr.rel (0) target = $region5
  $region4: #{transformer_forward.23} parent=0 // pred_region
    _
  $region5: #{transformer_forward.23} parent=0 // pred_fallthru
    _
  // Predicated region
  $region6: #{transformer_forward.23} parent=0 // pred_check
    _
  $region7: #{transformer_forward.23} parent=0 // pred_check_branch
    %11 = sbr.rel (0) target = $region9
  $region8: #{transformer_forward.23} parent=0 // pred_region
    _
  $region9: #{transformer_forward.23} parent=0 // pred_fallthru
    _
  // Predicated region
  $region10: #{transformer_forward.23} parent=0 // pred_check
    _
  $region11: #{transformer_forward.23} parent=0 // pred_check_branch
    %13 = sbr.rel (0) target = $region13
  $region12: #{transformer_forward.23} parent=0 // pred_region
    _
  $region13: #{transformer_forward.23} parent=0 // pred_fallthru
    _
  %p15 = scmp.eq.s32.totalorder 0, 0
  // Predicated region
  $region14: #{transformer_forward.23} parent=0 // pred_check
    %p16 = pneg %p15
  $region15: #{transformer_forward.23} parent=0 // pred_check_branch
    %18 = sbr.rel (%p16) target = $region17
  $region16: #{transformer_forward.23} parent=0 // pred_region
    %19 = vst [vmem:[#allocation2] sm:$0xff] 0.0
    %20 = vst [vmem:[#allocation2 + $0x8] sm:$0xff] 0.0
    %21 = vst [vmem:[#allocation2 + $0x10] sm:$0xff] 0.0
    %22 = vst [vmem:[#allocation2 + $0x18] sm:$0xff] 0.0
    %23 = vst [vmem:[#allocation2 + $0x20] sm:$0xff] 0.0
    %24 = vst [vmem:[#allocation2 + $0x28] sm:$0xff] 0.0
    %25 = vst [vmem:[#allocation2 + $0x30] sm:$0xff] 0.0
    %26 = vst [vmem:[#allocation2 + $0x38] sm:$0xff] 0.0
    %27 = vst [vmem:[#allocation2 + $0x40] sm:$0xff] 0.0
    %28 = vst [vmem:[#allocation2 + $0x48] sm:$0xff] 0.0
    %29 = vst [vmem:[#allocation2 + $0x50] sm:$0xff] 0.0
    %30 = vst [vmem:[#allocation2 + $0x58] sm:$0xff] 0.0
    %31 = vst [vmem:[#allocation2 + $0x60] sm:$0xff] 0.0
    %32 = vst [vmem:[#allocation2 + $0x68] sm:$0xff] 0.0
    %33 = vst [vmem:[#allocation2 + $0x70] sm:$0xff] 0.0
    %34 = vst [vmem:[#allocation2 + $0x78] sm:$0xff] 0.0
    %35 = vst [vmem:[#allocation2 + $0x80] sm:$0xff] 0.0
    %36 = vst [vmem:[#allocation2 + $0x88] sm:$0xff] 0.0
    %37 = vst [vmem:[#allocation2 + $0x90] sm:$0xff] 0.0
    %38 = vst [vmem:[#allocation2 + $0x98] sm:$0xff] 0.0
    %39 = vst [vmem:[#allocation2 + $0xa0] sm:$0xff] 0.0
    %40 = vst [vmem:[#allocation2 + $0xa8] sm:$0xff] 0.0
    %41 = vst [vmem:[#allocation2 + $0xb0] sm:$0xff] 0.0
    %42 = vst [vmem:[#allocation2 + $0xb8] sm:$0xff] 0.0
    %43 = vst [vmem:[#allocation2 + $0xc0] sm:$0xff] 0.0
    %44 = vst [vmem:[#allocation2 + $0xc8] sm:$0xff] 0.0
    %45 = vst [vmem:[#allocation2 + $0xd0] sm:$0xff] 0.0
  $region17: #{transformer_forward.23} parent=0 // pred_fallthru
    _
  %v46 = vld [vmem:[#allocation2] sm:$0xff]
  %v47 = vld [vmem:[#allocation2 + $0x8] sm:$0xff]
  %v48 = vld [vmem:[#allocation2 + $0x10] sm:$0xff]
  %v49 = vld [vmem:[#allocation2 + $0x18] sm:$0xff]
  %v50 = vld [vmem:[#allocation2 + $0x20] sm:$0xff]
  %v51 = vld [vmem:[#allocation2 + $0x28] sm:$0xff]
  %v52 = vld [vmem:[#allocation2 + $0x30] sm:$0xff]
  %v53 = vld [vmem:[#allocation2 + $0x38] sm:$0xff]
  %v54 = vld [vmem:[#allocation2 + $0x40] sm:$0xff]
  %v55 = vld [vmem:[#allocation2 + $0x48] sm:$0xff]
  %v56 = vld [vmem:[#allocation2 + $0x50] sm:$0xff]
  %v57 = vld [vmem:[#allocation2 + $0x58] sm:$0xff]
  %v58 = vld [vmem:[#allocation2 + $0x60] sm:$0xff]
  %v59 = vld [vmem:[#allocation2 + $0x68] sm:$0xff]
  %v60 = vld [vmem:[#allocation2 + $0x70] sm:$0xff]
  %v61 = vld [vmem:[#allocation2 + $0x78] sm:$0xff]
  %v62 = vld [vmem:[#allocation2 + $0x80] sm:$0xff]
  %v63 = vld [vmem:[#allocation2 + $0x88] sm:$0xff]
  %v64 = vld [vmem:[#allocation2 + $0x90] sm:$0xff]
  %v65 = vld [vmem:[#allocation2 + $0x98] sm:$0xff]
  %v66 = vld [vmem:[#allocation2 + $0xa0] sm:$0xff]
  %v67 = vld [vmem:[#allocation2 + $0xa8] sm:$0xff]
  %v68 = vld [vmem:[#allocation2 + $0xb0] sm:$0xff]
  %v69 = vld [vmem:[#allocation2 + $0xb8] sm:$0xff]
  %v70 = vld [vmem:[#allocation2 + $0xc0] sm:$0xff]
  %v71 = vld [vmem:[#allocation2 + $0xc8] sm:$0xff]
  %v72 = vld [vmem:[#allocation2 + $0xd0] sm:$0xff]
  %v73 = vld [vmem:[%s0] sm:$0xf]
  %v74 = vld [vmem:[%s0 + $0x4] sm:$0xf]
  %v75 = vld [vmem:[%s0 + $0x8] sm:$0xf]
  %v76 = vld [vmem:[%s0 + $0xc] sm:$0xf]
  %v77 = vld [vmem:[%s0 + $0x10] sm:$0xf]
  %v78 = vld [vmem:[%s0 + $0x14] sm:$0xf]
  %v79 = vld [vmem:[%s0 + $0x18] sm:$0xf]
  %v80 = vld [vmem:[%s0 + $0x1c] sm:$0xf]
  %v81 = vld [vmem:[%s0 + $0x20] sm:$0xf]
  %v82 = vld [vmem:[%s0 + $0x24] sm:$0xf]
  %v83 = vld [vmem:[%s0 + $0x28] sm:$0xf]
  %v84 = vld [vmem:[%s0 + $0x2c] sm:$0xf]
  %v85 = vld [vmem:[%s0 + $0x30] sm:$0xf]
  %v86 = vld [vmem:[%s0 + $0x34] sm:$0xf]
  %v87 = vld [vmem:[%s0 + $0x38] sm:$0xf]
  %v88 = vld [vmem:[%s0 + $0x3c] sm:$0xf]
  %v89 = vld [vmem:[%s0 + $0x40] sm:$0xf]
  %v90 = vld [vmem:[%s0 + $0x44] sm:$0xf]
  %v91 = vld [vmem:[%s0 + $0x48] sm:$0xf]
  %v92 = vld [vmem:[%s0 + $0x4c] sm:$0xf]
  %v93 = vld [vmem:[%s0 + $0x50] sm:$0xf]
  %v94 = vld [vmem:[%s0 + $0x54] sm:$0xf]
  %v95 = vld [vmem:[%s0 + $0x58] sm:$0xf]
  %v96 = vld [vmem:[%s0 + $0x5c] sm:$0xf]
  %v97 = vld [vmem:[%s0 + $0x60] sm:$0xf]
  %v98 = vld [vmem:[%s0 + $0x64] sm:$0xf]
  %v99 = vld [vmem:[%s0 + $0x68] sm:$0xf]
  %v100 = vld [vmem:[%s1] sm:$0xf]
  %v101 = vld [vmem:[%s1 + $0x4] sm:$0xf]
  %v102 = vld [vmem:[%s1 + $0x8] sm:$0xf]
  %v103 = vld [vmem:[%s1 + $0xc] sm:$0xf]
  %v104 = vld [vmem:[%s1 + $0x10] sm:$0xf]
  %v105 = vld [vmem:[%s1 + $0x14] sm:$0xf]
  %v106 = vld [vmem:[%s1 + $0x18] sm:$0xf]
  %v107 = vld [vmem:[%s1 + $0x1c] sm:$0xf]
  %v108 = vld [vmem:[%s1 + $0x20] sm:$0xf]
  %v109 = vld [vmem:[%s1 + $0x24] sm:$0xf]
  %v110 = vld [vmem:[%s1 + $0x28] sm:$0xf]
  %v111 = vld [vmem:[%s1 + $0x2c] sm:$0xf]
  %v112 = vld [vmem:[%s1 + $0x30] sm:$0xf]
  %v113 = vld [vmem:[%s1 + $0x34] sm:$0xf]
  %v114 = vld [vmem:[%s1 + $0x38] sm:$0xf]
  %v115 = vld [vmem:[%s1 + $0x3c] sm:$0xf]
  %v143 = vunpack.c.l.b16 %v73
  %v144 = vunpack.c.l.b16 %v74
  %v145 = vunpack.c.l.b16 %v75
  %v146 = vunpack.c.l.b16 %v76
  %v147 = vunpack.c.l.b16 %v77
  %v148 = vunpack.c.l.b16 %v78
  %v149 = vunpack.c.l.b16 %v79
  %v150 = vunpack.c.l.b16 %v80
  %v151 = vunpack.c.l.b16 %v81
  %v152 = vunpack.c.l.b16 %v82
  %v153 = vunpack.c.l.b16 %v83
  %v154 = vunpack.c.l.b16 %v84
  %v155 = vunpack.c.l.b16 %v85
  %v156 = vunpack.c.l.b16 %v86
  %v157 = vunpack.c.l.b16 %v87
  %v158 = vunpack.c.l.b16 %v88
  %v159 = vunpack.c.l.b16 %v89
  %v160 = vunpack.c.l.b16 %v90
  %v161 = vunpack.c.l.b16 %v91
  %v162 = vunpack.c.l.b16 %v92
  %v163 = vunpack.c.l.b16 %v93
  %v164 = vunpack.c.l.b16 %v94
  %v165 = vunpack.c.l.b16 %v95
  %v166 = vunpack.c.l.b16 %v96
  %v167 = vunpack.c.l.b16 %v97
  %v168 = vunpack.c.l.b16 %v98
  %v169 = vunpack.c.l.b16 %v99
  %v170 = vpack.c.b16 %v144, %v143
  %v171 = vpack.c.b16 %v146, %v145
  %v172 = vpack.c.b16 %v148, %v147
  %v173 = vpack.c.b16 %v150, %v149
  %v174 = vpack.c.b16 %v152, %v151
  %v175 = vpack.c.b16 %v154, %v153
  %v176 = vpack.c.b16 %v156, %v155
  %v177 = vpack.c.b16 %v158, %v157
  %v178 = vpack.c.b16 %v160, %v159
  %v179 = vpack.c.b16 %v162, %v161
  %v180 = vpack.c.b16 %v164, %v163
  %v181 = vpack.c.b16 %v166, %v165
  %v182 = vpack.c.b16 %v168, %v167
  %v183 = vpack.c.b16 %v169, %v169
  %v214 = vunpack.c.l.b16 %v100
  %v215 = vunpack.c.l.b16 %v101
  %v216 = vunpack.c.l.b16 %v102
  %v217 = vunpack.c.l.b16 %v103
  %v218 = vunpack.c.l.b16 %v104
  %v219 = vunpack.c.l.b16 %v105
  %v220 = vunpack.c.l.b16 %v106
  %v221 = vunpack.c.l.b16 %v107
  %v222 = vunpack.c.l.b16 %v108
  %v223 = vunpack.c.l.b16 %v109
  %v224 = vunpack.c.l.b16 %v110
  %v225 = vunpack.c.l.b16 %v111
  %v226 = vunpack.c.l.b16 %v112
  %v227 = vunpack.c.l.b16 %v113
  %v228 = vunpack.c.l.b16 %v114
  %v229 = vunpack.c.l.b16 %v115
  %v230 = vpack.c.b16 %v215, %v214
  %v231 = vpack.c.b16 %v217, %v216
  %v232 = vpack.c.b16 %v219, %v218
  %v233 = vpack.c.b16 %v221, %v220
  %v234 = vpack.c.b16 %v223, %v222
  %v235 = vpack.c.b16 %v225, %v224
  %v236 = vpack.c.b16 %v227, %v226
  %v237 = vpack.c.b16 %v229, %v228
  %246 = vmatprep.subr.bf16.mxu0 0
  %247 = vmatpush1.bf16.msra.mxu0 %v230
  %248 = vmatprep.subr.bf16.mxu0 0
  %249 = vmatpush1.bf16.msra.mxu0 %v231
  %250 = vmatprep.subr.bf16.mxu0 0
  %251 = vmatpush1.bf16.msra.mxu0 %v232
  %252 = vmatprep.subr.bf16.mxu0 0
  %253 = vmatpush1.bf16.msra.mxu0 %v233
  %254 = vmatprep.subr.bf16.mxu0 0
  %255 = vmatpush1.bf16.msra.mxu0 %v234
  %256 = vmatprep.subr.bf16.mxu0 0
  %257 = vmatpush1.bf16.msra.mxu0 %v235
  %258 = vmatprep.subr.bf16.mxu0 0
  %259 = vmatpush1.bf16.msra.mxu0 %v236
  %260 = vmatprep.subr.bf16.mxu0 0
  %261 = vmatpush1.bf16.msra.mxu0 %v237
  %262 = vmatprep.subr.bf16.mxu0 0
  %263 = vmatpush1.bf16.msra.mxu0 0
  %264 = vmatprep.subr.bf16.mxu0 0
  %265 = vmatpush1.bf16.msra.mxu0 0
  %266 = vmatprep.subr.bf16.mxu0 0
  %267 = vmatpush1.bf16.msra.mxu0 0
  %268 = vmatprep.subr.bf16.mxu0 0
  %269 = vmatpush1.bf16.msra.mxu0 0
  %270 = vmatprep.subr.bf16.mxu0 0
  %271 = vmatpush1.bf16.msra.mxu0 0
  %272 = vmatprep.subr.bf16.mxu0 0
  %273 = vmatpush1.bf16.msra.mxu0 0
  %274 = vmatprep.subr.bf16.mxu0 0
  %275 = vmatpush1.bf16.msra.mxu0 0
  %276 = vmatprep.subr.bf16.mxu0 0
  %277 = vmatpush1.bf16.msra.mxu0 0
  %278 = vmatprep.mubr.bf16.mxu0 0
  %279 = vmatmul.mubr.bf16.gmra.mrb[0].mxu0 %v170
  %v280 = vpop.f32.mrb[0].mxu0
  %v281 = vadd.f32 0.0, %v280
  %v282 = vpop.f32.mrb[0].mxu0
  %v283 = vpop.f32.mrb[0].mxu0
  %v284 = vadd.f32 0.0, %v283
  %v285 = vpop.f32.mrb[0].mxu0
  %286 = vmatprep.mubr.bf16.mxu0 0
  %287 = vmatmul.mubr.bf16.gmra.mrb[0].mxu0 %v171
  %v288 = vpop.f32.mrb[0].mxu0
  %v289 = vadd.f32 0.0, %v288
  %v290 = vpop.f32.mrb[0].mxu0
  %v291 = vpop.f32.mrb[0].mxu0
  %v292 = vadd.f32 0.0, %v291
  %v293 = vpop.f32.mrb[0].mxu0
  %294 = vmatprep.mubr.bf16.mxu0 0
  %295 = vmatmul.mubr.bf16.gmra.mrb[0].mxu0 %v172
  %v296 = vpop.f32.mrb[0].mxu0
  %v297 = vadd.f32 0.0, %v296
  %v298 = vpop.f32.mrb[0].mxu0
  %v299 = vpop.f32.mrb[0].mxu0
  %v300 = vadd.f32 0.0, %v299
  %v301 = vpop.f32.mrb[0].mxu0
  %302 = vmatprep.mubr.bf16.mxu0 0
  %303 = vmatmul.mubr.bf16.gmra.mrb[0].mxu0 %v173
  %v304 = vpop.f32.mrb[0].mxu0
  %v305 = vadd.f32 0.0, %v304
  %v306 = vpop.f32.mrb[0].mxu0
  %v307 = vpop.f32.mrb[0].mxu0
  %v308 = vadd.f32 0.0, %v307
  %v309 = vpop.f32.mrb[0].mxu0
  %310 = vmatprep.mubr.bf16.mxu0 0
  %311 = vmatmul.mubr.bf16.gmra.mrb[0].mxu0 %v174
  %v312 = vpop.f32.mrb[0].mxu0
  %v313 = vadd.f32 0.0, %v312
  %v314 = vpop.f32.mrb[0].mxu0
  %v315 = vpop.f32.mrb[0].mxu0
  %v316 = vadd.f32 0.0, %v315
  %v317 = vpop.f32.mrb[0].mxu0
  %318 = vmatprep.mubr.bf16.mxu0 0
  %319 = vmatmul.mubr.bf16.gmra.mrb[0].mxu0 %v175
  %v320 = vpop.f32.mrb[0].mxu0
  %v321 = vadd.f32 0.0, %v320
  %v322 = vpop.f32.mrb[0].mxu0
  %v323 = vpop.f32.mrb[0].mxu0
  %v324 = vadd.f32 0.0, %v323
  %v325 = vpop.f32.mrb[0].mxu0
  %326 = vmatprep.mubr.bf16.mxu0 0
  %327 = vmatmul.mubr.bf16.gmra.mrb[0].mxu0 %v176
  %v328 = vpop.f32.mrb[0].mxu0
  %v329 = vadd.f32 0.0, %v328
  %v330 = vpop.f32.mrb[0].mxu0
  %v331 = vpop.f32.mrb[0].mxu0
  %v332 = vadd.f32 0.0, %v331
  %v333 = vpop.f32.mrb[0].mxu0
  %334 = vmatprep.mubr.bf16.mxu0 0
  %335 = vmatmul.mubr.bf16.gmra.mrb[0].mxu0 %v177
  %v336 = vpop.f32.mrb[0].mxu0
  %v337 = vadd.f32 0.0, %v336
  %v338 = vpop.f32.mrb[0].mxu0
  %v339 = vpop.f32.mrb[0].mxu0
  %v340 = vadd.f32 0.0, %v339
  %v341 = vpop.f32.mrb[0].mxu0
  %342 = vmatprep.mubr.bf16.mxu0 0
  %343 = vmatmul.mubr.bf16.gmra.mrb[0].mxu0 %v178
  %v344 = vpop.f32.mrb[0].mxu0
  %v345 = vadd.f32 0.0, %v344
  %v346 = vpop.f32.mrb[0].mxu0
  %v347 = vpop.f32.mrb[0].mxu0
  %v348 = vadd.f32 0.0, %v347
  %v349 = vpop.f32.mrb[0].mxu0
  %350 = vmatprep.mubr.bf16.mxu0 0
  %351 = vmatmul.mubr.bf16.gmra.mrb[0].mxu0 %v179
  %v352 = vpop.f32.mrb[0].mxu0
  %v353 = vadd.f32 0.0, %v352
  %v354 = vpop.f32.mrb[0].mxu0
  %v355 = vpop.f32.mrb[0].mxu0
  %v356 = vadd.f32 0.0, %v355
  %v357 = vpop.f32.mrb[0].mxu0
  %358 = vmatprep.mubr.bf16.mxu0 0
  %359 = vmatmul.mubr.bf16.gmra.mrb[0].mxu0 %v180
  %v360 = vpop.f32.mrb[0].mxu0
  %v361 = vadd.f32 0.0, %v360
  %v362 = vpop.f32.mrb[0].mxu0
  %v363 = vpop.f32.mrb[0].mxu0
  %v364 = vadd.f32 0.0, %v363
  %v365 = vpop.f32.mrb[0].mxu0
  %366 = vmatprep.mubr.bf16.mxu0 0
  %367 = vmatmul.mubr.bf16.gmra.mrb[0].mxu0 %v181
  %v368 = vpop.f32.mrb[0].mxu0
  %v369 = vadd.f32 0.0, %v368
  %v370 = vpop.f32.mrb[0].mxu0
  %v371 = vpop.f32.mrb[0].mxu0
  %v372 = vadd.f32 0.0, %v371
  %v373 = vpop.f32.mrb[0].mxu0
  %374 = vmatprep.mubr.bf16.mxu0 0
  %375 = vmatmul.mubr.bf16.gmra.mrb[0].mxu0 %v182
  %v376 = vpop.f32.mrb[0].mxu0
  %v377 = vadd.f32 0.0, %v376
  %v378 = vpop.f32.mrb[0].mxu0
  %v379 = vpop.f32.mrb[0].mxu0
  %v380 = vadd.f32 0.0, %v379
  %v381 = vpop.f32.mrb[0].mxu0
  %382 = vmatprep.mubr.bf16.mxu0 0
  %383 = vmatmul.mubr.bf16.gmra.mrb[0].mxu0 %v183
  %v384 = vpop.f32.mrb[0].mxu0
  %v385 = vadd.f32 0.0, %v384
  %v386 = vpop.f32.mrb[0].mxu0
  %v387 = vpop.f32.mrb[0].mxu0
  %v388 = vpop.f32.mrb[0].mxu0
  %389 = vdwg.mxu0
  %v390 = vadd.f32 %v46, %v281
  %v391 = vadd.f32 %v47, %v284
  %v392 = vadd.f32 %v48, %v289
  %v393 = vadd.f32 %v49, %v292
  %v394 = vadd.f32 %v50, %v297
  %v395 = vadd.f32 %v51, %v300
  %v396 = vadd.f32 %v52, %v305
  %v397 = vadd.f32 %v53, %v308
  %v398 = vadd.f32 %v54, %v313
  %v399 = vadd.f32 %v55, %v316
  %v400 = vadd.f32 %v56, %v321
  %v401 = vadd.f32 %v57, %v324
  %v402 = vadd.f32 %v58, %v329
  %v403 = vadd.f32 %v59, %v332
  %v404 = vadd.f32 %v60, %v337
  %v405 = vadd.f32 %v61, %v340
  %v406 = vadd.f32 %v62, %v345
  %v407 = vadd.f32 %v63, %v348
  %v408 = vadd.f32 %v64, %v353
  %v409 = vadd.f32 %v65, %v356
  %v410 = vadd.f32 %v66, %v361
  %v411 = vadd.f32 %v67, %v364
  %v412 = vadd.f32 %v68, %v369
  %v413 = vadd.f32 %v69, %v372
  %v414 = vadd.f32 %v70, %v377
  %v415 = vadd.f32 %v71, %v380
  %v416 = vadd.f32 %v72, %v385
  %417 = vst [vmem:[#allocation2] sm:$0xff] %v390
  %418 = vst [vmem:[#allocation2 + $0x8] sm:$0xff] %v391
  %419 = vst [vmem:[#allocation2 + $0x10] sm:$0xff] %v392
  %420 = vst [vmem:[#allocation2 + $0x18] sm:$0xff] %v393
  %421 = vst [vmem:[#allocation2 + $0x20] sm:$0xff] %v394
  %422 = vst [vmem:[#allocation2 + $0x28] sm:$0xff] %v395
  %423 = vst [vmem:[#allocation2 + $0x30] sm:$0xff] %v396
  %424 = vst [vmem:[#allocation2 + $0x38] sm:$0xff] %v397
  %425 = vst [vmem:[#allocation2 + $0x40] sm:$0xff] %v398
  %426 = vst [vmem:[#allocation2 + $0x48] sm:$0xff] %v399
  %427 = vst [vmem:[#allocation2 + $0x50] sm:$0xff] %v400
  %428 = vst [vmem:[#allocation2 + $0x58] sm:$0xff] %v401
  %429 = vst [vmem:[#allocation2 + $0x60] sm:$0xff] %v402
  %430 = vst [vmem:[#allocation2 + $0x68] sm:$0xff] %v403
  %431 = vst [vmem:[#allocation2 + $0x70] sm:$0xff] %v404
  %432 = vst [vmem:[#allocation2 + $0x78] sm:$0xff] %v405
  %433 = vst [vmem:[#allocation2 + $0x80] sm:$0xff] %v406
  %434 = vst [vmem:[#allocation2 + $0x88] sm:$0xff] %v407
  %435 = vst [vmem:[#allocation2 + $0x90] sm:$0xff] %v408
  %436 = vst [vmem:[#allocation2 + $0x98] sm:$0xff] %v409
  %437 = vst [vmem:[#allocation2 + $0xa0] sm:$0xff] %v410
  %438 = vst [vmem:[#allocation2 + $0xa8] sm:$0xff] %v411
  %439 = vst [vmem:[#allocation2 + $0xb0] sm:$0xff] %v412
  %440 = vst [vmem:[#allocation2 + $0xb8] sm:$0xff] %v413
  %441 = vst [vmem:[#allocation2 + $0xc0] sm:$0xff] %v414
  %442 = vst [vmem:[#allocation2 + $0xc8] sm:$0xff] %v415
  %443 = vst [vmem:[#allocation2 + $0xd0] sm:$0xff] %v416
  // Predicated region
  $region18: #{transformer_forward.23} parent=0 // pred_check
    %p444 = pneg %p15
  $region19: #{transformer_forward.23} parent=0 // pred_check_branch
    %446 = sbr.rel (%p444) target = $region21
  $region20: #{transformer_forward.23} parent=0 // pred_region
    %v447 = vld [vmem:[#allocation2] sm:$0xff]
    %v448 = vld [vmem:[#allocation2 + $0x8] sm:$0xff]
    %v449 = vld [vmem:[#allocation2 + $0x10] sm:$0xff]
    %v450 = vld [vmem:[#allocation2 + $0x18] sm:$0xff]
    %v451 = vld [vmem:[#allocation2 + $0x20] sm:$0xff]
    %v452 = vld [vmem:[#allocation2 + $0x28] sm:$0xff]
    %v453 = vld [vmem:[#allocation2 + $0x30] sm:$0xff]
    %v454 = vld [vmem:[#allocation2 + $0x38] sm:$0xff]
    %v455 = vld [vmem:[#allocation2 + $0x40] sm:$0xff]
    %v456 = vld [vmem:[#allocation2 + $0x48] sm:$0xff]
    %v457 = vld [vmem:[#allocation2 + $0x50] sm:$0xff]
    %v458 = vld [vmem:[#allocation2 + $0x58] sm:$0xff]
    %v459 = vld [vmem:[#allocation2 + $0x60] sm:$0xff]
    %v460 = vld [vmem:[#allocation2 + $0x68] sm:$0xff]
    %v461 = vld [vmem:[#allocation2 + $0x70] sm:$0xff]
    %v462 = vld [vmem:[#allocation2 + $0x78] sm:$0xff]
    %v463 = vld [vmem:[#allocation2 + $0x80] sm:$0xff]
    %v464 = vld [vmem:[#allocation2 + $0x88] sm:$0xff]
    %v465 = vld [vmem:[#allocation2 + $0x90] sm:$0xff]
    %v466 = vld [vmem:[#allocation2 + $0x98] sm:$0xff]
    %v467 = vld [vmem:[#allocation2 + $0xa0] sm:$0xff]
    %v468 = vld [vmem:[#allocation2 + $0xa8] sm:$0xff]
    %v469 = vld [vmem:[#allocation2 + $0xb0] sm:$0xff]
    %v470 = vld [vmem:[#allocation2 + $0xb8] sm:$0xff]
    %v471 = vld [vmem:[#allocation2 + $0xc0] sm:$0xff]
    %v472 = vld [vmem:[#allocation2 + $0xc8] sm:$0xff]
    %v473 = vld [vmem:[#allocation2 + $0xd0] sm:$0xff]
    %v474 = vld [vmem:[%s2] sm:$0x1]
    %v476 = vlaneseq
    %v477 = vshrl.u32 %v476, 7
    %v478 = vsub.s32 0, %v477
    %v479 = vrot.slane %v474, %v478
    %v481 = vadd.f32 %v447, %v479
    %v482 = vadd.f32 %v448, %v479
    %v483 = vadd.f32 %v449, %v479
    %v484 = vadd.f32 %v450, %v479
    %v485 = vadd.f32 %v451, %v479
    %v486 = vadd.f32 %v452, %v479
    %v487 = vadd.f32 %v453, %v479
    %v488 = vadd.f32 %v454, %v479
    %v489 = vadd.f32 %v455, %v479
    %v490 = vadd.f32 %v456, %v479
    %v491 = vadd.f32 %v457, %v479
    %v492 = vadd.f32 %v458, %v479
    %v493 = vadd.f32 %v459, %v479
    %v494 = vadd.f32 %v460, %v479
    %v495 = vadd.f32 %v461, %v479
    %v496 = vadd.f32 %v462, %v479
    %v497 = vadd.f32 %v463, %v479
    %v498 = vadd.f32 %v464, %v479
    %v499 = vadd.f32 %v465, %v479
    %v500 = vadd.f32 %v466, %v479
    %v501 = vadd.f32 %v467, %v479
    %v502 = vadd.f32 %v468, %v479
    %v503 = vadd.f32 %v469, %v479
    %v504 = vadd.f32 %v470, %v479
    %v505 = vadd.f32 %v471, %v479
    %v506 = vadd.f32 %v472, %v479
    %v507 = vadd.f32 %v473, %v479
    %v508 = vmax.f32 %v481, 0.0
    %v509 = vmax.f32 %v482, 0.0
    %v510 = vmax.f32 %v483, 0.0
    %v511 = vmax.f32 %v484, 0.0
    %v512 = vmax.f32 %v485, 0.0
    %v513 = vmax.f32 %v486, 0.0
    %v514 = vmax.f32 %v487, 0.0
    %v515 = vmax.f32 %v488, 0.0
    %v516 = vmax.f32 %v489, 0.0
    %v517 = vmax.f32 %v490, 0.0
    %v518 = vmax.f32 %v491, 0.0
    %v519 = vmax.f32 %v492, 0.0
    %v520 = vmax.f32 %v493, 0.0
    %v521 = vmax.f32 %v494, 0.0
    %v522 = vmax.f32 %v495, 0.0
    %v523 = vmax.f32 %v496, 0.0
    %v524 = vmax.f32 %v497, 0.0
    %v525 = vmax.f32 %v498, 0.0
    %v526 = vmax.f32 %v499, 0.0
    %v527 = vmax.f32 %v500, 0.0
    %v528 = vmax.f32 %v501, 0.0
    %v529 = vmax.f32 %v502, 0.0
    %v530 = vmax.f32 %v503, 0.0
    %v531 = vmax.f32 %v504, 0.0
    %v532 = vmax.f32 %v505, 0.0
    %v533 = vmax.f32 %v506, 0.0
    %v534 = vmax.f32 %v507, 0.0
    %v535 = vpack.c.bf16 %v509, %v508
    %v536 = vpack.c.bf16 %v511, %v510
    %v537 = vpack.c.bf16 %v513, %v512
    %v538 = vpack.c.bf16 %v515, %v514
    %v539 = vpack.c.bf16 %v517, %v516
    %v540 = vpack.c.bf16 %v519, %v518
    %v541 = vpack.c.bf16 %v521, %v520
    %v542 = vpack.c.bf16 %v523, %v522
    %v543 = vpack.c.bf16 %v525, %v524
    %v544 = vpack.c.bf16 %v527, %v526
    %v545 = vpack.c.bf16 %v529, %v528
    %v546 = vpack.c.bf16 %v531, %v530
    %v547 = vpack.c.bf16 %v533, %v532
    %v548 = vpack.c.bf16 %v534, %v534
    %v563 = vunpack.c.l.b16 %v535
    %v564 = vunpack.c.h.b16 %v535
    %v565 = vunpack.c.l.b16 %v536
    %v566 = vunpack.c.h.b16 %v536
    %v567 = vunpack.c.l.b16 %v537
    %v568 = vunpack.c.h.b16 %v537
    %v569 = vunpack.c.l.b16 %v538
    %v570 = vunpack.c.h.b16 %v538
    %v571 = vunpack.c.l.b16 %v539
    %v572 = vunpack.c.h.b16 %v539
    %v573 = vunpack.c.l.b16 %v540
    %v574 = vunpack.c.h.b16 %v540
    %v575 = vunpack.c.l.b16 %v541
    %v576 = vunpack.c.h.b16 %v541
    %v577 = vunpack.c.l.b16 %v542
    %v578 = vunpack.c.h.b16 %v542
    %v579 = vunpack.c.l.b16 %v543
    %v580 = vunpack.c.h.b16 %v543
    %v581 = vunpack.c.l.b16 %v544
    %v582 = vunpack.c.h.b16 %v544
    %v583 = vunpack.c.l.b16 %v545
    %v584 = vunpack.c.h.b16 %v545
    %v585 = vunpack.c.l.b16 %v546
    %v586 = vunpack.c.h.b16 %v546
    %v587 = vunpack.c.l.b16 %v547
    %v588 = vunpack.c.h.b16 %v547
    %v589 = vunpack.c.l.b16 %v548
    %v590 = vpack.c.b16 %v563, %v563
    %v591 = vpack.c.b16 %v564, %v564
    %v592 = vpack.c.b16 %v565, %v565
    %v593 = vpack.c.b16 %v566, %v566
    %v594 = vpack.c.b16 %v567, %v567
    %v595 = vpack.c.b16 %v568, %v568
    %v596 = vpack.c.b16 %v569, %v569
    %v597 = vpack.c.b16 %v570, %v570
    %v598 = vpack.c.b16 %v571, %v571
    %v599 = vpack.c.b16 %v572, %v572
    %v600 = vpack.c.b16 %v573, %v573
    %v601 = vpack.c.b16 %v574, %v574
    %v602 = vpack.c.b16 %v575, %v575
    %v603 = vpack.c.b16 %v576, %v576
    %v604 = vpack.c.b16 %v577, %v577
    %v605 = vpack.c.b16 %v578, %v578
    %v606 = vpack.c.b16 %v579, %v579
    %v607 = vpack.c.b16 %v580, %v580
    %v608 = vpack.c.b16 %v581, %v581
    %v609 = vpack.c.b16 %v582, %v582
    %v610 = vpack.c.b16 %v583, %v583
    %v611 = vpack.c.b16 %v584, %v584
    %v612 = vpack.c.b16 %v585, %v585
    %v613 = vpack.c.b16 %v586, %v586
    %v614 = vpack.c.b16 %v587, %v587
    %v615 = vpack.c.b16 %v588, %v588
    %v616 = vpack.c.b16 %v589, %v589
    %644 = vst [vmem:[%s3] sm:$0xf] %v590
    %645 = vst [vmem:[%s3 + $0x4] sm:$0xf] %v591
    %646 = vst [vmem:[%s3 + $0x8] sm:$0xf] %v592
    %647 = vst [vmem:[%s3 + $0xc] sm:$0xf] %v593
    %648 = vst [vmem:[%s3 + $0x10] sm:$0xf] %v594
    %649 = vst [vmem:[%s3 + $0x14] sm:$0xf] %v595
    %650 = vst [vmem:[%s3 + $0x18] sm:$0xf] %v596
    %651 = vst [vmem:[%s3 + $0x1c] sm:$0xf] %v597
    %652 = vst [vmem:[%s3 + $0x20] sm:$0xf] %v598
    %653 = vst [vmem:[%s3 + $0x24] sm:$0xf] %v599
    %654 = vst [vmem:[%s3 + $0x28] sm:$0xf] %v600
    %655 = vst [vmem:[%s3 + $0x2c] sm:$0xf] %v601
    %656 = vst [vmem:[%s3 + $0x30] sm:$0xf] %v602
    %657 = vst [vmem:[%s3 + $0x34] sm:$0xf] %v603
    %658 = vst [vmem:[%s3 + $0x38] sm:$0xf] %v604
    %659 = vst [vmem:[%s3 + $0x3c] sm:$0xf] %v605
    %660 = vst [vmem:[%s3 + $0x40] sm:$0xf] %v606
    %661 = vst [vmem:[%s3 + $0x44] sm:$0xf] %v607
    %662 = vst [vmem:[%s3 + $0x48] sm:$0xf] %v608
    %663 = vst [vmem:[%s3 + $0x4c] sm:$0xf] %v609
    %664 = vst [vmem:[%s3 + $0x50] sm:$0xf] %v610
    %665 = vst [vmem:[%s3 + $0x54] sm:$0xf] %v611
    %666 = vst [vmem:[%s3 + $0x58] sm:$0xf] %v612
    %667 = vst [vmem:[%s3 + $0x5c] sm:$0xf] %v613
    %668 = vst [vmem:[%s3 + $0x60] sm:$0xf] %v614
    %669 = vst [vmem:[%s3 + $0x64] sm:$0xf] %v615
    %670 = vst [vmem:[%s3 + $0x68] sm:$0xf] %v616
  $region21: #{transformer_forward.23} parent=0 // pred_fallthru
    _
  // Predicated region
  $region22: #{transformer_forward.23} parent=0 // pred_check
    _
  $region23: #{transformer_forward.23} parent=0 // pred_check_branch
    %672 = sbr.rel (0) target = $region25
  $region24: #{transformer_forward.23} parent=0 // pred_region
    _
  $region25: #{transformer_forward.23} parent=0 // pred_fallthru
    _
  // Predicated region
  $region26: #{transformer_forward.23} parent=0 // pred_check
    _
  $region27: #{transformer_forward.23} parent=0 // pred_check_branch
    %674 = sbr.rel (0) target = $region29
  $region28: #{transformer_forward.23} parent=0 // pred_region
    _
  $region29: #{transformer_forward.23} parent=0 // pred_fallthru
    _

// kernel: transformer_forward.24
$region0: #{transformer_forward.24}
  #allocation0 [shape = 'u32[]', space=smem, size = 0x4, offset = 0x4, fixed_abs, tag = 'smem constant byte address 0x4 - core index']
  #allocation1 [shape = 'u32[144,128]{1,0:T(1,128)}', space=vmem, size = 0x12000, scoped, tag = 'internal scratch']
  #allocation2 [shape = 'f32[48,128]{1,0:T(8,128)}', space=vmem, size = 0x6000, scoped, tag = 'scratch operand']
  %s0 = inlined_call_operand.vmem [shape: bf16[48,128], index: 0, kind: input, shape index: {}]
  %s1 = inlined_call_operand.vmem [shape: bf16[128,128], index: 1, kind: input, shape index: {}]
  %s2 = inlined_call_operand.vmem [shape: f32[1,128], index: 2, kind: input, shape index: {}]
  %s3 = inlined_call_operand.vmem [shape: bf16[48,128], index: 3, kind: output, shape index: {}]
  %s4 = sld [smem:[#allocation0]]
  $region30: #{transformer_forward.24} parent=0
    _
  %s6 = ssub.s32 1, %s4
  %s7 = scalar_select 0, %s6, %s4
  // Predicated region
  $region2: #{transformer_forward.24} parent=0 // pred_check
    _
  $region3: #{transformer_forward.24} parent=0 // pred_check_branch
    %9 = sbr.rel (0) target = $region5
  $region4: #{transformer_forward.24} parent=0 // pred_region
    _
  $region5: #{transformer_forward.24} parent=0 // pred_fallthru
    _
  // Predicated region
  $region6: #{transformer_forward.24} parent=0 // pred_check
    _
  $region7: #{transformer_forward.24} parent=0 // pred_check_branch
    %11 = sbr.rel (0) target = $region9
  $region8: #{transformer_forward.24} parent=0 // pred_region
    _
  $region9: #{transformer_forward.24} parent=0 // pred_fallthru
    _
  // Predicated region
  $region10: #{transformer_forward.24} parent=0 // pred_check
    _
  $region11: #{transformer_forward.24} parent=0 // pred_check_branch
    %13 = sbr.rel (0) target = $region13
  $region12: #{transformer_forward.24} parent=0 // pred_region
    _
  $region13: #{transformer_forward.24} parent=0 // pred_fallthru
    _
  %p15 = scmp.eq.s32.totalorder 0, 0
  // Predicated region
  $region14: #{transformer_forward.24} parent=0 // pred_check
    %p16 = pneg %p15
  $region15: #{transformer_forward.24} parent=0 // pred_check_branch
    %18 = sbr.rel (%p16) target = $region17
  $region16: #{transformer_forward.24} parent=0 // pred_region
    %19 = vst [vmem:[#allocation2] sm:$0xff] 0.0
    %20 = vst [vmem:[#allocation2 + $0x8] sm:$0xff] 0.0
    %21 = vst [vmem:[#allocation2 + $0x10] sm:$0xff] 0.0
    %22 = vst [vmem:[#allocation2 + $0x18] sm:$0xff] 0.0
    %23 = vst [vmem:[#allocation2 + $0x20] sm:$0xff] 0.0
    %24 = vst [vmem:[#allocation2 + $0x28] sm:$0xff] 0.0
  $region17: #{transformer_forward.24} parent=0 // pred_fallthru
    _
  %v25 = vld [vmem:[#allocation2] sm:$0xff]
  %v26 = vld [vmem:[#allocation2 + $0x8] sm:$0xff]
  %v27 = vld [vmem:[#allocation2 + $0x10] sm:$0xff]
  %v28 = vld [vmem:[#allocation2 + $0x18] sm:$0xff]
  %v29 = vld [vmem:[#allocation2 + $0x20] sm:$0xff]
  %v30 = vld [vmem:[#allocation2 + $0x28] sm:$0xff]
  %v31 = vld [vmem:[%s0] sm:$0xf]
  %v32 = vld [vmem:[%s0 + $0x4] sm:$0xf]
  %v33 = vld [vmem:[%s0 + $0x8] sm:$0xf]
  %v34 = vld [vmem:[%s0 + $0xc] sm:$0xf]
  %v35 = vld [vmem:[%s0 + $0x10] sm:$0xf]
  %v36 = vld [vmem:[%s0 + $0x14] sm:$0xf]
  %v37 = vld [vmem:[%s1] sm:$0xf]
  %v38 = vld [vmem:[%s1 + $0x4] sm:$0xf]
  %v39 = vld [vmem:[%s1 + $0x8] sm:$0xf]
  %v40 = vld [vmem:[%s1 + $0xc] sm:$0xf]
  %v41 = vld [vmem:[%s1 + $0x10] sm:$0xf]
  %v42 = vld [vmem:[%s1 + $0x14] sm:$0xf]
  %v43 = vld [vmem:[%s1 + $0x18] sm:$0xf]
  %v44 = vld [vmem:[%s1 + $0x1c] sm:$0xf]
  %v45 = vld [vmem:[%s1 + $0x20] sm:$0xf]
  %v46 = vld [vmem:[%s1 + $0x24] sm:$0xf]
  %v47 = vld [vmem:[%s1 + $0x28] sm:$0xf]
  %v48 = vld [vmem:[%s1 + $0x2c] sm:$0xf]
  %v49 = vld [vmem:[%s1 + $0x30] sm:$0xf]
  %v50 = vld [vmem:[%s1 + $0x34] sm:$0xf]
  %v51 = vld [vmem:[%s1 + $0x38] sm:$0xf]
  %v52 = vld [vmem:[%s1 + $0x3c] sm:$0xf]
  %v59 = vunpack.c.l.b16 %v31
  %v60 = vunpack.c.l.b16 %v32
  %v61 = vunpack.c.l.b16 %v33
  %v62 = vunpack.c.l.b16 %v34
  %v63 = vunpack.c.l.b16 %v35
  %v64 = vunpack.c.l.b16 %v36
  %v65 = vpack.c.b16 %v60, %v59
  %v66 = vpack.c.b16 %v62, %v61
  %v67 = vpack.c.b16 %v64, %v63
  %v87 = vunpack.c.l.b16 %v37
  %v88 = vunpack.c.l.b16 %v38
  %v89 = vunpack.c.l.b16 %v39
  %v90 = vunpack.c.l.b16 %v40
  %v91 = vunpack.c.l.b16 %v41
  %v92 = vunpack.c.l.b16 %v42
  %v93 = vunpack.c.l.b16 %v43
  %v94 = vunpack.c.l.b16 %v44
  %v95 = vunpack.c.l.b16 %v45
  %v96 = vunpack.c.l.b16 %v46
  %v97 = vunpack.c.l.b16 %v47
  %v98 = vunpack.c.l.b16 %v48
  %v99 = vunpack.c.l.b16 %v49
  %v100 = vunpack.c.l.b16 %v50
  %v101 = vunpack.c.l.b16 %v51
  %v102 = vunpack.c.l.b16 %v52
  %v103 = vpack.c.b16 %v88, %v87
  %v104 = vpack.c.b16 %v90, %v89
  %v105 = vpack.c.b16 %v92, %v91
  %v106 = vpack.c.b16 %v94, %v93
  %v107 = vpack.c.b16 %v96, %v95
  %v108 = vpack.c.b16 %v98, %v97
  %v109 = vpack.c.b16 %v100, %v99
  %v110 = vpack.c.b16 %v102, %v101
  %119 = vmatprep.subr.bf16.mxu0 0
  %120 = vmatpush1.bf16.msra.mxu0 %v103
  %121 = vmatprep.subr.bf16.mxu0 0
  %122 = vmatpush1.bf16.msra.mxu0 %v104
  %123 = vmatprep.subr.bf16.mxu0 0
  %124 = vmatpush1.bf16.msra.mxu0 %v105
  %125 = vmatprep.subr.bf16.mxu0 0
  %126 = vmatpush1.bf16.msra.mxu0 %v106
  %127 = vmatprep.subr.bf16.mxu0 0
  %128 = vmatpush1.bf16.msra.mxu0 %v107
  %129 = vmatprep.subr.bf16.mxu0 0
  %130 = vmatpush1.bf16.msra.mxu0 %v108
  %131 = vmatprep.subr.bf16.mxu0 0
  %132 = vmatpush1.bf16.msra.mxu0 %v109
  %133 = vmatprep.subr.bf16.mxu0 0
  %134 = vmatpush1.bf16.msra.mxu0 %v110
  %135 = vmatprep.subr.bf16.mxu0 0
  %136 = vmatpush1.bf16.msra.mxu0 0
  %137 = vmatprep.subr.bf16.mxu0 0
  %138 = vmatpush1.bf16.msra.mxu0 0
  %139 = vmatprep.subr.bf16.mxu0 0
  %140 = vmatpush1.bf16.msra.mxu0 0
  %141 = vmatprep.subr.bf16.mxu0 0
  %142 = vmatpush1.bf16.msra.mxu0 0
  %143 = vmatprep.subr.bf16.mxu0 0
  %144 = vmatpush1.bf16.msra.mxu0 0
  %145 = vmatprep.subr.bf16.mxu0 0
  %146 = vmatpush1.bf16.msra.mxu0 0
  %147 = vmatprep.subr.bf16.mxu0 0
  %148 = vmatpush1.bf16.msra.mxu0 0
  %149 = vmatprep.subr.bf16.mxu0 0
  %150 = vmatpush1.bf16.msra.mxu0 0
  %151 = vmatprep.mubr.bf16.mxu0 0
  %152 = vmatmul.mubr.bf16.gmra.mrb[0].mxu0 %v65
  %v153 = vpop.f32.mrb[0].mxu0
  %v154 = vadd.f32 0.0, %v153
  %v155 = vpop.f32.mrb[0].mxu0
  %v156 = vpop.f32.mrb[0].mxu0
  %v157 = vadd.f32 0.0, %v156
  %v158 = vpop.f32.mrb[0].mxu0
  %159 = vmatprep.mubr.bf16.mxu0 0
  %160 = vmatmul.mubr.bf16.gmra.mrb[0].mxu0 %v66
  %v161 = vpop.f32.mrb[0].mxu0
  %v162 = vadd.f32 0.0, %v161
  %v163 = vpop.f32.mrb[0].mxu0
  %v164 = vpop.f32.mrb[0].mxu0
  %v165 = vadd.f32 0.0, %v164
  %v166 = vpop.f32.mrb[0].mxu0
  %167 = vmatprep.mubr.bf16.mxu0 0
  %168 = vmatmul.mubr.bf16.gmra.mrb[0].mxu0 %v67
  %v169 = vpop.f32.mrb[0].mxu0
  %v170 = vadd.f32 0.0, %v169
  %v171 = vpop.f32.mrb[0].mxu0
  %v172 = vpop.f32.mrb[0].mxu0
  %v173 = vadd.f32 0.0, %v172
  %v174 = vpop.f32.mrb[0].mxu0
  %175 = vdwg.mxu0
  %v176 = vadd.f32 %v25, %v154
  %v177 = vadd.f32 %v26, %v157
  %v178 = vadd.f32 %v27, %v162
  %v179 = vadd.f32 %v28, %v165
  %v180 = vadd.f32 %v29, %v170
  %v181 = vadd.f32 %v30, %v173
  %182 = vst [vmem:[#allocation2] sm:$0xff] %v176
  %183 = vst [vmem:[#allocation2 + $0x8] sm:$0xff] %v177
  %184 = vst [vmem:[#allocation2 + $0x10] sm:$0xff] %v178
  %185 = vst [vmem:[#allocation2 + $0x18] sm:$0xff] %v179
  %186 = vst [vmem:[#allocation2 + $0x20] sm:$0xff] %v180
  %187 = vst [vmem:[#allocation2 + $0x28] sm:$0xff] %v181
  // Predicated region
  $region18: #{transformer_forward.24} parent=0 // pred_check
    %p188 = pneg %p15
  $region19: #{transformer_forward.24} parent=0 // pred_check_branch
    %190 = sbr.rel (%p188) target = $region21
  $region20: #{transformer_forward.24} parent=0 // pred_region
    %v191 = vld [vmem:[#allocation2] sm:$0xff]
    %v192 = vld [vmem:[#allocation2 + $0x8] sm:$0xff]
    %v193 = vld [vmem:[#allocation2 + $0x10] sm:$0xff]
    %v194 = vld [vmem:[#allocation2 + $0x18] sm:$0xff]
    %v195 = vld [vmem:[#allocation2 + $0x20] sm:$0xff]
    %v196 = vld [vmem:[#allocation2 + $0x28] sm:$0xff]
    %v197 = vld [vmem:[%s2] sm:$0x1]
    %v199 = vlaneseq
    %v200 = vshrl.u32 %v199, 7
    %v201 = vsub.s32 0, %v200
    %v202 = vrot.slane %v197, %v201
    %v204 = vadd.f32 %v191, %v202
    %v205 = vadd.f32 %v192, %v202
    %v206 = vadd.f32 %v193, %v202
    %v207 = vadd.f32 %v194, %v202
    %v208 = vadd.f32 %v195, %v202
    %v209 = vadd.f32 %v196, %v202
    %v210 = vmax.f32 %v204, 0.0
    %v211 = vmax.f32 %v205, 0.0
    %v212 = vmax.f32 %v206, 0.0
    %v213 = vmax.f32 %v207, 0.0
    %v214 = vmax.f32 %v208, 0.0
    %v215 = vmax.f32 %v209, 0.0
    %v216 = vpack.c.bf16 %v211, %v210
    %v217 = vpack.c.bf16 %v213, %v212
    %v218 = vpack.c.bf16 %v215, %v214
    %v222 = vunpack.c.l.b16 %v216
    %v223 = vunpack.c.h.b16 %v216
    %v224 = vunpack.c.l.b16 %v217
    %v225 = vunpack.c.h.b16 %v217
    %v226 = vunpack.c.l.b16 %v218
    %v227 = vunpack.c.h.b16 %v218
    %v228 = vpack.c.b16 %v222, %v222
    %v229 = vpack.c.b16 %v223, %v223
    %v230 = vpack.c.b16 %v224, %v224
    %v231 = vpack.c.b16 %v225, %v225
    %v232 = vpack.c.b16 %v226, %v226
    %v233 = vpack.c.b16 %v227, %v227
    %240 = vst [vmem:[%s3] sm:$0xf] %v228
    %241 = vst [vmem:[%s3 + $0x4] sm:$0xf] %v229
    %242 = vst [vmem:[%s3 + $0x8] sm:$0xf] %v230
    %243 = vst [vmem:[%s3 + $0xc] sm:$0xf] %v231
    %244 = vst [vmem:[%s3 + $0x10] sm:$0xf] %v232
    %245 = vst [vmem:[%s3 + $0x14] sm:$0xf] %v233
  $region21: #{transformer_forward.24} parent=0 // pred_fallthru
    _
  // Predicated region
  $region22: #{transformer_forward.24} parent=0 // pred_check
    _
  $region23: #{transformer_forward.24} parent=0 // pred_check_branch
    %247 = sbr.rel (0) target = $region25
  $region24: #{transformer_forward.24} parent=0 // pred_region
    _
  $region25: #{transformer_forward.24} parent=0 // pred_fallthru
    _
  // Predicated region
  $region26: #{transformer_forward.24} parent=0 // pred_check
    _
  $region27: #{transformer_forward.24} parent=0 // pred_check_branch
    %249 = sbr.rel (0) target = $region29
  $region28: #{transformer_forward.24} parent=0 // pred_region
    _
  $region29: #{transformer_forward.24} parent=0 // pred_fallthru
    _

// kernel: transformer_forward.25
$region0: #{transformer_forward.25}
  #allocation0 [shape = 'u32[]', space=smem, size = 0x4, offset = 0x4, fixed_abs, tag = 'smem constant byte address 0x4 - core index']
  #allocation1 [shape = 'u32[144,128]{1,0:T(1,128)}', space=vmem, size = 0x12000, scoped, tag = 'internal scratch']
  #allocation2 [shape = 'f32[16,128]{1,0:T(8,128)}', space=vmem, size = 0x2000, scoped, tag = 'scratch operand']
  %s0 = inlined_call_operand.vmem [shape: bf16[16,128], index: 0, kind: input, shape index: {}]
  %s1 = inlined_call_operand.vmem [shape: bf16[128,128], index: 1, kind: input, shape index: {}]
  %s2 = inlined_call_operand.vmem [shape: f32[1,128], index: 2, kind: input, shape index: {}]
  %s3 = inlined_call_operand.vmem [shape: f32[16,128], index: 3, kind: output, shape index: {}]
  %s4 = sld [smem:[#allocation0]]
  $region30: #{transformer_forward.25} parent=0
    _
  %s6 = ssub.s32 1, %s4
  %s7 = scalar_select 0, %s6, %s4
  // Predicated region
  $region2: #{transformer_forward.25} parent=0 // pred_check
    _
  $region3: #{transformer_forward.25} parent=0 // pred_check_branch
    %9 = sbr.rel (0) target = $region5
  $region4: #{transformer_forward.25} parent=0 // pred_region
    _
  $region5: #{transformer_forward.25} parent=0 // pred_fallthru
    _
  // Predicated region
  $region6: #{transformer_forward.25} parent=0 // pred_check
    _
  $region7: #{transformer_forward.25} parent=0 // pred_check_branch
    %11 = sbr.rel (0) target = $region9
  $region8: #{transformer_forward.25} parent=0 // pred_region
    _
  $region9: #{transformer_forward.25} parent=0 // pred_fallthru
    _
  // Predicated region
  $region10: #{transformer_forward.25} parent=0 // pred_check
    _
  $region11: #{transformer_forward.25} parent=0 // pred_check_branch
    %13 = sbr.rel (0) target = $region13
  $region12: #{transformer_forward.25} parent=0 // pred_region
    _
  $region13: #{transformer_forward.25} parent=0 // pred_fallthru
    _
  %p15 = scmp.eq.s32.totalorder 0, 0
  // Predicated region
  $region14: #{transformer_forward.25} parent=0 // pred_check
    %p16 = pneg %p15
  $region15: #{transformer_forward.25} parent=0 // pred_check_branch
    %18 = sbr.rel (%p16) target = $region17
  $region16: #{transformer_forward.25} parent=0 // pred_region
    %19 = vst [vmem:[#allocation2] sm:$0xff] 0.0
    %20 = vst [vmem:[#allocation2 + $0x8] sm:$0xff] 0.0
  $region17: #{transformer_forward.25} parent=0 // pred_fallthru
    _
  %v21 = vld [vmem:[#allocation2] sm:$0xff]
  %v22 = vld [vmem:[#allocation2 + $0x8] sm:$0xff]
  %v23 = vld [vmem:[%s0] sm:$0xf]
  %v24 = vld [vmem:[%s0 + $0x4] sm:$0xf]
  %v25 = vld [vmem:[%s1] sm:$0xf]
  %v26 = vld [vmem:[%s1 + $0x4] sm:$0xf]
  %v27 = vld [vmem:[%s1 + $0x8] sm:$0xf]
  %v28 = vld [vmem:[%s1 + $0xc] sm:$0xf]
  %v29 = vld [vmem:[%s1 + $0x10] sm:$0xf]
  %v30 = vld [vmem:[%s1 + $0x14] sm:$0xf]
  %v31 = vld [vmem:[%s1 + $0x18] sm:$0xf]
  %v32 = vld [vmem:[%s1 + $0x1c] sm:$0xf]
  %v33 = vld [vmem:[%s1 + $0x20] sm:$0xf]
  %v34 = vld [vmem:[%s1 + $0x24] sm:$0xf]
  %v35 = vld [vmem:[%s1 + $0x28] sm:$0xf]
  %v36 = vld [vmem:[%s1 + $0x2c] sm:$0xf]
  %v37 = vld [vmem:[%s1 + $0x30] sm:$0xf]
  %v38 = vld [vmem:[%s1 + $0x34] sm:$0xf]
  %v39 = vld [vmem:[%s1 + $0x38] sm:$0xf]
  %v40 = vld [vmem:[%s1 + $0x3c] sm:$0xf]
  %v43 = vunpack.c.l.b16 %v23
  %v44 = vunpack.c.l.b16 %v24
  %v45 = vpack.c.b16 %v44, %v43
  %v63 = vunpack.c.l.b16 %v25
  %v64 = vunpack.c.l.b16 %v26
  %v65 = vunpack.c.l.b16 %v27
  %v66 = vunpack.c.l.b16 %v28
  %v67 = vunpack.c.l.b16 %v29
  %v68 = vunpack.c.l.b16 %v30
  %v69 = vunpack.c.l.b16 %v31
  %v70 = vunpack.c.l.b16 %v32
  %v71 = vunpack.c.l.b16 %v33
  %v72 = vunpack.c.l.b16 %v34
  %v73 = vunpack.c.l.b16 %v35
  %v74 = vunpack.c.l.b16 %v36
  %v75 = vunpack.c.l.b16 %v37
  %v76 = vunpack.c.l.b16 %v38
  %v77 = vunpack.c.l.b16 %v39
  %v78 = vunpack.c.l.b16 %v40
  %v79 = vpack.c.b16 %v64, %v63
  %v80 = vpack.c.b16 %v66, %v65
  %v81 = vpack.c.b16 %v68, %v67
  %v82 = vpack.c.b16 %v70, %v69
  %v83 = vpack.c.b16 %v72, %v71
  %v84 = vpack.c.b16 %v74, %v73
  %v85 = vpack.c.b16 %v76, %v75
  %v86 = vpack.c.b16 %v78, %v77
  %95 = vmatprep.subr.bf16.mxu0 0
  %96 = vmatpush1.bf16.msra.mxu0 %v79
  %97 = vmatprep.subr.bf16.mxu0 0
  %98 = vmatpush1.bf16.msra.mxu0 %v80
  %99 = vmatprep.subr.bf16.mxu0 0
  %100 = vmatpush1.bf16.msra.mxu0 %v81
  %101 = vmatprep.subr.bf16.mxu0 0
  %102 = vmatpush1.bf16.msra.mxu0 %v82
  %103 = vmatprep.subr.bf16.mxu0 0
  %104 = vmatpush1.bf16.msra.mxu0 %v83
  %105 = vmatprep.subr.bf16.mxu0 0
  %106 = vmatpush1.bf16.msra.mxu0 %v84
  %107 = vmatprep.subr.bf16.mxu0 0
  %108 = vmatpush1.bf16.msra.mxu0 %v85
  %109 = vmatprep.subr.bf16.mxu0 0
  %110 = vmatpush1.bf16.msra.mxu0 %v86
  %111 = vmatprep.subr.bf16.mxu0 0
  %112 = vmatpush1.bf16.msra.mxu0 0
  %113 = vmatprep.subr.bf16.mxu0 0
  %114 = vmatpush1.bf16.msra.mxu0 0
  %115 = vmatprep.subr.bf16.mxu0 0
  %116 = vmatpush1.bf16.msra.mxu0 0
  %117 = vmatprep.subr.bf16.mxu0 0
  %118 = vmatpush1.bf16.msra.mxu0 0
  %119 = vmatprep.subr.bf16.mxu0 0
  %120 = vmatpush1.bf16.msra.mxu0 0
  %121 = vmatprep.subr.bf16.mxu0 0
  %122 = vmatpush1.bf16.msra.mxu0 0
  %123 = vmatprep.subr.bf16.mxu0 0
  %124 = vmatpush1.bf16.msra.mxu0 0
  %125 = vmatprep.subr.bf16.mxu0 0
  %126 = vmatpush1.bf16.msra.mxu0 0
  %127 = vmatprep.mubr.bf16.mxu0 0
  %128 = vmatmul.mubr.bf16.gmra.mrb[0].mxu0 %v45
  %v129 = vpop.f32.mrb[0].mxu0
  %v130 = vadd.f32 0.0, %v129
  %v131 = vpop.f32.mrb[0].mxu0
  %v132 = vpop.f32.mrb[0].mxu0
  %v133 = vadd.f32 0.0, %v132
  %v134 = vpop.f32.mrb[0].mxu0
  %135 = vdwg.mxu0
  %v136 = vadd.f32 %v21, %v130
  %v137 = vadd.f32 %v22, %v133
  %138 = vst [vmem:[#allocation2] sm:$0xff] %v136
  %139 = vst [vmem:[#allocation2 + $0x8] sm:$0xff] %v137
  // Predicated region
  $region18: #{transformer_forward.25} parent=0 // pred_check
    %p140 = pneg %p15
  $region19: #{transformer_forward.25} parent=0 // pred_check_branch
    %142 = sbr.rel (%p140) target = $region21
  $region20: #{transformer_forward.25} parent=0 // pred_region
    %v143 = vld [vmem:[#allocation2] sm:$0xff]
    %v144 = vld [vmem:[#allocation2 + $0x8] sm:$0xff]
    %v145 = vld [vmem:[%s2] sm:$0x1]
    %v147 = vlaneseq
    %v148 = vshrl.u32 %v147, 7
    %v149 = vsub.s32 0, %v148
    %v150 = vrot.slane %v145, %v149
    %v152 = vadd.f32 %v143, %v150
    %v153 = vadd.f32 %v144, %v150
    %154 = vst [vmem:[%s3] sm:$0xff] %v152
    %155 = vst [vmem:[%s3 + $0x8] sm:$0xff] %v153
  $region21: #{transformer_forward.25} parent=0 // pred_fallthru
    _
  // Predicated region
  $region22: #{transformer_forward.25} parent=0 // pred_check
    _
  $region23: #{transformer_forward.25} parent=0 // pred_check_branch
    %157 = sbr.rel (0) target = $region25
  $region24: #{transformer_forward.25} parent=0 // pred_region
    _
  $region25: #{transformer_forward.25} parent=0 // pred_fallthru
    _
  // Predicated region
  $region26: #{transformer_forward.25} parent=0 // pred_check
    _
  $region27: #{transformer_forward.25} parent=0 // pred_check_branch
    %159 = sbr.rel (0) target = $region29
  $region28: #{transformer_forward.25} parent=0 // pred_region
    _
  $region29: #{transformer_forward.25} parent=0 // pred_fallthru
    _

// kernel: transformer_forward.26
$region0: #{transformer_forward.26}
  #allocation0 [shape = 'u32[]', space=smem, size = 0x4, offset = 0x4, fixed_abs, tag = 'smem constant byte address 0x4 - core index']
  #allocation1 [shape = 'u32[144,128]{1,0:T(1,128)}', space=vmem, size = 0x12000, scoped, tag = 'internal scratch']
  #allocation2 [shape = 'f32[16,128]{1,0:T(8,128)}', space=vmem, size = 0x2000, scoped, tag = 'scratch operand']
  %s0 = inlined_call_operand.vmem [shape: bf16[16,128], index: 0, kind: input, shape index: {}]
  %s1 = inlined_call_operand.vmem [shape: bf16[128,128], index: 1, kind: input, shape index: {}]
  %s2 = inlined_call_operand.vmem [shape: f32[1,128], index: 2, kind: input, shape index: {}]
  %s3 = inlined_call_operand.vmem [shape: bf16[16,128], index: 3, kind: output, shape index: {}]
  %s4 = sld [smem:[#allocation0]]
  $region30: #{transformer_forward.26} parent=0
    _
  %s6 = ssub.s32 1, %s4
  %s7 = scalar_select 0, %s6, %s4
  // Predicated region
  $region2: #{transformer_forward.26} parent=0 // pred_check
    _
  $region3: #{transformer_forward.26} parent=0 // pred_check_branch
    %9 = sbr.rel (0) target = $region5
  $region4: #{transformer_forward.26} parent=0 // pred_region
    _
  $region5: #{transformer_forward.26} parent=0 // pred_fallthru
    _
  // Predicated region
  $region6: #{transformer_forward.26} parent=0 // pred_check
    _
  $region7: #{transformer_forward.26} parent=0 // pred_check_branch
    %11 = sbr.rel (0) target = $region9
  $region8: #{transformer_forward.26} parent=0 // pred_region
    _
  $region9: #{transformer_forward.26} parent=0 // pred_fallthru
    _
  // Predicated region
  $region10: #{transformer_forward.26} parent=0 // pred_check
    _
  $region11: #{transformer_forward.26} parent=0 // pred_check_branch
    %13 = sbr.rel (0) target = $region13
  $region12: #{transformer_forward.26} parent=0 // pred_region
    _
  $region13: #{transformer_forward.26} parent=0 // pred_fallthru
    _
  %p15 = scmp.eq.s32.totalorder 0, 0
  // Predicated region
  $region14: #{transformer_forward.26} parent=0 // pred_check
    %p16 = pneg %p15
  $region15: #{transformer_forward.26} parent=0 // pred_check_branch
    %18 = sbr.rel (%p16) target = $region17
  $region16: #{transformer_forward.26} parent=0 // pred_region
    %19 = vst [vmem:[#allocation2] sm:$0xff] 0.0
    %20 = vst [vmem:[#allocation2 + $0x8] sm:$0xff] 0.0
  $region17: #{transformer_forward.26} parent=0 // pred_fallthru
    _
  %v21 = vld [vmem:[#allocation2] sm:$0xff]
  %v22 = vld [vmem:[#allocation2 + $0x8] sm:$0xff]
  %v23 = vld [vmem:[%s0] sm:$0xf]
  %v24 = vld [vmem:[%s0 + $0x4] sm:$0xf]
  %v25 = vld [vmem:[%s1] sm:$0xf]
  %v26 = vld [vmem:[%s1 + $0x4] sm:$0xf]
  %v27 = vld [vmem:[%s1 + $0x8] sm:$0xf]
  %v28 = vld [vmem:[%s1 + $0xc] sm:$0xf]
  %v29 = vld [vmem:[%s1 + $0x10] sm:$0xf]
  %v30 = vld [vmem:[%s1 + $0x14] sm:$0xf]
  %v31 = vld [vmem:[%s1 + $0x18] sm:$0xf]
  %v32 = vld [vmem:[%s1 + $0x1c] sm:$0xf]
  %v33 = vld [vmem:[%s1 + $0x20] sm:$0xf]
  %v34 = vld [vmem:[%s1 + $0x24] sm:$0xf]
  %v35 = vld [vmem:[%s1 + $0x28] sm:$0xf]
  %v36 = vld [vmem:[%s1 + $0x2c] sm:$0xf]
  %v37 = vld [vmem:[%s1 + $0x30] sm:$0xf]
  %v38 = vld [vmem:[%s1 + $0x34] sm:$0xf]
  %v39 = vld [vmem:[%s1 + $0x38] sm:$0xf]
  %v40 = vld [vmem:[%s1 + $0x3c] sm:$0xf]
  %v43 = vunpack.c.l.b16 %v23
  %v44 = vunpack.c.l.b16 %v24
  %v45 = vpack.c.b16 %v44, %v43
  %v63 = vunpack.c.l.b16 %v25
  %v64 = vunpack.c.l.b16 %v26
  %v65 = vunpack.c.l.b16 %v27
  %v66 = vunpack.c.l.b16 %v28
  %v67 = vunpack.c.l.b16 %v29
  %v68 = vunpack.c.l.b16 %v30
  %v69 = vunpack.c.l.b16 %v31
  %v70 = vunpack.c.l.b16 %v32
  %v71 = vunpack.c.l.b16 %v33
  %v72 = vunpack.c.l.b16 %v34
  %v73 = vunpack.c.l.b16 %v35
  %v74 = vunpack.c.l.b16 %v36
  %v75 = vunpack.c.l.b16 %v37
  %v76 = vunpack.c.l.b16 %v38
  %v77 = vunpack.c.l.b16 %v39
  %v78 = vunpack.c.l.b16 %v40
  %v79 = vpack.c.b16 %v64, %v63
  %v80 = vpack.c.b16 %v66, %v65
  %v81 = vpack.c.b16 %v68, %v67
  %v82 = vpack.c.b16 %v70, %v69
  %v83 = vpack.c.b16 %v72, %v71
  %v84 = vpack.c.b16 %v74, %v73
  %v85 = vpack.c.b16 %v76, %v75
  %v86 = vpack.c.b16 %v78, %v77
  %95 = vmatprep.subr.bf16.mxu0 0
  %96 = vmatpush1.bf16.msra.mxu0 %v79
  %97 = vmatprep.subr.bf16.mxu0 0
  %98 = vmatpush1.bf16.msra.mxu0 %v80
  %99 = vmatprep.subr.bf16.mxu0 0
  %100 = vmatpush1.bf16.msra.mxu0 %v81
  %101 = vmatprep.subr.bf16.mxu0 0
  %102 = vmatpush1.bf16.msra.mxu0 %v82
  %103 = vmatprep.subr.bf16.mxu0 0
  %104 = vmatpush1.bf16.msra.mxu0 %v83
  %105 = vmatprep.subr.bf16.mxu0 0
  %106 = vmatpush1.bf16.msra.mxu0 %v84
  %107 = vmatprep.subr.bf16.mxu0 0
  %108 = vmatpush1.bf16.msra.mxu0 %v85
  %109 = vmatprep.subr.bf16.mxu0 0
  %110 = vmatpush1.bf16.msra.mxu0 %v86
  %111 = vmatprep.subr.bf16.mxu0 0
  %112 = vmatpush1.bf16.msra.mxu0 0
  %113 = vmatprep.subr.bf16.mxu0 0
  %114 = vmatpush1.bf16.msra.mxu0 0
  %115 = vmatprep.subr.bf16.mxu0 0
  %116 = vmatpush1.bf16.msra.mxu0 0
  %117 = vmatprep.subr.bf16.mxu0 0
  %118 = vmatpush1.bf16.msra.mxu0 0
  %119 = vmatprep.subr.bf16.mxu0 0
  %120 = vmatpush1.bf16.msra.mxu0 0
  %121 = vmatprep.subr.bf16.mxu0 0
  %122 = vmatpush1.bf16.msra.mxu0 0
  %123 = vmatprep.subr.bf16.mxu0 0
  %124 = vmatpush1.bf16.msra.mxu0 0
  %125 = vmatprep.subr.bf16.mxu0 0
  %126 = vmatpush1.bf16.msra.mxu0 0
  %127 = vmatprep.mubr.bf16.mxu0 0
  %128 = vmatmul.mubr.bf16.gmra.mrb[0].mxu0 %v45
  %v129 = vpop.f32.mrb[0].mxu0
  %v130 = vadd.f32 0.0, %v129
  %v131 = vpop.f32.mrb[0].mxu0
  %v132 = vpop.f32.mrb[0].mxu0
  %v133 = vadd.f32 0.0, %v132
  %v134 = vpop.f32.mrb[0].mxu0
  %135 = vdwg.mxu0
  %v136 = vadd.f32 %v21, %v130
  %v137 = vadd.f32 %v22, %v133
  %138 = vst [vmem:[#allocation2] sm:$0xff] %v136
  %139 = vst [vmem:[#allocation2 + $0x8] sm:$0xff] %v137
  // Predicated region
  $region18: #{transformer_forward.26} parent=0 // pred_check
    %p140 = pneg %p15
  $region19: #{transformer_forward.26} parent=0 // pred_check_branch
    %142 = sbr.rel (%p140) target = $region21
  $region20: #{transformer_forward.26} parent=0 // pred_region
    %v143 = vld [vmem:[#allocation2] sm:$0xff]
    %v144 = vld [vmem:[#allocation2 + $0x8] sm:$0xff]
    %v145 = vld [vmem:[%s2] sm:$0x1]
    %v147 = vlaneseq
    %v148 = vshrl.u32 %v147, 7
    %v149 = vsub.s32 0, %v148
    %v150 = vrot.slane %v145, %v149
    %v152 = vadd.f32 %v143, %v150
    %v153 = vadd.f32 %v144, %v150
    %v154 = vpack.c.bf16 %v153, %v152
    %v156 = vunpack.c.l.b16 %v154
    %v157 = vunpack.c.h.b16 %v154
    %v158 = vpack.c.b16 %v156, %v156
    %v159 = vpack.c.b16 %v157, %v157
    %162 = vst [vmem:[%s3] sm:$0xf] %v158
    %163 = vst [vmem:[%s3 + $0x4] sm:$0xf] %v159
  $region21: #{transformer_forward.26} parent=0 // pred_fallthru
    _
  // Predicated region
  $region22: #{transformer_forward.26} parent=0 // pred_check
    _
  $region23: #{transformer_forward.26} parent=0 // pred_check_branch
    %165 = sbr.rel (0) target = $region25
  $region24: #{transformer_forward.26} parent=0 // pred_region
    _
  $region25: #{transformer_forward.26} parent=0 // pred_fallthru
    _
  // Predicated region
  $region26: #{transformer_forward.26} parent=0 // pred_check
    _
  $region27: #{transformer_forward.26} parent=0 // pred_check_branch
    %167 = sbr.rel (0) target = $region29
  $region28: #{transformer_forward.26} parent=0 // pred_region
    _
  $region29: #{transformer_forward.26} parent=0 // pred_fallthru
    _

// kernel: transformer_forward.27
$region0: #{transformer_forward.27}
  #allocation0 [shape = 'u32[]', space=smem, size = 0x4, offset = 0x4, fixed_abs, tag = 'smem constant byte address 0x4 - core index']
  #allocation1 [shape = 'u32[144,128]{1,0:T(1,128)}', space=vmem, size = 0x12000, scoped, tag = 'internal scratch']
  #allocation2 [shape = 'f32[8,1]{1,0:T(8,128)}', space=vmem, size = 0x1000, scoped, tag = 'scratch operand']
  #allocation3 [shape = 'f32[8,1]{1,0:T(8,128)}', space=vmem, size = 0x1000, scoped, tag = 'scratch operand']
  #allocation4 [shape = 'f32[8,8]{1,0:T(8,128)}', space=vmem, size = 0x1000, scoped, tag = 'scratch operand']
  %s0 = inlined_call_operand.vmem [shape: bf16[8,8,8], index: 0, kind: input, shape index: {}]
  %s1 = inlined_call_operand.vmem [shape: bf16[8,8,8], index: 1, kind: input, shape index: {}]
  %s2 = inlined_call_operand.vmem [shape: bf16[8,8,8], index: 2, kind: input, shape index: {}]
  %s3 = inlined_call_operand.vmem [shape: bf16[8,8,8], index: 3, kind: output, shape index: {}]
  %s4 = sld [smem:[#allocation0]]
  $region53: #{transformer_forward.27} parent=0
    _
  %s6 = ssub.s32 1, %s4
  %s7 = scalar_select 0, %s6, %s4
  loop: start=0, step=1, limit=10
  $region2: #{transformer_forward.27} parent=0 // loop_pre_header
    _
  $region3: #{transformer_forward.27} parent=0 // loop_header
    %s9 = sphi 0, %s13
    %p10 = scmp.ge.s32.totalorder %s9, 10
    %s16 = sphi 0, %s35
    %s17 = sphi 0, %s31
    %s18 = sphi 0, %s27
    %s19 = sphi 0, %s16
    %s20 = sphi 0, %s17
    %s21 = sphi 0, %s18
    %s22 = sphi 0, %s19
    %s23 = sphi 0, %s20
    %s24 = sphi 0, %s21
    %s40 = sphi 0, %s42
    %s43 = sphi 0, %s40
    %s44 = sphi 0, %s43
    %s60 = sphi 0, %s44
    %s68 = sphi 0, %s70
    %s71 = sphi 0, %s68
    %s72 = sphi 0, %s71
    %s88 = sphi 0, %s72
    %s96 = sphi 0, %s98
    %s99 = sphi 0, %s96
    %s100 = sphi 0, %s99
    %s116 = sphi 0, %s100
    %s124 = sphi 0, %s126
    %s127 = sphi 0, %s124
    %s128 = sphi 0, %s127
    %s144 = sphi 0, %s128
  $region4: #{transformer_forward.27} parent=0 // loop_header_branch
    %12 = sbr.rel (%p10) target = $region8
  $region5: #{transformer_forward.27} parent=0 // loop_body
    %s14 = ssub.s32 %s9, 1
    %s15 = ssub.s32 %s9, 2
    %s25 = sadd.s32 1, %s18
    %p26 = scmp.ge.s32.totalorder %s25, 1
    %s27 = scalar_select %p26, 0, %s25
    %s28 = sadd.s32 1, %s17
    %s29 = scalar_select %p26, %s28, %s17
    %p30 = scmp.ge.s32.totalorder %s29, 1
    %s31 = scalar_select %p30, 0, %s29
    %s32 = sadd.s32 1, %s16
    %s33 = scalar_select %p30, %s32, %s16
    %p34 = scmp.ge.s32.totalorder %s33, 8
    %s35 = scalar_select %p34, 0, %s33
    %s36 = ssub.s32 %s16, %s35
    %s37 = ssub.s32 %s17, %s31
    %s38 = sor.u32 %s36, %s37
    %p39 = scmp.eq.s32.totalorder %s38, 0
    %s41 = sadd.s32 %s40, 1
    %s42 = scalar_select %p39, %s40, %s41
    %p45 = pneg %p39
    %p46 = scmp.eq.s32.totalorder %s9, 7
    %p47 = por %p45, %p46
    %p48 = scmp.ne.s32.totalorder %s40, %s43
    %p49 = scmp.eq.s32.totalorder %s9, 0
    %p50 = por %p48, %p49
    %p51 = scmp.ne.s32.totalorder %s40, %s43
    %p52 = scmp.eq.s32.totalorder %s14, 7
    %p53 = por %p51, %p52
    %p54 = scmp.ne.s32.totalorder %s43, %s44
    %p55 = scmp.eq.s32.totalorder %s14, 0
    %p56 = por %p54, %p55
    %p57 = scmp.ne.s32.totalorder %s43, %s44
    %p58 = scmp.eq.s32.totalorder %s15, 7
    %p59 = por %p57, %p58
    %p61 = scmp.ne.s32.totalorder %s44, %s60
    %p62 = scmp.eq.s32.totalorder %s15, 0
    %p63 = por %p61, %p62
    %s64 = ssub.s32 %s16, %s35
    %s65 = ssub.s32 %s18, %s27
    %s66 = sor.u32 %s64, %s65
    %p67 = scmp.eq.s32.totalorder %s66, 0
    %s69 = sadd.s32 %s68, 1
    %s70 = scalar_select %p67, %s68, %s69
    %p73 = pneg %p67
    %p74 = scmp.eq.s32.totalorder %s9, 7
    %p75 = por %p73, %p74
    %p76 = scmp.ne.s32.totalorder %s68, %s71
    %p77 = scmp.eq.s32.totalorder %s9, 0
    %p78 = por %p76, %p77
    %p79 = scmp.ne.s32.totalorder %s68, %s71
    %p80 = scmp.eq.s32.totalorder %s14, 7
    %p81 = por %p79, %p80
    %p82 = scmp.ne.s32.totalorder %s71, %s72
    %p83 = scmp.eq.s32.totalorder %s14, 0
    %p84 = por %p82, %p83
    %p85 = scmp.ne.s32.totalorder %s71, %s72
    %p86 = scmp.eq.s32.totalorder %s15, 7
    %p87 = por %p85, %p86
    %p89 = scmp.ne.s32.totalorder %s72, %s88
    %p90 = scmp.eq.s32.totalorder %s15, 0
    %p91 = por %p89, %p90
    %s92 = ssub.s32 %s16, %s35
    %s93 = ssub.s32 %s18, %s27
    %s94 = sor.u32 %s92, %s93
    %p95 = scmp.eq.s32.totalorder %s94, 0
    %s97 = sadd.s32 %s96, 1
    %s98 = scalar_select %p95, %s96, %s97
    %p101 = pneg %p95
    %p102 = scmp.eq.s32.totalorder %s9, 7
    %p103 = por %p101, %p102
    %p104 = scmp.ne.s32.totalorder %s96, %s99
    %p105 = scmp.eq.s32.totalorder %s9, 0
    %p106 = por %p104, %p105
    %p107 = scmp.ne.s32.totalorder %s96, %s99
    %p108 = scmp.eq.s32.totalorder %s14, 7
    %p109 = por %p107, %p108
    %p110 = scmp.ne.s32.totalorder %s99, %s100
    %p111 = scmp.eq.s32.totalorder %s14, 0
    %p112 = por %p110, %p111
    %p113 = scmp.ne.s32.totalorder %s99, %s100
    %p114 = scmp.eq.s32.totalorder %s15, 7
    %p115 = por %p113, %p114
    %p117 = scmp.ne.s32.totalorder %s100, %s116
    %p118 = scmp.eq.s32.totalorder %s15, 0
    %p119 = por %p117, %p118
    %s120 = ssub.s32 %s16, %s35
    %s121 = ssub.s32 %s17, %s31
    %s122 = sor.u32 %s120, %s121
    %p123 = scmp.eq.s32.totalorder %s122, 0
    %s125 = sadd.s32 %s124, 1
    %s126 = scalar_select %p123, %s124, %s125
    %p129 = pneg %p123
    %p130 = scmp.eq.s32.totalorder %s9, 7
    %p131 = por %p129, %p130
    %p132 = scmp.ne.s32.totalorder %s124, %s127
    %p133 = scmp.eq.s32.totalorder %s9, 0
    %p134 = por %p132, %p133
    %p135 = scmp.ne.s32.totalorder %s124, %s127
    %p136 = scmp.eq.s32.totalorder %s14, 7
    %p137 = por %p135, %p136
    %p138 = scmp.ne.s32.totalorder %s127, %s128
    %p139 = scmp.eq.s32.totalorder %s14, 0
    %p140 = por %p138, %p139
    %p141 = scmp.ne.s32.totalorder %s127, %s128
    %p142 = scmp.eq.s32.totalorder %s15, 7
    %p143 = por %p141, %p142
    %p145 = scmp.ne.s32.totalorder %s128, %s144
    %p146 = scmp.eq.s32.totalorder %s15, 0
    %p147 = por %p145, %p146
    %p148 = scmp.le.s32.totalorder 1, %s9
    %p149 = scmp.lt.s32.totalorder %s9, 9
    %p150 = pnand %p148, %p149
    %p151 = pneg %p150
    // Predicated region
    $region9: #{transformer_forward.27} parent=5 // pred_check
      _
    $region10: #{transformer_forward.27} parent=5 // pred_check_branch
      %153 = sbr.rel (%p150) target = $region12
    $region11: #{transformer_forward.27} parent=5 // pred_region
      %s154 = ssub.s32 %s9, 1
    $region12: #{transformer_forward.27} parent=5 // pred_fallthru
      _
    %p155 = scmp.lt.s32.totalorder %s9, 8
    // Predicated region
    $region13: #{transformer_forward.27} parent=5 // pred_check
      %p156 = pneg %p155
    $region14: #{transformer_forward.27} parent=5 // pred_check_branch
      %158 = sbr.rel (%p156) target = $region16
    $region15: #{transformer_forward.27} parent=5 // pred_region
      // Predicated region
      $region17: #{transformer_forward.27} parent=15 // pred_check
        %p159 = pneg %p50
      $region18: #{transformer_forward.27} parent=15 // pred_check_branch
        %161 = sbr.rel (%p159) target = $region20
      $region19: #{transformer_forward.27} parent=15 // pred_region
        %p162 = scmp.lt.s32.totalorder %s16, 7
        %s163 = scalar_select %p162, %s16, 7
        %p164 = scmp.lt.s32.totalorder %s17, 0
        %s165 = scalar_select %p164, %s17, 0
        %s166 = sadd.s32 %s165, %s163
        %s167 = smul.addr %s166, 4
        %s168 = scalar_lea.vmem %s0, %s167
      $region20: #{transformer_forward.27} parent=15 // pred_fallthru
        _
      // Predicated region
      $region21: #{transformer_forward.27} parent=15 // pred_check
        %p169 = pneg %p78
      $region22: #{transformer_forward.27} parent=15 // pred_check_branch
        %171 = sbr.rel (%p169) target = $region24
      $region23: #{transformer_forward.27} parent=15 // pred_region
        %p172 = scmp.lt.s32.totalorder %s16, 7
        %s173 = scalar_select %p172, %s16, 7
        %p174 = scmp.lt.s32.totalorder %s18, 0
        %s175 = scalar_select %p174, %s18, 0
        %s176 = sadd.s32 %s175, %s173
        %s177 = smul.addr %s176, 4
        %s178 = scalar_lea.vmem %s1, %s177
      $region24: #{transformer_forward.27} parent=15 // pred_fallthru
        _
      // Predicated region
      $region25: #{transformer_forward.27} parent=15 // pred_check
        %p179 = pneg %p106
      $region26: #{transformer_forward.27} parent=15 // pred_check_branch
        %181 = sbr.rel (%p179) target = $region28
      $region27: #{transformer_forward.27} parent=15 // pred_region
        %p182 = scmp.lt.s32.totalorder %s16, 7
        %s183 = scalar_select %p182, %s16, 7
        %p184 = scmp.lt.s32.totalorder %s18, 0
        %s185 = scalar_select %p184, %s18, 0
        %s186 = sadd.s32 %s185, %s183
        %s187 = smul.addr %s186, 4
        %s188 = scalar_lea.vmem %s2, %s187
      $region28: #{transformer_forward.27} parent=15 // pred_fallthru
        _
    $region16: #{transformer_forward.27} parent=5 // pred_fallthru
      _
    %p189 = scmp.le.s32.totalorder 1, %s9
    %p190 = scmp.lt.s32.totalorder %s9, 9
    %p191 = pnand %p189, %p190
    %p192 = pneg %p191
    // Predicated region
    $region29: #{transformer_forward.27} parent=5 // pred_check
      _
    $region30: #{transformer_forward.27} parent=5 // pred_check_branch
      %194 = sbr.rel (%p191) target = $region32
    $region31: #{transformer_forward.27} parent=5 // pred_region
      %s195 = ssub.s32 %s9, 1
      %p196 = scmp.lt.s32.totalorder %s19, 7
      %s197 = scalar_select %p196, %s19, 7
      %p198 = scmp.lt.s32.totalorder %s20, 0
      %s199 = scalar_select %p198, %s20, 0
      %s200 = sadd.s32 %s199, %s197
      %s201 = smul.addr %s200, 4
      %s202 = scalar_lea.vmem %s0, %s201
      %p203 = pneg %p56
      %p204 = pneg %p53
      %p205 = scmp.lt.s32.totalorder %s19, 7
      %s206 = scalar_select %p205, %s19, 7
      %p207 = scmp.lt.s32.totalorder %s21, 0
      %s208 = scalar_select %p207, %s21, 0
      %s209 = sadd.s32 %s208, %s206
      %s210 = smul.addr %s209, 4
      %s211 = scalar_lea.vmem %s1, %s210
      %p212 = pneg %p84
      %p213 = pneg %p81
      %p214 = scmp.lt.s32.totalorder %s19, 7
      %s215 = scalar_select %p214, %s19, 7
      %p216 = scmp.lt.s32.totalorder %s21, 0
      %s217 = scalar_select %p216, %s21, 0
      %s218 = sadd.s32 %s217, %s215
      %s219 = smul.addr %s218, 4
      %s220 = scalar_lea.vmem %s2, %s219
      %p221 = pneg %p112
      %p222 = pneg %p109
      %p223 = pneg %p140
      %p224 = pneg %p137
      %p225 = scmp.lt.s32.totalorder %s19, 7
      %s226 = scalar_select %p225, %s19, 7
      %p227 = scmp.lt.s32.totalorder %s20, 0
      %s228 = scalar_select %p227, %s20, 0
      %s229 = sadd.s32 %s228, %s226
      %s230 = smul.addr %s229, 4
      %s231 = scalar_lea.vmem %s3, %s230
      %p232 = scmp.lt.s32.totalorder %s19, 7
      %s233 = scalar_select %p232, %s19, 7
      %p234 = scmp.lt.s32.totalorder %s20, 0
      %s235 = scalar_select %p234, %s20, 0
      %s236 = sadd.s32 %s235, %s233
      %s237 = smul.addr %s236, 4
      %s238 = scalar_lea.vmem %s0, %s237
      %p239 = scmp.lt.s32.totalorder %s19, 7
      %s240 = scalar_select %p239, %s19, 7
      %p241 = scmp.lt.s32.totalorder %s21, 0
      %s242 = scalar_select %p241, %s21, 0
      %s243 = sadd.s32 %s242, %s240
      %s244 = smul.addr %s243, 4
      %s245 = scalar_lea.vmem %s1, %s244
      %p246 = scmp.lt.s32.totalorder %s19, 7
      %s247 = scalar_select %p246, %s19, 7
      %p248 = scmp.lt.s32.totalorder %s21, 0
      %s249 = scalar_select %p248, %s21, 0
      %s250 = sadd.s32 %s249, %s247
      %s251 = smul.addr %s250, 4
      %s252 = scalar_lea.vmem %s2, %s251
      %p253 = scmp.lt.s32.totalorder %s19, 7
      %s254 = scalar_select %p253, %s19, 7
      %p255 = scmp.lt.s32.totalorder %s20, 0
      %s256 = scalar_select %p255, %s20, 0
      %s257 = sadd.s32 %s256, %s254
      %s258 = smul.addr %s257, 4
      %s259 = scalar_lea.vmem %s3, %s258
      %p261 = scmp.eq.s32.totalorder %s21, 0
      // Predicated region
      $region33: #{transformer_forward.27} parent=31 // pred_check
        %p262 = pneg %p261
      $region34: #{transformer_forward.27} parent=31 // pred_check_branch
        %264 = sbr.rel (%p262) target = $region36
      $region35: #{transformer_forward.27} parent=31 // pred_region
        %vm265 = vcmask 7168
        %266 = vst.msk [vmem:[#allocation2] sm:$0xff] %vm265, -1e+30
        %267 = vst.msk [vmem:[#allocation3] sm:$0xff] %vm265, 0.0
        %vm268 = vcmask 64512
        %269 = vst.msk [vmem:[#allocation4] sm:$0xff] %vm268, 0.0
      $region36: #{transformer_forward.27} parent=31 // pred_fallthru
        _
      %v270 = vld [vmem:[%s238] sm:$0xf]
      %v271 = vld [vmem:[%s245] sm:$0xf]
      %v272 = vld [vmem:[%s252] sm:$0xf]
      %vm273 = vcmask 64512
      %v275 = vsel %vm273, %v270, 0
      %v278 = vsel %vm273, %v271, 0
      %280 = vmatprep.subr.bf16.mxu0 0
      %281 = vmatpush1.bf16.xpose.msra.mxu0 %v278
      %282 = vmatprep.subr.bf16.mxu0 0
      %283 = vmatpush1.bf16.xpose.msra.mxu0 0
      %284 = vmatprep.subr.bf16.mxu0 0
      %285 = vmatpush1.bf16.xpose.msra.mxu0 0
      %286 = vmatprep.subr.bf16.mxu0 0
      %287 = vmatpush1.bf16.xpose.msra.mxu0 0
      %288 = vmatprep.subr.bf16.mxu0 0
      %289 = vmatpush1.bf16.xpose.msra.mxu0 0
      %290 = vmatprep.subr.bf16.mxu0 0
      %291 = vmatpush1.bf16.xpose.msra.mxu0 0
      %292 = vmatprep.subr.bf16.mxu0 0
      %293 = vmatpush1.bf16.xpose.msra.mxu0 0
      %294 = vmatprep.subr.bf16.mxu0 0
      %295 = vmatpush1.bf16.xpose.msra.mxu0 0
      %296 = vmatprep.subr.bf16.mxu0 0
      %297 = vmatpush1.bf16.xpose.msra.mxu0 0
      %298 = vmatprep.subr.bf16.mxu0 0
      %299 = vmatpush1.bf16.xpose.msra.mxu0 0
      %300 = vmatprep.subr.bf16.mxu0 0
      %301 = vmatpush1.bf16.xpose.msra.mxu0 0
      %302 = vmatprep.subr.bf16.mxu0 0
      %303 = vmatpush1.bf16.xpose.msra.mxu0 0
      %304 = vmatprep.subr.bf16.mxu0 0
      %305 = vmatpush1.bf16.xpose.msra.mxu0 0
      %306 = vmatprep.subr.bf16.mxu0 0
      %307 = vmatpush1.bf16.xpose.msra.mxu0 0
      %308 = vmatprep.subr.bf16.mxu0 0
      %309 = vmatpush1.bf16.xpose.msra.mxu0 0
      %310 = vmatprep.subr.bf16.mxu0 0
      %311 = vmatpush1.bf16.xpose.msra.mxu0 0
      %312 = vmatprep.mubr.bf16.mxu0 0
      %313 = vmatmul.mubr.bf16.gmra.mrb[0].mxu0 %v275
      %v314 = vpop.f32.mrb[0].mxu0
      %v315 = vadd.f32 0.0, %v314
      %v316 = vpop.f32.mrb[0].mxu0
      %v317 = vpop.f32.mrb[0].mxu0
      %v318 = vpop.f32.mrb[0].mxu0
      %319 = vdwg.mxu0
      %s320 = smul.u32 %s21, 8
      %v321 = vlaneseq
      %v322 = vand.u32 %v321, 127
      %v323 = vstv %s320
      %v324 = vadd.s32 %v323, %v322
      %vm325 = vcmp.lt.s32.totalorder %v324, 7
      %v326 = vsel %vm325, %v315, -1e+30
      %v327 = vld [vmem:[#allocation2] sm:$0xff]
      %v328 = vsel %vm273, %v326, -inf
      %329 = vmax.xlane.f32.xlu0 %v328
      %v330 = vpop.xlane.xlu0 %329
      %v331 = vmax.f32 %v327, %v330
      %v332 = vsub.f32 %v327, %v331
      %v333 = vmul.f32 %v332, 1.442695
      %v334 = vpow.pop %v333
      %336 = vset.pattern.permute.xlu0 0
      %337 = vperm.xlu0 %336, %v331
      %v338 = vpop.permute.xlu0 %337
      %v340 = vsub.f32 %v326, %v338
      %v341 = vmul.f32 %v340, 1.442695
      %v342 = vpow.pop %v341
      %v343 = vld [vmem:[#allocation3] sm:$0xff]
      %v344 = vmul.f32 %v334, %v343
      %v345 = vsel %vm273, %v342, 0.0
      %346 = vadd.xlane.f32.xlu0 %v345
      %v347 = vpop.xlane.xlu0 %346
      %v348 = vadd.f32 %v344, %v347
      %vm349 = vcmask 7168
      %350 = vst.msk [vmem:[#allocation3] sm:$0xff] %vm349, %v348
      %v351 = vld [vmem:[#allocation4] sm:$0xff]
      %353 = vset.pattern.permute.xlu0 0
      %354 = vperm.xlu0 %353, %v334
      %v355 = vpop.permute.xlu0 %354
      %v357 = vmul.f32 %v355, %v351
      %v358 = vpack.c.bf16 %v342, %v342
      %v360 = vsel %vm273, %v358, 0
      %vm362 = vcmask 1043456
      %v364 = vsel %vm362, %v272, 0
      %366 = vmatprep.subr.bf16.mxu0 0
      %367 = vmatpush1.bf16.msra.mxu0 %v364
      %368 = vmatprep.subr.bf16.mxu0 0
      %369 = vmatpush1.bf16.msra.mxu0 0
      %370 = vmatprep.subr.bf16.mxu0 0
      %371 = vmatpush1.bf16.msra.mxu0 0
      %372 = vmatprep.subr.bf16.mxu0 0
      %373 = vmatpush1.bf16.msra.mxu0 0
      %374 = vmatprep.subr.bf16.mxu0 0
      %375 = vmatpush1.bf16.msra.mxu0 0
      %376 = vmatprep.subr.bf16.mxu0 0
      %377 = vmatpush1.bf16.msra.mxu0 0
      %378 = vmatprep.subr.bf16.mxu0 0
      %379 = vmatpush1.bf16.msra.mxu0 0
      %380 = vmatprep.subr.bf16.mxu0 0
      %381 = vmatpush1.bf16.msra.mxu0 0
      %382 = vmatprep.subr.bf16.mxu0 0
      %383 = vmatpush1.bf16.msra.mxu0 0
      %384 = vmatprep.subr.bf16.mxu0 0
      %385 = vmatpush1.bf16.msra.mxu0 0
      %386 = vmatprep.subr.bf16.mxu0 0
      %387 = vmatpush1.bf16.msra.mxu0 0
      %388 = vmatprep.subr.bf16.mxu0 0
      %389 = vmatpush1.bf16.msra.mxu0 0
      %390 = vmatprep.subr.bf16.mxu0 0
      %391 = vmatpush1.bf16.msra.mxu0 0
      %392 = vmatprep.subr.bf16.mxu0 0
      %393 = vmatpush1.bf16.msra.mxu0 0
      %394 = vmatprep.subr.bf16.mxu0 0
      %395 = vmatpush1.bf16.msra.mxu0 0
      %396 = vmatprep.subr.bf16.mxu0 0
      %397 = vmatpush1.bf16.msra.mxu0 0
      %398 = vmatprep.mubr.bf16.mxu0 0
      %399 = vmatmul.mubr.bf16.gmra.mrb[0].mxu0 %v360
      %v400 = vpop.f32.mrb[0].mxu0
      %v401 = vadd.f32 0.0, %v400
      %v402 = vpop.f32.mrb[0].mxu0
      %v403 = vpop.f32.mrb[0].mxu0
      %v404 = vpop.f32.mrb[0].mxu0
      %405 = vdwg.mxu0
      %v406 = vadd.f32 %v357, %v401
      %407 = vst.msk [vmem:[#allocation4] sm:$0xff] %vm273, %v406
      %408 = vst.msk [vmem:[#allocation2] sm:$0xff] %vm349, %v331
      // Predicated region
      $region37: #{transformer_forward.27} parent=31 // pred_check
        %p409 = pneg %p261
      $region38: #{transformer_forward.27} parent=31 // pred_check_branch
        %411 = sbr.rel (%p409) target = $region40
      $region39: #{transformer_forward.27} parent=31 // pred_region
        %v412 = vld [vmem:[#allocation4] sm:$0xff]
        %v413 = vld [vmem:[#allocation3] sm:$0xff]
        %v414 = vrcp.pop %v413
        %416 = vset.pattern.permute.xlu0 0
        %417 = vperm.xlu0 %416, %v414
        %v418 = vpop.permute.xlu0 %417
        %v420 = vmul.f32 %v412, %v418
        %v421 = vpack.c.bf16 %v420, %v420
        %vm422 = vcmask 60416
        %423 = vst.msk [vmem:[%s259] sm:$0xf] %vm422, %v421
      $region40: #{transformer_forward.27} parent=31 // pred_fallthru
        _
      %p424 = scmp.lt.s32.totalorder %s19, 7
      %s425 = scalar_select %p424, %s19, 7
      %p426 = scmp.lt.s32.totalorder %s20, 0
      %s427 = scalar_select %p426, %s20, 0
      %s428 = sadd.s32 %s427, %s425
      %s429 = smul.addr %s428, 4
      %s430 = scalar_lea.vmem %s3, %s429
      // Predicated region
      $region41: #{transformer_forward.27} parent=31 // pred_check
        %p431 = pneg %p137
      $region42: #{transformer_forward.27} parent=31 // pred_check_branch
        %433 = sbr.rel (%p431) target = $region44
      $region43: #{transformer_forward.27} parent=31 // pred_region
        _
      $region44: #{transformer_forward.27} parent=31 // pred_fallthru
        _
    $region32: #{transformer_forward.27} parent=5 // pred_fallthru
      _
    %p434 = scmp.le.s32.totalorder 2, %s9
    // Predicated region
    $region45: #{transformer_forward.27} parent=5 // pred_check
      %p435 = pneg %p434
    $region46: #{transformer_forward.27} parent=5 // pred_check_branch
      %437 = sbr.rel (%p435) target = $region48
    $region47: #{transformer_forward.27} parent=5 // pred_region
      %s438 = ssub.s32 %s9, 2
      // Predicated region
      $region49: #{transformer_forward.27} parent=47 // pred_check
        %p439 = pneg %p143
      $region50: #{transformer_forward.27} parent=47 // pred_check_branch
        %441 = sbr.rel (%p439) target = $region52
      $region51: #{transformer_forward.27} parent=47 // pred_region
        %p442 = scmp.lt.s32.totalorder %s22, 7
        %s443 = scalar_select %p442, %s22, 7
        %p444 = scmp.lt.s32.totalorder %s23, 0
        %s445 = scalar_select %p444, %s23, 0
        %s446 = sadd.s32 %s445, %s443
        %s447 = smul.addr %s446, 4
        %s448 = scalar_lea.vmem %s3, %s447
      $region52: #{transformer_forward.27} parent=47 // pred_fallthru
        _
    $region48: #{transformer_forward.27} parent=5 // pred_fallthru
      _
  $region6: #{transformer_forward.27} parent=0 // loop_footer
    %s13 = sadd.s32 1, %s9
  $region7: #{transformer_forward.27} parent=0 // loop_footer_branch
    %8 = sbr.rel target = $region3
  $region8: #{transformer_forward.27} parent=0 // loop_exit
    _

// kernel: transformer_forward.28
$region0: #{transformer_forward.28}
  #allocation0 [shape = 'u32[]', space=smem, size = 0x4, offset = 0x4, fixed_abs, tag = 'smem constant byte address 0x4 - core index']
  #allocation1 [shape = 'u32[144,128]{1,0:T(1,128)}', space=vmem, size = 0x12000, scoped, tag = 'internal scratch']
  #allocation2 [shape = 'f32[16,128]{1,0:T(8,128)}', space=vmem, size = 0x2000, scoped, tag = 'scratch operand']
  %s0 = inlined_call_operand.vmem [shape: bf16[16,128], index: 0, kind: input, shape index: {}]
  %s1 = inlined_call_operand.vmem [shape: bf16[128,128], index: 1, kind: input, shape index: {}]
  %s2 = inlined_call_operand.vmem [shape: f32[1,128], index: 2, kind: input, shape index: {}]
  %s3 = inlined_call_operand.vmem [shape: f32[16,128], index: 3, kind: output, shape index: {}]
  %s4 = sld [smem:[#allocation0]]
  $region30: #{transformer_forward.28} parent=0
    _
  %s6 = ssub.s32 1, %s4
  %s7 = scalar_select 0, %s6, %s4
  // Predicated region
  $region2: #{transformer_forward.28} parent=0 // pred_check
    _
  $region3: #{transformer_forward.28} parent=0 // pred_check_branch
    %9 = sbr.rel (0) target = $region5
  $region4: #{transformer_forward.28} parent=0 // pred_region
    _
  $region5: #{transformer_forward.28} parent=0 // pred_fallthru
    _
  // Predicated region
  $region6: #{transformer_forward.28} parent=0 // pred_check
    _
  $region7: #{transformer_forward.28} parent=0 // pred_check_branch
    %11 = sbr.rel (0) target = $region9
  $region8: #{transformer_forward.28} parent=0 // pred_region
    _
  $region9: #{transformer_forward.28} parent=0 // pred_fallthru
    _
  // Predicated region
  $region10: #{transformer_forward.28} parent=0 // pred_check
    _
  $region11: #{transformer_forward.28} parent=0 // pred_check_branch
    %13 = sbr.rel (0) target = $region13
  $region12: #{transformer_forward.28} parent=0 // pred_region
    _
  $region13: #{transformer_forward.28} parent=0 // pred_fallthru
    _
  %p15 = scmp.eq.s32.totalorder 0, 0
  // Predicated region
  $region14: #{transformer_forward.28} parent=0 // pred_check
    %p16 = pneg %p15
  $region15: #{transformer_forward.28} parent=0 // pred_check_branch
    %18 = sbr.rel (%p16) target = $region17
  $region16: #{transformer_forward.28} parent=0 // pred_region
    %19 = vst [vmem:[#allocation2] sm:$0xff] 0.0
    %20 = vst [vmem:[#allocation2 + $0x8] sm:$0xff] 0.0
  $region17: #{transformer_forward.28} parent=0 // pred_fallthru
    _
  %v21 = vld [vmem:[#allocation2] sm:$0xff]
  %v22 = vld [vmem:[#allocation2 + $0x8] sm:$0xff]
  %v23 = vld [vmem:[%s0] sm:$0xf]
  %v24 = vld [vmem:[%s0 + $0x4] sm:$0xf]
  %v25 = vld [vmem:[%s1] sm:$0xf]
  %v26 = vld [vmem:[%s1 + $0x4] sm:$0xf]
  %v27 = vld [vmem:[%s1 + $0x8] sm:$0xf]
  %v28 = vld [vmem:[%s1 + $0xc] sm:$0xf]
  %v29 = vld [vmem:[%s1 + $0x10] sm:$0xf]
  %v30 = vld [vmem:[%s1 + $0x14] sm:$0xf]
  %v31 = vld [vmem:[%s1 + $0x18] sm:$0xf]
  %v32 = vld [vmem:[%s1 + $0x1c] sm:$0xf]
  %v33 = vld [vmem:[%s1 + $0x20] sm:$0xf]
  %v34 = vld [vmem:[%s1 + $0x24] sm:$0xf]
  %v35 = vld [vmem:[%s1 + $0x28] sm:$0xf]
  %v36 = vld [vmem:[%s1 + $0x2c] sm:$0xf]
  %v37 = vld [vmem:[%s1 + $0x30] sm:$0xf]
  %v38 = vld [vmem:[%s1 + $0x34] sm:$0xf]
  %v39 = vld [vmem:[%s1 + $0x38] sm:$0xf]
  %v40 = vld [vmem:[%s1 + $0x3c] sm:$0xf]
  %v43 = vunpack.c.l.b16 %v23
  %v44 = vunpack.c.l.b16 %v24
  %v45 = vpack.c.b16 %v44, %v43
  %v63 = vunpack.c.l.b16 %v25
  %v64 = vunpack.c.l.b16 %v26
  %v65 = vunpack.c.l.b16 %v27
  %v66 = vunpack.c.l.b16 %v28
  %v67 = vunpack.c.l.b16 %v29
  %v68 = vunpack.c.l.b16 %v30
  %v69 = vunpack.c.l.b16 %v31
  %v70 = vunpack.c.l.b16 %v32
  %v71 = vunpack.c.l.b16 %v33
  %v72 = vunpack.c.l.b16 %v34
  %v73 = vunpack.c.l.b16 %v35
  %v74 = vunpack.c.l.b16 %v36
  %v75 = vunpack.c.l.b16 %v37
  %v76 = vunpack.c.l.b16 %v38
  %v77 = vunpack.c.l.b16 %v39
  %v78 = vunpack.c.l.b16 %v40
  %v79 = vpack.c.b16 %v64, %v63
  %v80 = vpack.c.b16 %v66, %v65
  %v81 = vpack.c.b16 %v68, %v67
  %v82 = vpack.c.b16 %v70, %v69
  %v83 = vpack.c.b16 %v72, %v71
  %v84 = vpack.c.b16 %v74, %v73
  %v85 = vpack.c.b16 %v76, %v75
  %v86 = vpack.c.b16 %v78, %v77
  %95 = vmatprep.subr.bf16.mxu0 0
  %96 = vmatpush1.bf16.msra.mxu0 %v79
  %97 = vmatprep.subr.bf16.mxu0 0
  %98 = vmatpush1.bf16.msra.mxu0 %v80
  %99 = vmatprep.subr.bf16.mxu0 0
  %100 = vmatpush1.bf16.msra.mxu0 %v81
  %101 = vmatprep.subr.bf16.mxu0 0
  %102 = vmatpush1.bf16.msra.mxu0 %v82
  %103 = vmatprep.subr.bf16.mxu0 0
  %104 = vmatpush1.bf16.msra.mxu0 %v83
  %105 = vmatprep.subr.bf16.mxu0 0
  %106 = vmatpush1.bf16.msra.mxu0 %v84
  %107 = vmatprep.subr.bf16.mxu0 0
  %108 = vmatpush1.bf16.msra.mxu0 %v85
  %109 = vmatprep.subr.bf16.mxu0 0
  %110 = vmatpush1.bf16.msra.mxu0 %v86
  %111 = vmatprep.subr.bf16.mxu0 0
  %112 = vmatpush1.bf16.msra.mxu0 0
  %113 = vmatprep.subr.bf16.mxu0 0
  %114 = vmatpush1.bf16.msra.mxu0 0
  %115 = vmatprep.subr.bf16.mxu0 0
  %116 = vmatpush1.bf16.msra.mxu0 0
  %117 = vmatprep.subr.bf16.mxu0 0
  %118 = vmatpush1.bf16.msra.mxu0 0
  %119 = vmatprep.subr.bf16.mxu0 0
  %120 = vmatpush1.bf16.msra.mxu0 0
  %121 = vmatprep.subr.bf16.mxu0 0
  %122 = vmatpush1.bf16.msra.mxu0 0
  %123 = vmatprep.subr.bf16.mxu0 0
  %124 = vmatpush1.bf16.msra.mxu0 0
  %125 = vmatprep.subr.bf16.mxu0 0
  %126 = vmatpush1.bf16.msra.mxu0 0
  %127 = vmatprep.mubr.bf16.mxu0 0
  %128 = vmatmul.mubr.bf16.gmra.mrb[0].mxu0 %v45
  %v129 = vpop.f32.mrb[0].mxu0
  %v130 = vadd.f32 0.0, %v129
  %v131 = vpop.f32.mrb[0].mxu0
  %v132 = vpop.f32.mrb[0].mxu0
  %v133 = vadd.f32 0.0, %v132
  %v134 = vpop.f32.mrb[0].mxu0
  %135 = vdwg.mxu0
  %v136 = vadd.f32 %v21, %v130
  %v137 = vadd.f32 %v22, %v133
  %138 = vst [vmem:[#allocation2] sm:$0xff] %v136
  %139 = vst [vmem:[#allocation2 + $0x8] sm:$0xff] %v137
  // Predicated region
  $region18: #{transformer_forward.28} parent=0 // pred_check
    %p140 = pneg %p15
  $region19: #{transformer_forward.28} parent=0 // pred_check_branch
    %142 = sbr.rel (%p140) target = $region21
  $region20: #{transformer_forward.28} parent=0 // pred_region
    %v143 = vld [vmem:[#allocation2] sm:$0xff]
    %v144 = vld [vmem:[#allocation2 + $0x8] sm:$0xff]
    %v145 = vld [vmem:[%s2] sm:$0x1]
    %v147 = vlaneseq
    %v148 = vshrl.u32 %v147, 7
    %v149 = vsub.s32 0, %v148
    %v150 = vrot.slane %v145, %v149
    %v152 = vadd.f32 %v143, %v150
    %v153 = vadd.f32 %v144, %v150
    %154 = vst [vmem:[%s3] sm:$0xff] %v152
    %155 = vst [vmem:[%s3 + $0x8] sm:$0xff] %v153
  $region21: #{transformer_forward.28} parent=0 // pred_fallthru
    _
  // Predicated region
  $region22: #{transformer_forward.28} parent=0 // pred_check
    _
  $region23: #{transformer_forward.28} parent=0 // pred_check_branch
    %157 = sbr.rel (0) target = $region25
  $region24: #{transformer_forward.28} parent=0 // pred_region
    _
  $region25: #{transformer_forward.28} parent=0 // pred_fallthru
    _
  // Predicated region
  $region26: #{transformer_forward.28} parent=0 // pred_check
    _
  $region27: #{transformer_forward.28} parent=0 // pred_check_branch
    %159 = sbr.rel (0) target = $region29
  $region28: #{transformer_forward.28} parent=0 // pred_region
    _
  $region29: #{transformer_forward.28} parent=0 // pred_fallthru
    _

// kernel: transformer_forward.29
$region0: #{transformer_forward.29}
  #allocation0 [shape = 'u32[]', space=smem, size = 0x4, offset = 0x4, fixed_abs, tag = 'smem constant byte address 0x4 - core index']
  #allocation1 [shape = 'u32[144,128]{1,0:T(1,128)}', space=vmem, size = 0x12000, scoped, tag = 'internal scratch']
  %s0 = inlined_call_operand.vmem [shape: f32[16,32], index: 0, kind: input, shape index: {}]
  %s1 = inlined_call_operand.vmem [shape: f32[16,32], index: 1, kind: input, shape index: {}]
  %s2 = inlined_call_operand.vmem [shape: f32[1,32], index: 2, kind: input, shape index: {}]
  %s3 = inlined_call_operand.vmem [shape: f32[1,32], index: 3, kind: input, shape index: {}]
  %s4 = inlined_call_operand.vmem [shape: f32[16,32], index: 4, kind: output, shape index: {}]
  %s5 = sld [smem:[#allocation0]]
  $region26: #{transformer_forward.29} parent=0
    _
  %s7 = ssub.s32 1, %s5
  %s8 = scalar_select 0, %s7, %s5
  // Predicated region
  $region2: #{transformer_forward.29} parent=0 // pred_check
    _
  $region3: #{transformer_forward.29} parent=0 // pred_check_branch
    %10 = sbr.rel (0) target = $region5
  $region4: #{transformer_forward.29} parent=0 // pred_region
    _
  $region5: #{transformer_forward.29} parent=0 // pred_fallthru
    _
  // Predicated region
  $region6: #{transformer_forward.29} parent=0 // pred_check
    _
  $region7: #{transformer_forward.29} parent=0 // pred_check_branch
    %12 = sbr.rel (0) target = $region9
  $region8: #{transformer_forward.29} parent=0 // pred_region
    _
  $region9: #{transformer_forward.29} parent=0 // pred_fallthru
    _
  // Predicated region
  $region10: #{transformer_forward.29} parent=0 // pred_check
    _
  $region11: #{transformer_forward.29} parent=0 // pred_check_branch
    %14 = sbr.rel (0) target = $region13
  $region12: #{transformer_forward.29} parent=0 // pred_region
    _
  $region13: #{transformer_forward.29} parent=0 // pred_fallthru
    _
  // Predicated region
  $region14: #{transformer_forward.29} parent=0 // pred_check
    _
  $region15: #{transformer_forward.29} parent=0 // pred_check_branch
    %16 = sbr.rel (0) target = $region17
  $region16: #{transformer_forward.29} parent=0 // pred_region
    _
  $region17: #{transformer_forward.29} parent=0 // pred_fallthru
    _
  %v17 = vld [vmem:[%s0] sm:$0xff]
  %v18 = vld [vmem:[%s0 + $0x8] sm:$0xff]
  %v19 = vld [vmem:[%s1] sm:$0xff]
  %v20 = vld [vmem:[%s1 + $0x8] sm:$0xff]
  %v21 = vadd.f32 %v17, %v19
  %v22 = vadd.f32 %v18, %v20
  %vm23 = vcmask 261120
  %v24 = vsel %vm23, %v21, 0.0
  %25 = vadd.xlane.f32.xlu0 %v24
  %v26 = vpop.xlane.xlu0 %25
  %v27 = vsel %vm23, %v22, 0.0
  %28 = vadd.xlane.f32.xlu0 %v27
  %v29 = vpop.xlane.xlu0 %28
  %v30 = vrcp.pop 32.0
  %v31 = vmul.f32 %v26, %v30
  %v32 = vmul.f32 %v29, %v30
  %v33 = vsub.f32 %v21, %v31
  %v34 = vsub.f32 %v22, %v32
  %v35 = vmul.f32 %v33, %v33
  %v36 = vmul.f32 %v34, %v34
  %v37 = vsel %vm23, %v35, 0.0
  %38 = vadd.xlane.f32.xlu0 %v37
  %v39 = vpop.xlane.xlu0 %38
  %v40 = vsel %vm23, %v36, 0.0
  %41 = vadd.xlane.f32.xlu0 %v40
  %v42 = vpop.xlane.xlu0 %41
  %v43 = vmul.f32 %v39, %v30
  %v44 = vmul.f32 %v42, %v30
  %v45 = vadd.f32 %v43, 1e-05
  %v46 = vadd.f32 %v44, 1e-05
  %v47 = vrsqrt.pop %v45
  %v48 = vrsqrt.pop %v46
  %v49 = vmul.f32 %v33, %v47
  %v50 = vmul.f32 %v34, %v48
  %v51 = vld [vmem:[%s2] sm:$0x1]
  %v53 = vlaneseq
  %v54 = vshrl.u32 %v53, 7
  %v55 = vsub.s32 0, %v54
  %v56 = vrot.slane %v51, %v55
  %v58 = vmul.f32 %v49, %v56
  %v59 = vmul.f32 %v50, %v56
  %v60 = vld [vmem:[%s3] sm:$0x1]
  %v62 = vlaneseq
  %v63 = vshrl.u32 %v62, 7
  %v64 = vsub.s32 0, %v63
  %v65 = vrot.slane %v60, %v64
  %v67 = vadd.f32 %v58, %v65
  %v68 = vadd.f32 %v59, %v65
  %69 = vst.msk [vmem:[%s4] sm:$0xff] %vm23, %v67
  %70 = vst.msk [vmem:[%s4 + $0x8] sm:$0xff] %vm23, %v68
  // Predicated region
  $region18: #{transformer_forward.29} parent=0 // pred_check
    _
  $region19: #{transformer_forward.29} parent=0 // pred_check_branch
    %72 = sbr.rel (0) target = $region21
  $region20: #{transformer_forward.29} parent=0 // pred_region
    _
  $region21: #{transformer_forward.29} parent=0 // pred_fallthru
    _
  // Predicated region
  $region22: #{transformer_forward.29} parent=0 // pred_check
    _
  $region23: #{transformer_forward.29} parent=0 // pred_check_branch
    %74 = sbr.rel (0) target = $region25
  $region24: #{transformer_forward.29} parent=0 // pred_region
    _
  $region25: #{transformer_forward.29} parent=0 // pred_fallthru
    _

// kernel: transformer_forward.30
$region0: #{transformer_forward.30}
  #allocation0 [shape = 'u32[]', space=smem, size = 0x4, offset = 0x4, fixed_abs, tag = 'smem constant byte address 0x4 - core index']
  #allocation1 [shape = 'u32[144,128]{1,0:T(1,128)}', space=vmem, size = 0x12000, scoped, tag = 'internal scratch']
  #allocation2 [shape = 'f32[16,128]{1,0:T(8,128)}', space=vmem, size = 0x2000, scoped, tag = 'scratch operand']
  %s0 = inlined_call_operand.vmem [shape: bf16[16,128], index: 0, kind: input, shape index: {}]
  %s1 = inlined_call_operand.vmem [shape: bf16[128,128], index: 1, kind: input, shape index: {}]
  %s2 = inlined_call_operand.vmem [shape: f32[1,128], index: 2, kind: input, shape index: {}]
  %s3 = inlined_call_operand.vmem [shape: bf16[16,128], index: 3, kind: output, shape index: {}]
  %s4 = sld [smem:[#allocation0]]
  $region30: #{transformer_forward.30} parent=0
    _
  %s6 = ssub.s32 1, %s4
  %s7 = scalar_select 0, %s6, %s4
  // Predicated region
  $region2: #{transformer_forward.30} parent=0 // pred_check
    _
  $region3: #{transformer_forward.30} parent=0 // pred_check_branch
    %9 = sbr.rel (0) target = $region5
  $region4: #{transformer_forward.30} parent=0 // pred_region
    _
  $region5: #{transformer_forward.30} parent=0 // pred_fallthru
    _
  // Predicated region
  $region6: #{transformer_forward.30} parent=0 // pred_check
    _
  $region7: #{transformer_forward.30} parent=0 // pred_check_branch
    %11 = sbr.rel (0) target = $region9
  $region8: #{transformer_forward.30} parent=0 // pred_region
    _
  $region9: #{transformer_forward.30} parent=0 // pred_fallthru
    _
  // Predicated region
  $region10: #{transformer_forward.30} parent=0 // pred_check
    _
  $region11: #{transformer_forward.30} parent=0 // pred_check_branch
    %13 = sbr.rel (0) target = $region13
  $region12: #{transformer_forward.30} parent=0 // pred_region
    _
  $region13: #{transformer_forward.30} parent=0 // pred_fallthru
    _
  %p15 = scmp.eq.s32.totalorder 0, 0
  // Predicated region
  $region14: #{transformer_forward.30} parent=0 // pred_check
    %p16 = pneg %p15
  $region15: #{transformer_forward.30} parent=0 // pred_check_branch
    %18 = sbr.rel (%p16) target = $region17
  $region16: #{transformer_forward.30} parent=0 // pred_region
    %19 = vst [vmem:[#allocation2] sm:$0xff] 0.0
    %20 = vst [vmem:[#allocation2 + $0x8] sm:$0xff] 0.0
  $region17: #{transformer_forward.30} parent=0 // pred_fallthru
    _
  %v21 = vld [vmem:[#allocation2] sm:$0xff]
  %v22 = vld [vmem:[#allocation2 + $0x8] sm:$0xff]
  %v23 = vld [vmem:[%s0] sm:$0xf]
  %v24 = vld [vmem:[%s0 + $0x4] sm:$0xf]
  %v25 = vld [vmem:[%s1] sm:$0xf]
  %v26 = vld [vmem:[%s1 + $0x4] sm:$0xf]
  %v27 = vld [vmem:[%s1 + $0x8] sm:$0xf]
  %v28 = vld [vmem:[%s1 + $0xc] sm:$0xf]
  %v29 = vld [vmem:[%s1 + $0x10] sm:$0xf]
  %v30 = vld [vmem:[%s1 + $0x14] sm:$0xf]
  %v31 = vld [vmem:[%s1 + $0x18] sm:$0xf]
  %v32 = vld [vmem:[%s1 + $0x1c] sm:$0xf]
  %v33 = vld [vmem:[%s1 + $0x20] sm:$0xf]
  %v34 = vld [vmem:[%s1 + $0x24] sm:$0xf]
  %v35 = vld [vmem:[%s1 + $0x28] sm:$0xf]
  %v36 = vld [vmem:[%s1 + $0x2c] sm:$0xf]
  %v37 = vld [vmem:[%s1 + $0x30] sm:$0xf]
  %v38 = vld [vmem:[%s1 + $0x34] sm:$0xf]
  %v39 = vld [vmem:[%s1 + $0x38] sm:$0xf]
  %v40 = vld [vmem:[%s1 + $0x3c] sm:$0xf]
  %v43 = vunpack.c.l.b16 %v23
  %v44 = vunpack.c.l.b16 %v24
  %v45 = vpack.c.b16 %v44, %v43
  %v63 = vunpack.c.l.b16 %v25
  %v64 = vunpack.c.l.b16 %v26
  %v65 = vunpack.c.l.b16 %v27
  %v66 = vunpack.c.l.b16 %v28
  %v67 = vunpack.c.l.b16 %v29
  %v68 = vunpack.c.l.b16 %v30
  %v69 = vunpack.c.l.b16 %v31
  %v70 = vunpack.c.l.b16 %v32
  %v71 = vunpack.c.l.b16 %v33
  %v72 = vunpack.c.l.b16 %v34
  %v73 = vunpack.c.l.b16 %v35
  %v74 = vunpack.c.l.b16 %v36
  %v75 = vunpack.c.l.b16 %v37
  %v76 = vunpack.c.l.b16 %v38
  %v77 = vunpack.c.l.b16 %v39
  %v78 = vunpack.c.l.b16 %v40
  %v79 = vpack.c.b16 %v64, %v63
  %v80 = vpack.c.b16 %v66, %v65
  %v81 = vpack.c.b16 %v68, %v67
  %v82 = vpack.c.b16 %v70, %v69
  %v83 = vpack.c.b16 %v72, %v71
  %v84 = vpack.c.b16 %v74, %v73
  %v85 = vpack.c.b16 %v76, %v75
  %v86 = vpack.c.b16 %v78, %v77
  %95 = vmatprep.subr.bf16.mxu0 0
  %96 = vmatpush1.bf16.msra.mxu0 %v79
  %97 = vmatprep.subr.bf16.mxu0 0
  %98 = vmatpush1.bf16.msra.mxu0 %v80
  %99 = vmatprep.subr.bf16.mxu0 0
  %100 = vmatpush1.bf16.msra.mxu0 %v81
  %101 = vmatprep.subr.bf16.mxu0 0
  %102 = vmatpush1.bf16.msra.mxu0 %v82
  %103 = vmatprep.subr.bf16.mxu0 0
  %104 = vmatpush1.bf16.msra.mxu0 %v83
  %105 = vmatprep.subr.bf16.mxu0 0
  %106 = vmatpush1.bf16.msra.mxu0 %v84
  %107 = vmatprep.subr.bf16.mxu0 0
  %108 = vmatpush1.bf16.msra.mxu0 %v85
  %109 = vmatprep.subr.bf16.mxu0 0
  %110 = vmatpush1.bf16.msra.mxu0 %v86
  %111 = vmatprep.subr.bf16.mxu0 0
  %112 = vmatpush1.bf16.msra.mxu0 0
  %113 = vmatprep.subr.bf16.mxu0 0
  %114 = vmatpush1.bf16.msra.mxu0 0
  %115 = vmatprep.subr.bf16.mxu0 0
  %116 = vmatpush1.bf16.msra.mxu0 0
  %117 = vmatprep.subr.bf16.mxu0 0
  %118 = vmatpush1.bf16.msra.mxu0 0
  %119 = vmatprep.subr.bf16.mxu0 0
  %120 = vmatpush1.bf16.msra.mxu0 0
  %121 = vmatprep.subr.bf16.mxu0 0
  %122 = vmatpush1.bf16.msra.mxu0 0
  %123 = vmatprep.subr.bf16.mxu0 0
  %124 = vmatpush1.bf16.msra.mxu0 0
  %125 = vmatprep.subr.bf16.mxu0 0
  %126 = vmatpush1.bf16.msra.mxu0 0
  %127 = vmatprep.mubr.bf16.mxu0 0
  %128 = vmatmul.mubr.bf16.gmra.mrb[0].mxu0 %v45
  %v129 = vpop.f32.mrb[0].mxu0
  %v130 = vadd.f32 0.0, %v129
  %v131 = vpop.f32.mrb[0].mxu0
  %v132 = vpop.f32.mrb[0].mxu0
  %v133 = vadd.f32 0.0, %v132
  %v134 = vpop.f32.mrb[0].mxu0
  %135 = vdwg.mxu0
  %v136 = vadd.f32 %v21, %v130
  %v137 = vadd.f32 %v22, %v133
  %138 = vst [vmem:[#allocation2] sm:$0xff] %v136
  %139 = vst [vmem:[#allocation2 + $0x8] sm:$0xff] %v137
  // Predicated region
  $region18: #{transformer_forward.30} parent=0 // pred_check
    %p140 = pneg %p15
  $region19: #{transformer_forward.30} parent=0 // pred_check_branch
    %142 = sbr.rel (%p140) target = $region21
  $region20: #{transformer_forward.30} parent=0 // pred_region
    %v143 = vld [vmem:[#allocation2] sm:$0xff]
    %v144 = vld [vmem:[#allocation2 + $0x8] sm:$0xff]
    %v145 = vld [vmem:[%s2] sm:$0x1]
    %v147 = vlaneseq
    %v148 = vshrl.u32 %v147, 7
    %v149 = vsub.s32 0, %v148
    %v150 = vrot.slane %v145, %v149
    %v152 = vadd.f32 %v143, %v150
    %v153 = vadd.f32 %v144, %v150
    %v154 = vmax.f32 %v152, 0.0
    %v155 = vmax.f32 %v153, 0.0
    %v156 = vpack.c.bf16 %v155, %v154
    %v158 = vunpack.c.l.b16 %v156
    %v159 = vunpack.c.h.b16 %v156
    %v160 = vpack.c.b16 %v158, %v158
    %v161 = vpack.c.b16 %v159, %v159
    %164 = vst [vmem:[%s3] sm:$0xf] %v160
    %165 = vst [vmem:[%s3 + $0x4] sm:$0xf] %v161
  $region21: #{transformer_forward.30} parent=0 // pred_fallthru
    _
  // Predicated region
  $region22: #{transformer_forward.30} parent=0 // pred_check
    _
  $region23: #{transformer_forward.30} parent=0 // pred_check_branch
    %167 = sbr.rel (0) target = $region25
  $region24: #{transformer_forward.30} parent=0 // pred_region
    _
  $region25: #{transformer_forward.30} parent=0 // pred_fallthru
    _
  // Predicated region
  $region26: #{transformer_forward.30} parent=0 // pred_check
    _
  $region27: #{transformer_forward.30} parent=0 // pred_check_branch
    %169 = sbr.rel (0) target = $region29
  $region28: #{transformer_forward.30} parent=0 // pred_region
    _
  $region29: #{transformer_forward.30} parent=0 // pred_fallthru
    _

// kernel: transformer_forward.38
$region0: #{transformer_forward.38}
  #allocation0 [shape = 'u32[]', space=smem, size = 0x4, offset = 0x4, fixed_abs, tag = 'smem constant byte address 0x4 - core index']
  #allocation1 [shape = 'u32[144,128]{1,0:T(1,128)}', space=vmem, size = 0x12000, scoped, tag = 'internal scratch']
  #allocation2 [shape = 'f32[16,128]{1,0:T(8,128)}', space=vmem, size = 0x2000, scoped, tag = 'scratch operand']
  %s0 = inlined_call_operand.vmem [shape: bf16[16,128], index: 0, kind: input, shape index: {}]
  %s1 = inlined_call_operand.vmem [shape: bf16[128,128], index: 1, kind: input, shape index: {}]
  %s2 = inlined_call_operand.vmem [shape: f32[1,128], index: 2, kind: input, shape index: {}]
  %s3 = inlined_call_operand.vmem [shape: bf16[16,128], index: 3, kind: output, shape index: {}]
  %s4 = sld [smem:[#allocation0]]
  $region30: #{transformer_forward.38} parent=0
    _
  %s6 = ssub.s32 1, %s4
  %s7 = scalar_select 0, %s6, %s4
  // Predicated region
  $region2: #{transformer_forward.38} parent=0 // pred_check
    _
  $region3: #{transformer_forward.38} parent=0 // pred_check_branch
    %9 = sbr.rel (0) target = $region5
  $region4: #{transformer_forward.38} parent=0 // pred_region
    _
  $region5: #{transformer_forward.38} parent=0 // pred_fallthru
    _
  // Predicated region
  $region6: #{transformer_forward.38} parent=0 // pred_check
    _
  $region7: #{transformer_forward.38} parent=0 // pred_check_branch
    %11 = sbr.rel (0) target = $region9
  $region8: #{transformer_forward.38} parent=0 // pred_region
    _
  $region9: #{transformer_forward.38} parent=0 // pred_fallthru
    _
  // Predicated region
  $region10: #{transformer_forward.38} parent=0 // pred_check
    _
  $region11: #{transformer_forward.38} parent=0 // pred_check_branch
    %13 = sbr.rel (0) target = $region13
  $region12: #{transformer_forward.38} parent=0 // pred_region
    _
  $region13: #{transformer_forward.38} parent=0 // pred_fallthru
    _
  %p15 = scmp.eq.s32.totalorder 0, 0
  // Predicated region
  $region14: #{transformer_forward.38} parent=0 // pred_check
    %p16 = pneg %p15
  $region15: #{transformer_forward.38} parent=0 // pred_check_branch
    %18 = sbr.rel (%p16) target = $region17
  $region16: #{transformer_forward.38} parent=0 // pred_region
    %19 = vst [vmem:[#allocation2] sm:$0xff] 0.0
    %20 = vst [vmem:[#allocation2 + $0x8] sm:$0xff] 0.0
  $region17: #{transformer_forward.38} parent=0 // pred_fallthru
    _
  %v21 = vld [vmem:[#allocation2] sm:$0xff]
  %v22 = vld [vmem:[#allocation2 + $0x8] sm:$0xff]
  %v23 = vld [vmem:[%s0] sm:$0xf]
  %v24 = vld [vmem:[%s0 + $0x4] sm:$0xf]
  %v25 = vld [vmem:[%s1] sm:$0xf]
  %v26 = vld [vmem:[%s1 + $0x4] sm:$0xf]
  %v27 = vld [vmem:[%s1 + $0x8] sm:$0xf]
  %v28 = vld [vmem:[%s1 + $0xc] sm:$0xf]
  %v29 = vld [vmem:[%s1 + $0x10] sm:$0xf]
  %v30 = vld [vmem:[%s1 + $0x14] sm:$0xf]
  %v31 = vld [vmem:[%s1 + $0x18] sm:$0xf]
  %v32 = vld [vmem:[%s1 + $0x1c] sm:$0xf]
  %v33 = vld [vmem:[%s1 + $0x20] sm:$0xf]
  %v34 = vld [vmem:[%s1 + $0x24] sm:$0xf]
  %v35 = vld [vmem:[%s1 + $0x28] sm:$0xf]
  %v36 = vld [vmem:[%s1 + $0x2c] sm:$0xf]
  %v37 = vld [vmem:[%s1 + $0x30] sm:$0xf]
  %v38 = vld [vmem:[%s1 + $0x34] sm:$0xf]
  %v39 = vld [vmem:[%s1 + $0x38] sm:$0xf]
  %v40 = vld [vmem:[%s1 + $0x3c] sm:$0xf]
  %v43 = vunpack.c.l.b16 %v23
  %v44 = vunpack.c.l.b16 %v24
  %v45 = vpack.c.b16 %v44, %v43
  %v63 = vunpack.c.l.b16 %v25
  %v64 = vunpack.c.l.b16 %v26
  %v65 = vunpack.c.l.b16 %v27
  %v66 = vunpack.c.l.b16 %v28
  %v67 = vunpack.c.l.b16 %v29
  %v68 = vunpack.c.l.b16 %v30
  %v69 = vunpack.c.l.b16 %v31
  %v70 = vunpack.c.l.b16 %v32
  %v71 = vunpack.c.l.b16 %v33
  %v72 = vunpack.c.l.b16 %v34
  %v73 = vunpack.c.l.b16 %v35
  %v74 = vunpack.c.l.b16 %v36
  %v75 = vunpack.c.l.b16 %v37
  %v76 = vunpack.c.l.b16 %v38
  %v77 = vunpack.c.l.b16 %v39
  %v78 = vunpack.c.l.b16 %v40
  %v79 = vpack.c.b16 %v64, %v63
  %v80 = vpack.c.b16 %v66, %v65
  %v81 = vpack.c.b16 %v68, %v67
  %v82 = vpack.c.b16 %v70, %v69
  %v83 = vpack.c.b16 %v72, %v71
  %v84 = vpack.c.b16 %v74, %v73
  %v85 = vpack.c.b16 %v76, %v75
  %v86 = vpack.c.b16 %v78, %v77
  %95 = vmatprep.subr.bf16.mxu0 0
  %96 = vmatpush1.bf16.msra.mxu0 %v79
  %97 = vmatprep.subr.bf16.mxu0 0
  %98 = vmatpush1.bf16.msra.mxu0 %v80
  %99 = vmatprep.subr.bf16.mxu0 0
  %100 = vmatpush1.bf16.msra.mxu0 %v81
  %101 = vmatprep.subr.bf16.mxu0 0
  %102 = vmatpush1.bf16.msra.mxu0 %v82
  %103 = vmatprep.subr.bf16.mxu0 0
  %104 = vmatpush1.bf16.msra.mxu0 %v83
  %105 = vmatprep.subr.bf16.mxu0 0
  %106 = vmatpush1.bf16.msra.mxu0 %v84
  %107 = vmatprep.subr.bf16.mxu0 0
  %108 = vmatpush1.bf16.msra.mxu0 %v85
  %109 = vmatprep.subr.bf16.mxu0 0
  %110 = vmatpush1.bf16.msra.mxu0 %v86
  %111 = vmatprep.subr.bf16.mxu0 0
  %112 = vmatpush1.bf16.msra.mxu0 0
  %113 = vmatprep.subr.bf16.mxu0 0
  %114 = vmatpush1.bf16.msra.mxu0 0
  %115 = vmatprep.subr.bf16.mxu0 0
  %116 = vmatpush1.bf16.msra.mxu0 0
  %117 = vmatprep.subr.bf16.mxu0 0
  %118 = vmatpush1.bf16.msra.mxu0 0
  %119 = vmatprep.subr.bf16.mxu0 0
  %120 = vmatpush1.bf16.msra.mxu0 0
  %121 = vmatprep.subr.bf16.mxu0 0
  %122 = vmatpush1.bf16.msra.mxu0 0
  %123 = vmatprep.subr.bf16.mxu0 0
  %124 = vmatpush1.bf16.msra.mxu0 0
  %125 = vmatprep.subr.bf16.mxu0 0
  %126 = vmatpush1.bf16.msra.mxu0 0
  %127 = vmatprep.mubr.bf16.mxu0 0
  %128 = vmatmul.mubr.bf16.gmra.mrb[0].mxu0 %v45
  %v129 = vpop.f32.mrb[0].mxu0
  %v130 = vadd.f32 0.0, %v129
  %v131 = vpop.f32.mrb[0].mxu0
  %v132 = vpop.f32.mrb[0].mxu0
  %v133 = vadd.f32 0.0, %v132
  %v134 = vpop.f32.mrb[0].mxu0
  %135 = vdwg.mxu0
  %v136 = vadd.f32 %v21, %v130
  %v137 = vadd.f32 %v22, %v133
  %138 = vst [vmem:[#allocation2] sm:$0xff] %v136
  %139 = vst [vmem:[#allocation2 + $0x8] sm:$0xff] %v137
  // Predicated region
  $region18: #{transformer_forward.38} parent=0 // pred_check
    %p140 = pneg %p15
  $region19: #{transformer_forward.38} parent=0 // pred_check_branch
    %142 = sbr.rel (%p140) target = $region21
  $region20: #{transformer_forward.38} parent=0 // pred_region
    %v143 = vld [vmem:[#allocation2] sm:$0xff]
    %v144 = vld [vmem:[#allocation2 + $0x8] sm:$0xff]
    %v145 = vld [vmem:[%s2] sm:$0x1]
    %v147 = vlaneseq
    %v148 = vshrl.u32 %v147, 7
    %v149 = vsub.s32 0, %v148
    %v150 = vrot.slane %v145, %v149
    %v152 = vadd.f32 %v143, %v150
    %v153 = vadd.f32 %v144, %v150
    %v154 = vpack.c.bf16 %v153, %v152
    %v156 = vunpack.c.l.b16 %v154
    %v157 = vunpack.c.h.b16 %v154
    %v158 = vpack.c.b16 %v156, %v156
    %v159 = vpack.c.b16 %v157, %v157
    %162 = vst [vmem:[%s3] sm:$0xf] %v158
    %163 = vst [vmem:[%s3 + $0x4] sm:$0xf] %v159
  $region21: #{transformer_forward.38} parent=0 // pred_fallthru
    _
  // Predicated region
  $region22: #{transformer_forward.38} parent=0 // pred_check
    _
  $region23: #{transformer_forward.38} parent=0 // pred_check_branch
    %165 = sbr.rel (0) target = $region25
  $region24: #{transformer_forward.38} parent=0 // pred_region
    _
  $region25: #{transformer_forward.38} parent=0 // pred_fallthru
    _
  // Predicated region
  $region26: #{transformer_forward.38} parent=0 // pred_check
    _
  $region27: #{transformer_forward.38} parent=0 // pred_check_branch
    %167 = sbr.rel (0) target = $region29
  $region28: #{transformer_forward.38} parent=0 // pred_region
    _
  $region29: #{transformer_forward.38} parent=0 // pred_fallthru
    _

// kernel: transformer_forward.31
$region0: #{transformer_forward.31}
  #allocation0 [shape = 'u32[]', space=smem, size = 0x4, offset = 0x4, fixed_abs, tag = 'smem constant byte address 0x4 - core index']
  #allocation1 [shape = 'u32[144,128]{1,0:T(1,128)}', space=vmem, size = 0x12000, scoped, tag = 'internal scratch']
  #allocation2 [shape = 'f32[16,128]{1,0:T(8,128)}', space=vmem, size = 0x2000, scoped, tag = 'scratch operand']
  %s0 = inlined_call_operand.vmem [shape: bf16[16,128], index: 0, kind: input, shape index: {}]
  %s1 = inlined_call_operand.vmem [shape: bf16[128,128], index: 1, kind: input, shape index: {}]
  %s2 = inlined_call_operand.vmem [shape: f32[1,128], index: 2, kind: input, shape index: {}]
  %s3 = inlined_call_operand.vmem [shape: f32[16,128], index: 3, kind: output, shape index: {}]
  %s4 = sld [smem:[#allocation0]]
  $region30: #{transformer_forward.31} parent=0
    _
  %s6 = ssub.s32 1, %s4
  %s7 = scalar_select 0, %s6, %s4
  // Predicated region
  $region2: #{transformer_forward.31} parent=0 // pred_check
    _
  $region3: #{transformer_forward.31} parent=0 // pred_check_branch
    %9 = sbr.rel (0) target = $region5
  $region4: #{transformer_forward.31} parent=0 // pred_region
    _
  $region5: #{transformer_forward.31} parent=0 // pred_fallthru
    _
  // Predicated region
  $region6: #{transformer_forward.31} parent=0 // pred_check
    _
  $region7: #{transformer_forward.31} parent=0 // pred_check_branch
    %11 = sbr.rel (0) target = $region9
  $region8: #{transformer_forward.31} parent=0 // pred_region
    _
  $region9: #{transformer_forward.31} parent=0 // pred_fallthru
    _
  // Predicated region
  $region10: #{transformer_forward.31} parent=0 // pred_check
    _
  $region11: #{transformer_forward.31} parent=0 // pred_check_branch
    %13 = sbr.rel (0) target = $region13
  $region12: #{transformer_forward.31} parent=0 // pred_region
    _
  $region13: #{transformer_forward.31} parent=0 // pred_fallthru
    _
  %p15 = scmp.eq.s32.totalorder 0, 0
  // Predicated region
  $region14: #{transformer_forward.31} parent=0 // pred_check
    %p16 = pneg %p15
  $region15: #{transformer_forward.31} parent=0 // pred_check_branch
    %18 = sbr.rel (%p16) target = $region17
  $region16: #{transformer_forward.31} parent=0 // pred_region
    %19 = vst [vmem:[#allocation2] sm:$0xff] 0.0
    %20 = vst [vmem:[#allocation2 + $0x8] sm:$0xff] 0.0
  $region17: #{transformer_forward.31} parent=0 // pred_fallthru
    _
  %v21 = vld [vmem:[#allocation2] sm:$0xff]
  %v22 = vld [vmem:[#allocation2 + $0x8] sm:$0xff]
  %v23 = vld [vmem:[%s0] sm:$0xf]
  %v24 = vld [vmem:[%s0 + $0x4] sm:$0xf]
  %v25 = vld [vmem:[%s1] sm:$0xf]
  %v26 = vld [vmem:[%s1 + $0x4] sm:$0xf]
  %v27 = vld [vmem:[%s1 + $0x8] sm:$0xf]
  %v28 = vld [vmem:[%s1 + $0xc] sm:$0xf]
  %v29 = vld [vmem:[%s1 + $0x10] sm:$0xf]
  %v30 = vld [vmem:[%s1 + $0x14] sm:$0xf]
  %v31 = vld [vmem:[%s1 + $0x18] sm:$0xf]
  %v32 = vld [vmem:[%s1 + $0x1c] sm:$0xf]
  %v33 = vld [vmem:[%s1 + $0x20] sm:$0xf]
  %v34 = vld [vmem:[%s1 + $0x24] sm:$0xf]
  %v35 = vld [vmem:[%s1 + $0x28] sm:$0xf]
  %v36 = vld [vmem:[%s1 + $0x2c] sm:$0xf]
  %v37 = vld [vmem:[%s1 + $0x30] sm:$0xf]
  %v38 = vld [vmem:[%s1 + $0x34] sm:$0xf]
  %v39 = vld [vmem:[%s1 + $0x38] sm:$0xf]
  %v40 = vld [vmem:[%s1 + $0x3c] sm:$0xf]
  %v43 = vunpack.c.l.b16 %v23
  %v44 = vunpack.c.l.b16 %v24
  %v45 = vpack.c.b16 %v44, %v43
  %v63 = vunpack.c.l.b16 %v25
  %v64 = vunpack.c.l.b16 %v26
  %v65 = vunpack.c.l.b16 %v27
  %v66 = vunpack.c.l.b16 %v28
  %v67 = vunpack.c.l.b16 %v29
  %v68 = vunpack.c.l.b16 %v30
  %v69 = vunpack.c.l.b16 %v31
  %v70 = vunpack.c.l.b16 %v32
  %v71 = vunpack.c.l.b16 %v33
  %v72 = vunpack.c.l.b16 %v34
  %v73 = vunpack.c.l.b16 %v35
  %v74 = vunpack.c.l.b16 %v36
  %v75 = vunpack.c.l.b16 %v37
  %v76 = vunpack.c.l.b16 %v38
  %v77 = vunpack.c.l.b16 %v39
  %v78 = vunpack.c.l.b16 %v40
  %v79 = vpack.c.b16 %v64, %v63
  %v80 = vpack.c.b16 %v66, %v65
  %v81 = vpack.c.b16 %v68, %v67
  %v82 = vpack.c.b16 %v70, %v69
  %v83 = vpack.c.b16 %v72, %v71
  %v84 = vpack.c.b16 %v74, %v73
  %v85 = vpack.c.b16 %v76, %v75
  %v86 = vpack.c.b16 %v78, %v77
  %95 = vmatprep.subr.bf16.mxu0 0
  %96 = vmatpush1.bf16.msra.mxu0 %v79
  %97 = vmatprep.subr.bf16.mxu0 0
  %98 = vmatpush1.bf16.msra.mxu0 %v80
  %99 = vmatprep.subr.bf16.mxu0 0
  %100 = vmatpush1.bf16.msra.mxu0 %v81
  %101 = vmatprep.subr.bf16.mxu0 0
  %102 = vmatpush1.bf16.msra.mxu0 %v82
  %103 = vmatprep.subr.bf16.mxu0 0
  %104 = vmatpush1.bf16.msra.mxu0 %v83
  %105 = vmatprep.subr.bf16.mxu0 0
  %106 = vmatpush1.bf16.msra.mxu0 %v84
  %107 = vmatprep.subr.bf16.mxu0 0
  %108 = vmatpush1.bf16.msra.mxu0 %v85
  %109 = vmatprep.subr.bf16.mxu0 0
  %110 = vmatpush1.bf16.msra.mxu0 %v86
  %111 = vmatprep.subr.bf16.mxu0 0
  %112 = vmatpush1.bf16.msra.mxu0 0
  %113 = vmatprep.subr.bf16.mxu0 0
  %114 = vmatpush1.bf16.msra.mxu0 0
  %115 = vmatprep.subr.bf16.mxu0 0
  %116 = vmatpush1.bf16.msra.mxu0 0
  %117 = vmatprep.subr.bf16.mxu0 0
  %118 = vmatpush1.bf16.msra.mxu0 0
  %119 = vmatprep.subr.bf16.mxu0 0
  %120 = vmatpush1.bf16.msra.mxu0 0
  %121 = vmatprep.subr.bf16.mxu0 0
  %122 = vmatpush1.bf16.msra.mxu0 0
  %123 = vmatprep.subr.bf16.mxu0 0
  %124 = vmatpush1.bf16.msra.mxu0 0
  %125 = vmatprep.subr.bf16.mxu0 0
  %126 = vmatpush1.bf16.msra.mxu0 0
  %127 = vmatprep.mubr.bf16.mxu0 0
  %128 = vmatmul.mubr.bf16.gmra.mrb[0].mxu0 %v45
  %v129 = vpop.f32.mrb[0].mxu0
  %v130 = vadd.f32 0.0, %v129
  %v131 = vpop.f32.mrb[0].mxu0
  %v132 = vpop.f32.mrb[0].mxu0
  %v133 = vadd.f32 0.0, %v132
  %v134 = vpop.f32.mrb[0].mxu0
  %135 = vdwg.mxu0
  %v136 = vadd.f32 %v21, %v130
  %v137 = vadd.f32 %v22, %v133
  %138 = vst [vmem:[#allocation2] sm:$0xff] %v136
  %139 = vst [vmem:[#allocation2 + $0x8] sm:$0xff] %v137
  // Predicated region
  $region18: #{transformer_forward.31} parent=0 // pred_check
    %p140 = pneg %p15
  $region19: #{transformer_forward.31} parent=0 // pred_check_branch
    %142 = sbr.rel (%p140) target = $region21
  $region20: #{transformer_forward.31} parent=0 // pred_region
    %v143 = vld [vmem:[#allocation2] sm:$0xff]
    %v144 = vld [vmem:[#allocation2 + $0x8] sm:$0xff]
    %v145 = vld [vmem:[%s2] sm:$0x1]
    %v147 = vlaneseq
    %v148 = vshrl.u32 %v147, 7
    %v149 = vsub.s32 0, %v148
    %v150 = vrot.slane %v145, %v149
    %v152 = vadd.f32 %v143, %v150
    %v153 = vadd.f32 %v144, %v150
    %154 = vst [vmem:[%s3] sm:$0xff] %v152
    %155 = vst [vmem:[%s3 + $0x8] sm:$0xff] %v153
  $region21: #{transformer_forward.31} parent=0 // pred_fallthru
    _
  // Predicated region
  $region22: #{transformer_forward.31} parent=0 // pred_check
    _
  $region23: #{transformer_forward.31} parent=0 // pred_check_branch
    %157 = sbr.rel (0) target = $region25
  $region24: #{transformer_forward.31} parent=0 // pred_region
    _
  $region25: #{transformer_forward.31} parent=0 // pred_fallthru
    _
  // Predicated region
  $region26: #{transformer_forward.31} parent=0 // pred_check
    _
  $region27: #{transformer_forward.31} parent=0 // pred_check_branch
    %159 = sbr.rel (0) target = $region29
  $region28: #{transformer_forward.31} parent=0 // pred_region
    _
  $region29: #{transformer_forward.31} parent=0 // pred_fallthru
    _

// kernel: transformer_forward.33
$region0: #{transformer_forward.33}
  #allocation0 [shape = 'u32[]', space=smem, size = 0x4, offset = 0x4, fixed_abs, tag = 'smem constant byte address 0x4 - core index']
  #allocation1 [shape = 'u32[144,128]{1,0:T(1,128)}', space=vmem, size = 0x12000, scoped, tag = 'internal scratch']
  #allocation2 [shape = 'f32[16,128]{1,0:T(8,128)}', space=vmem, size = 0x2000, scoped, tag = 'scratch operand']
  %s0 = inlined_call_operand.vmem [shape: bf16[16,128], index: 0, kind: input, shape index: {}]
  %s1 = inlined_call_operand.vmem [shape: bf16[128,128], index: 1, kind: input, shape index: {}]
  %s2 = inlined_call_operand.vmem [shape: f32[1,128], index: 2, kind: input, shape index: {}]
  %s3 = inlined_call_operand.vmem [shape: bf16[16,128], index: 3, kind: output, shape index: {}]
  %s4 = sld [smem:[#allocation0]]
  $region30: #{transformer_forward.33} parent=0
    _
  %s6 = ssub.s32 1, %s4
  %s7 = scalar_select 0, %s6, %s4
  // Predicated region
  $region2: #{transformer_forward.33} parent=0 // pred_check
    _
  $region3: #{transformer_forward.33} parent=0 // pred_check_branch
    %9 = sbr.rel (0) target = $region5
  $region4: #{transformer_forward.33} parent=0 // pred_region
    _
  $region5: #{transformer_forward.33} parent=0 // pred_fallthru
    _
  // Predicated region
  $region6: #{transformer_forward.33} parent=0 // pred_check
    _
  $region7: #{transformer_forward.33} parent=0 // pred_check_branch
    %11 = sbr.rel (0) target = $region9
  $region8: #{transformer_forward.33} parent=0 // pred_region
    _
  $region9: #{transformer_forward.33} parent=0 // pred_fallthru
    _
  // Predicated region
  $region10: #{transformer_forward.33} parent=0 // pred_check
    _
  $region11: #{transformer_forward.33} parent=0 // pred_check_branch
    %13 = sbr.rel (0) target = $region13
  $region12: #{transformer_forward.33} parent=0 // pred_region
    _
  $region13: #{transformer_forward.33} parent=0 // pred_fallthru
    _
  %p15 = scmp.eq.s32.totalorder 0, 0
  // Predicated region
  $region14: #{transformer_forward.33} parent=0 // pred_check
    %p16 = pneg %p15
  $region15: #{transformer_forward.33} parent=0 // pred_check_branch
    %18 = sbr.rel (%p16) target = $region17
  $region16: #{transformer_forward.33} parent=0 // pred_region
    %19 = vst [vmem:[#allocation2] sm:$0xff] 0.0
    %20 = vst [vmem:[#allocation2 + $0x8] sm:$0xff] 0.0
  $region17: #{transformer_forward.33} parent=0 // pred_fallthru
    _
  %v21 = vld [vmem:[#allocation2] sm:$0xff]
  %v22 = vld [vmem:[#allocation2 + $0x8] sm:$0xff]
  %v23 = vld [vmem:[%s0] sm:$0xf]
  %v24 = vld [vmem:[%s0 + $0x4] sm:$0xf]
  %v25 = vld [vmem:[%s1] sm:$0xf]
  %v26 = vld [vmem:[%s1 + $0x4] sm:$0xf]
  %v27 = vld [vmem:[%s1 + $0x8] sm:$0xf]
  %v28 = vld [vmem:[%s1 + $0xc] sm:$0xf]
  %v29 = vld [vmem:[%s1 + $0x10] sm:$0xf]
  %v30 = vld [vmem:[%s1 + $0x14] sm:$0xf]
  %v31 = vld [vmem:[%s1 + $0x18] sm:$0xf]
  %v32 = vld [vmem:[%s1 + $0x1c] sm:$0xf]
  %v33 = vld [vmem:[%s1 + $0x20] sm:$0xf]
  %v34 = vld [vmem:[%s1 + $0x24] sm:$0xf]
  %v35 = vld [vmem:[%s1 + $0x28] sm:$0xf]
  %v36 = vld [vmem:[%s1 + $0x2c] sm:$0xf]
  %v37 = vld [vmem:[%s1 + $0x30] sm:$0xf]
  %v38 = vld [vmem:[%s1 + $0x34] sm:$0xf]
  %v39 = vld [vmem:[%s1 + $0x38] sm:$0xf]
  %v40 = vld [vmem:[%s1 + $0x3c] sm:$0xf]
  %v43 = vunpack.c.l.b16 %v23
  %v44 = vunpack.c.l.b16 %v24
  %v45 = vpack.c.b16 %v44, %v43
  %v63 = vunpack.c.l.b16 %v25
  %v64 = vunpack.c.l.b16 %v26
  %v65 = vunpack.c.l.b16 %v27
  %v66 = vunpack.c.l.b16 %v28
  %v67 = vunpack.c.l.b16 %v29
  %v68 = vunpack.c.l.b16 %v30
  %v69 = vunpack.c.l.b16 %v31
  %v70 = vunpack.c.l.b16 %v32
  %v71 = vunpack.c.l.b16 %v33
  %v72 = vunpack.c.l.b16 %v34
  %v73 = vunpack.c.l.b16 %v35
  %v74 = vunpack.c.l.b16 %v36
  %v75 = vunpack.c.l.b16 %v37
  %v76 = vunpack.c.l.b16 %v38
  %v77 = vunpack.c.l.b16 %v39
  %v78 = vunpack.c.l.b16 %v40
  %v79 = vpack.c.b16 %v64, %v63
  %v80 = vpack.c.b16 %v66, %v65
  %v81 = vpack.c.b16 %v68, %v67
  %v82 = vpack.c.b16 %v70, %v69
  %v83 = vpack.c.b16 %v72, %v71
  %v84 = vpack.c.b16 %v74, %v73
  %v85 = vpack.c.b16 %v76, %v75
  %v86 = vpack.c.b16 %v78, %v77
  %95 = vmatprep.subr.bf16.mxu0 0
  %96 = vmatpush1.bf16.msra.mxu0 %v79
  %97 = vmatprep.subr.bf16.mxu0 0
  %98 = vmatpush1.bf16.msra.mxu0 %v80
  %99 = vmatprep.subr.bf16.mxu0 0
  %100 = vmatpush1.bf16.msra.mxu0 %v81
  %101 = vmatprep.subr.bf16.mxu0 0
  %102 = vmatpush1.bf16.msra.mxu0 %v82
  %103 = vmatprep.subr.bf16.mxu0 0
  %104 = vmatpush1.bf16.msra.mxu0 %v83
  %105 = vmatprep.subr.bf16.mxu0 0
  %106 = vmatpush1.bf16.msra.mxu0 %v84
  %107 = vmatprep.subr.bf16.mxu0 0
  %108 = vmatpush1.bf16.msra.mxu0 %v85
  %109 = vmatprep.subr.bf16.mxu0 0
  %110 = vmatpush1.bf16.msra.mxu0 %v86
  %111 = vmatprep.subr.bf16.mxu0 0
  %112 = vmatpush1.bf16.msra.mxu0 0
  %113 = vmatprep.subr.bf16.mxu0 0
  %114 = vmatpush1.bf16.msra.mxu0 0
  %115 = vmatprep.subr.bf16.mxu0 0
  %116 = vmatpush1.bf16.msra.mxu0 0
  %117 = vmatprep.subr.bf16.mxu0 0
  %118 = vmatpush1.bf16.msra.mxu0 0
  %119 = vmatprep.subr.bf16.mxu0 0
  %120 = vmatpush1.bf16.msra.mxu0 0
  %121 = vmatprep.subr.bf16.mxu0 0
  %122 = vmatpush1.bf16.msra.mxu0 0
  %123 = vmatprep.subr.bf16.mxu0 0
  %124 = vmatpush1.bf16.msra.mxu0 0
  %125 = vmatprep.subr.bf16.mxu0 0
  %126 = vmatpush1.bf16.msra.mxu0 0
  %127 = vmatprep.mubr.bf16.mxu0 0
  %128 = vmatmul.mubr.bf16.gmra.mrb[0].mxu0 %v45
  %v129 = vpop.f32.mrb[0].mxu0
  %v130 = vadd.f32 0.0, %v129
  %v131 = vpop.f32.mrb[0].mxu0
  %v132 = vpop.f32.mrb[0].mxu0
  %v133 = vadd.f32 0.0, %v132
  %v134 = vpop.f32.mrb[0].mxu0
  %135 = vdwg.mxu0
  %v136 = vadd.f32 %v21, %v130
  %v137 = vadd.f32 %v22, %v133
  %138 = vst [vmem:[#allocation2] sm:$0xff] %v136
  %139 = vst [vmem:[#allocation2 + $0x8] sm:$0xff] %v137
  // Predicated region
  $region18: #{transformer_forward.33} parent=0 // pred_check
    %p140 = pneg %p15
  $region19: #{transformer_forward.33} parent=0 // pred_check_branch
    %142 = sbr.rel (%p140) target = $region21
  $region20: #{transformer_forward.33} parent=0 // pred_region
    %v143 = vld [vmem:[#allocation2] sm:$0xff]
    %v144 = vld [vmem:[#allocation2 + $0x8] sm:$0xff]
    %v145 = vld [vmem:[%s2] sm:$0x1]
    %v147 = vlaneseq
    %v148 = vshrl.u32 %v147, 7
    %v149 = vsub.s32 0, %v148
    %v150 = vrot.slane %v145, %v149
    %v152 = vadd.f32 %v143, %v150
    %v153 = vadd.f32 %v144, %v150
    %v154 = vpack.c.bf16 %v153, %v152
    %v156 = vunpack.c.l.b16 %v154
    %v157 = vunpack.c.h.b16 %v154
    %v158 = vpack.c.b16 %v156, %v156
    %v159 = vpack.c.b16 %v157, %v157
    %162 = vst [vmem:[%s3] sm:$0xf] %v158
    %163 = vst [vmem:[%s3 + $0x4] sm:$0xf] %v159
  $region21: #{transformer_forward.33} parent=0 // pred_fallthru
    _
  // Predicated region
  $region22: #{transformer_forward.33} parent=0 // pred_check
    _
  $region23: #{transformer_forward.33} parent=0 // pred_check_branch
    %165 = sbr.rel (0) target = $region25
  $region24: #{transformer_forward.33} parent=0 // pred_region
    _
  $region25: #{transformer_forward.33} parent=0 // pred_fallthru
    _
  // Predicated region
  $region26: #{transformer_forward.33} parent=0 // pred_check
    _
  $region27: #{transformer_forward.33} parent=0 // pred_check_branch
    %167 = sbr.rel (0) target = $region29
  $region28: #{transformer_forward.33} parent=0 // pred_region
    _
  $region29: #{transformer_forward.33} parent=0 // pred_fallthru
    _

// kernel: transformer_forward.35
$region0: #{transformer_forward.35}
  #allocation0 [shape = 'u32[]', space=smem, size = 0x4, offset = 0x4, fixed_abs, tag = 'smem constant byte address 0x4 - core index']
  #allocation1 [shape = 'u32[144,128]{1,0:T(1,128)}', space=vmem, size = 0x12000, scoped, tag = 'internal scratch']
  #allocation2 [shape = 'f32[16,128]{1,0:T(8,128)}', space=vmem, size = 0x2000, scoped, tag = 'scratch operand']
  %s0 = inlined_call_operand.vmem [shape: bf16[16,128], index: 0, kind: input, shape index: {}]
  %s1 = inlined_call_operand.vmem [shape: bf16[128,128], index: 1, kind: input, shape index: {}]
  %s2 = inlined_call_operand.vmem [shape: f32[1,128], index: 2, kind: input, shape index: {}]
  %s3 = inlined_call_operand.vmem [shape: f32[16,128], index: 3, kind: output, shape index: {}]
  %s4 = sld [smem:[#allocation0]]
  $region30: #{transformer_forward.35} parent=0
    _
  %s6 = ssub.s32 1, %s4
  %s7 = scalar_select 0, %s6, %s4
  // Predicated region
  $region2: #{transformer_forward.35} parent=0 // pred_check
    _
  $region3: #{transformer_forward.35} parent=0 // pred_check_branch
    %9 = sbr.rel (0) target = $region5
  $region4: #{transformer_forward.35} parent=0 // pred_region
    _
  $region5: #{transformer_forward.35} parent=0 // pred_fallthru
    _
  // Predicated region
  $region6: #{transformer_forward.35} parent=0 // pred_check
    _
  $region7: #{transformer_forward.35} parent=0 // pred_check_branch
    %11 = sbr.rel (0) target = $region9
  $region8: #{transformer_forward.35} parent=0 // pred_region
    _
  $region9: #{transformer_forward.35} parent=0 // pred_fallthru
    _
  // Predicated region
  $region10: #{transformer_forward.35} parent=0 // pred_check
    _
  $region11: #{transformer_forward.35} parent=0 // pred_check_branch
    %13 = sbr.rel (0) target = $region13
  $region12: #{transformer_forward.35} parent=0 // pred_region
    _
  $region13: #{transformer_forward.35} parent=0 // pred_fallthru
    _
  %p15 = scmp.eq.s32.totalorder 0, 0
  // Predicated region
  $region14: #{transformer_forward.35} parent=0 // pred_check
    %p16 = pneg %p15
  $region15: #{transformer_forward.35} parent=0 // pred_check_branch
    %18 = sbr.rel (%p16) target = $region17
  $region16: #{transformer_forward.35} parent=0 // pred_region
    %19 = vst [vmem:[#allocation2] sm:$0xff] 0.0
    %20 = vst [vmem:[#allocation2 + $0x8] sm:$0xff] 0.0
  $region17: #{transformer_forward.35} parent=0 // pred_fallthru
    _
  %v21 = vld [vmem:[#allocation2] sm:$0xff]
  %v22 = vld [vmem:[#allocation2 + $0x8] sm:$0xff]
  %v23 = vld [vmem:[%s0] sm:$0xf]
  %v24 = vld [vmem:[%s0 + $0x4] sm:$0xf]
  %v25 = vld [vmem:[%s1] sm:$0xf]
  %v26 = vld [vmem:[%s1 + $0x4] sm:$0xf]
  %v27 = vld [vmem:[%s1 + $0x8] sm:$0xf]
  %v28 = vld [vmem:[%s1 + $0xc] sm:$0xf]
  %v29 = vld [vmem:[%s1 + $0x10] sm:$0xf]
  %v30 = vld [vmem:[%s1 + $0x14] sm:$0xf]
  %v31 = vld [vmem:[%s1 + $0x18] sm:$0xf]
  %v32 = vld [vmem:[%s1 + $0x1c] sm:$0xf]
  %v33 = vld [vmem:[%s1 + $0x20] sm:$0xf]
  %v34 = vld [vmem:[%s1 + $0x24] sm:$0xf]
  %v35 = vld [vmem:[%s1 + $0x28] sm:$0xf]
  %v36 = vld [vmem:[%s1 + $0x2c] sm:$0xf]
  %v37 = vld [vmem:[%s1 + $0x30] sm:$0xf]
  %v38 = vld [vmem:[%s1 + $0x34] sm:$0xf]
  %v39 = vld [vmem:[%s1 + $0x38] sm:$0xf]
  %v40 = vld [vmem:[%s1 + $0x3c] sm:$0xf]
  %v43 = vunpack.c.l.b16 %v23
  %v44 = vunpack.c.l.b16 %v24
  %v45 = vpack.c.b16 %v44, %v43
  %v63 = vunpack.c.l.b16 %v25
  %v64 = vunpack.c.l.b16 %v26
  %v65 = vunpack.c.l.b16 %v27
  %v66 = vunpack.c.l.b16 %v28
  %v67 = vunpack.c.l.b16 %v29
  %v68 = vunpack.c.l.b16 %v30
  %v69 = vunpack.c.l.b16 %v31
  %v70 = vunpack.c.l.b16 %v32
  %v71 = vunpack.c.l.b16 %v33
  %v72 = vunpack.c.l.b16 %v34
  %v73 = vunpack.c.l.b16 %v35
  %v74 = vunpack.c.l.b16 %v36
  %v75 = vunpack.c.l.b16 %v37
  %v76 = vunpack.c.l.b16 %v38
  %v77 = vunpack.c.l.b16 %v39
  %v78 = vunpack.c.l.b16 %v40
  %v79 = vpack.c.b16 %v64, %v63
  %v80 = vpack.c.b16 %v66, %v65
  %v81 = vpack.c.b16 %v68, %v67
  %v82 = vpack.c.b16 %v70, %v69
  %v83 = vpack.c.b16 %v72, %v71
  %v84 = vpack.c.b16 %v74, %v73
  %v85 = vpack.c.b16 %v76, %v75
  %v86 = vpack.c.b16 %v78, %v77
  %95 = vmatprep.subr.bf16.mxu0 0
  %96 = vmatpush1.bf16.msra.mxu0 %v79
  %97 = vmatprep.subr.bf16.mxu0 0
  %98 = vmatpush1.bf16.msra.mxu0 %v80
  %99 = vmatprep.subr.bf16.mxu0 0
  %100 = vmatpush1.bf16.msra.mxu0 %v81
  %101 = vmatprep.subr.bf16.mxu0 0
  %102 = vmatpush1.bf16.msra.mxu0 %v82
  %103 = vmatprep.subr.bf16.mxu0 0
  %104 = vmatpush1.bf16.msra.mxu0 %v83
  %105 = vmatprep.subr.bf16.mxu0 0
  %106 = vmatpush1.bf16.msra.mxu0 %v84
  %107 = vmatprep.subr.bf16.mxu0 0
  %108 = vmatpush1.bf16.msra.mxu0 %v85
  %109 = vmatprep.subr.bf16.mxu0 0
  %110 = vmatpush1.bf16.msra.mxu0 %v86
  %111 = vmatprep.subr.bf16.mxu0 0
  %112 = vmatpush1.bf16.msra.mxu0 0
  %113 = vmatprep.subr.bf16.mxu0 0
  %114 = vmatpush1.bf16.msra.mxu0 0
  %115 = vmatprep.subr.bf16.mxu0 0
  %116 = vmatpush1.bf16.msra.mxu0 0
  %117 = vmatprep.subr.bf16.mxu0 0
  %118 = vmatpush1.bf16.msra.mxu0 0
  %119 = vmatprep.subr.bf16.mxu0 0
  %120 = vmatpush1.bf16.msra.mxu0 0
  %121 = vmatprep.subr.bf16.mxu0 0
  %122 = vmatpush1.bf16.msra.mxu0 0
  %123 = vmatprep.subr.bf16.mxu0 0
  %124 = vmatpush1.bf16.msra.mxu0 0
  %125 = vmatprep.subr.bf16.mxu0 0
  %126 = vmatpush1.bf16.msra.mxu0 0
  %127 = vmatprep.mubr.bf16.mxu0 0
  %128 = vmatmul.mubr.bf16.gmra.mrb[0].mxu0 %v45
  %v129 = vpop.f32.mrb[0].mxu0
  %v130 = vadd.f32 0.0, %v129
  %v131 = vpop.f32.mrb[0].mxu0
  %v132 = vpop.f32.mrb[0].mxu0
  %v133 = vadd.f32 0.0, %v132
  %v134 = vpop.f32.mrb[0].mxu0
  %135 = vdwg.mxu0
  %v136 = vadd.f32 %v21, %v130
  %v137 = vadd.f32 %v22, %v133
  %138 = vst [vmem:[#allocation2] sm:$0xff] %v136
  %139 = vst [vmem:[#allocation2 + $0x8] sm:$0xff] %v137
  // Predicated region
  $region18: #{transformer_forward.35} parent=0 // pred_check
    %p140 = pneg %p15
  $region19: #{transformer_forward.35} parent=0 // pred_check_branch
    %142 = sbr.rel (%p140) target = $region21
  $region20: #{transformer_forward.35} parent=0 // pred_region
    %v143 = vld [vmem:[#allocation2] sm:$0xff]
    %v144 = vld [vmem:[#allocation2 + $0x8] sm:$0xff]
    %v145 = vld [vmem:[%s2] sm:$0x1]
    %v147 = vlaneseq
    %v148 = vshrl.u32 %v147, 7
    %v149 = vsub.s32 0, %v148
    %v150 = vrot.slane %v145, %v149
    %v152 = vadd.f32 %v143, %v150
    %v153 = vadd.f32 %v144, %v150
    %154 = vst [vmem:[%s3] sm:$0xff] %v152
    %155 = vst [vmem:[%s3 + $0x8] sm:$0xff] %v153
  $region21: #{transformer_forward.35} parent=0 // pred_fallthru
    _
  // Predicated region
  $region22: #{transformer_forward.35} parent=0 // pred_check
    _
  $region23: #{transformer_forward.35} parent=0 // pred_check_branch
    %157 = sbr.rel (0) target = $region25
  $region24: #{transformer_forward.35} parent=0 // pred_region
    _
  $region25: #{transformer_forward.35} parent=0 // pred_fallthru
    _
  // Predicated region
  $region26: #{transformer_forward.35} parent=0 // pred_check
    _
  $region27: #{transformer_forward.35} parent=0 // pred_check_branch
    %159 = sbr.rel (0) target = $region29
  $region28: #{transformer_forward.35} parent=0 // pred_region
    _
  $region29: #{transformer_forward.35} parent=0 // pred_fallthru
    _

// kernel: transformer_forward.37
$region0: #{transformer_forward.37}
  #allocation0 [shape = 'u32[]', space=smem, size = 0x4, offset = 0x4, fixed_abs, tag = 'smem constant byte address 0x4 - core index']
  #allocation1 [shape = 'u32[144,128]{1,0:T(1,128)}', space=vmem, size = 0x12000, scoped, tag = 'internal scratch']
  #allocation2 [shape = 'f32[16,128]{1,0:T(8,128)}', space=vmem, size = 0x2000, scoped, tag = 'scratch operand']
  %s0 = inlined_call_operand.vmem [shape: bf16[16,128], index: 0, kind: input, shape index: {}]
  %s1 = inlined_call_operand.vmem [shape: bf16[128,128], index: 1, kind: input, shape index: {}]
  %s2 = inlined_call_operand.vmem [shape: f32[1,128], index: 2, kind: input, shape index: {}]
  %s3 = inlined_call_operand.vmem [shape: bf16[16,128], index: 3, kind: output, shape index: {}]
  %s4 = sld [smem:[#allocation0]]
  $region30: #{transformer_forward.37} parent=0
    _
  %s6 = ssub.s32 1, %s4
  %s7 = scalar_select 0, %s6, %s4
  // Predicated region
  $region2: #{transformer_forward.37} parent=0 // pred_check
    _
  $region3: #{transformer_forward.37} parent=0 // pred_check_branch
    %9 = sbr.rel (0) target = $region5
  $region4: #{transformer_forward.37} parent=0 // pred_region
    _
  $region5: #{transformer_forward.37} parent=0 // pred_fallthru
    _
  // Predicated region
  $region6: #{transformer_forward.37} parent=0 // pred_check
    _
  $region7: #{transformer_forward.37} parent=0 // pred_check_branch
    %11 = sbr.rel (0) target = $region9
  $region8: #{transformer_forward.37} parent=0 // pred_region
    _
  $region9: #{transformer_forward.37} parent=0 // pred_fallthru
    _
  // Predicated region
  $region10: #{transformer_forward.37} parent=0 // pred_check
    _
  $region11: #{transformer_forward.37} parent=0 // pred_check_branch
    %13 = sbr.rel (0) target = $region13
  $region12: #{transformer_forward.37} parent=0 // pred_region
    _
  $region13: #{transformer_forward.37} parent=0 // pred_fallthru
    _
  %p15 = scmp.eq.s32.totalorder 0, 0
  // Predicated region
  $region14: #{transformer_forward.37} parent=0 // pred_check
    %p16 = pneg %p15
  $region15: #{transformer_forward.37} parent=0 // pred_check_branch
    %18 = sbr.rel (%p16) target = $region17
  $region16: #{transformer_forward.37} parent=0 // pred_region
    %19 = vst [vmem:[#allocation2] sm:$0xff] 0.0
    %20 = vst [vmem:[#allocation2 + $0x8] sm:$0xff] 0.0
  $region17: #{transformer_forward.37} parent=0 // pred_fallthru
    _
  %v21 = vld [vmem:[#allocation2] sm:$0xff]
  %v22 = vld [vmem:[#allocation2 + $0x8] sm:$0xff]
  %v23 = vld [vmem:[%s0] sm:$0xf]
  %v24 = vld [vmem:[%s0 + $0x4] sm:$0xf]
  %v25 = vld [vmem:[%s1] sm:$0xf]
  %v26 = vld [vmem:[%s1 + $0x4] sm:$0xf]
  %v27 = vld [vmem:[%s1 + $0x8] sm:$0xf]
  %v28 = vld [vmem:[%s1 + $0xc] sm:$0xf]
  %v29 = vld [vmem:[%s1 + $0x10] sm:$0xf]
  %v30 = vld [vmem:[%s1 + $0x14] sm:$0xf]
  %v31 = vld [vmem:[%s1 + $0x18] sm:$0xf]
  %v32 = vld [vmem:[%s1 + $0x1c] sm:$0xf]
  %v33 = vld [vmem:[%s1 + $0x20] sm:$0xf]
  %v34 = vld [vmem:[%s1 + $0x24] sm:$0xf]
  %v35 = vld [vmem:[%s1 + $0x28] sm:$0xf]
  %v36 = vld [vmem:[%s1 + $0x2c] sm:$0xf]
  %v37 = vld [vmem:[%s1 + $0x30] sm:$0xf]
  %v38 = vld [vmem:[%s1 + $0x34] sm:$0xf]
  %v39 = vld [vmem:[%s1 + $0x38] sm:$0xf]
  %v40 = vld [vmem:[%s1 + $0x3c] sm:$0xf]
  %v43 = vunpack.c.l.b16 %v23
  %v44 = vunpack.c.l.b16 %v24
  %v45 = vpack.c.b16 %v44, %v43
  %v63 = vunpack.c.l.b16 %v25
  %v64 = vunpack.c.l.b16 %v26
  %v65 = vunpack.c.l.b16 %v27
  %v66 = vunpack.c.l.b16 %v28
  %v67 = vunpack.c.l.b16 %v29
  %v68 = vunpack.c.l.b16 %v30
  %v69 = vunpack.c.l.b16 %v31
  %v70 = vunpack.c.l.b16 %v32
  %v71 = vunpack.c.l.b16 %v33
  %v72 = vunpack.c.l.b16 %v34
  %v73 = vunpack.c.l.b16 %v35
  %v74 = vunpack.c.l.b16 %v36
  %v75 = vunpack.c.l.b16 %v37
  %v76 = vunpack.c.l.b16 %v38
  %v77 = vunpack.c.l.b16 %v39
  %v78 = vunpack.c.l.b16 %v40
  %v79 = vpack.c.b16 %v64, %v63
  %v80 = vpack.c.b16 %v66, %v65
  %v81 = vpack.c.b16 %v68, %v67
  %v82 = vpack.c.b16 %v70, %v69
  %v83 = vpack.c.b16 %v72, %v71
  %v84 = vpack.c.b16 %v74, %v73
  %v85 = vpack.c.b16 %v76, %v75
  %v86 = vpack.c.b16 %v78, %v77
  %95 = vmatprep.subr.bf16.mxu0 0
  %96 = vmatpush1.bf16.msra.mxu0 %v79
  %97 = vmatprep.subr.bf16.mxu0 0
  %98 = vmatpush1.bf16.msra.mxu0 %v80
  %99 = vmatprep.subr.bf16.mxu0 0
  %100 = vmatpush1.bf16.msra.mxu0 %v81
  %101 = vmatprep.subr.bf16.mxu0 0
  %102 = vmatpush1.bf16.msra.mxu0 %v82
  %103 = vmatprep.subr.bf16.mxu0 0
  %104 = vmatpush1.bf16.msra.mxu0 %v83
  %105 = vmatprep.subr.bf16.mxu0 0
  %106 = vmatpush1.bf16.msra.mxu0 %v84
  %107 = vmatprep.subr.bf16.mxu0 0
  %108 = vmatpush1.bf16.msra.mxu0 %v85
  %109 = vmatprep.subr.bf16.mxu0 0
  %110 = vmatpush1.bf16.msra.mxu0 %v86
  %111 = vmatprep.subr.bf16.mxu0 0
  %112 = vmatpush1.bf16.msra.mxu0 0
  %113 = vmatprep.subr.bf16.mxu0 0
  %114 = vmatpush1.bf16.msra.mxu0 0
  %115 = vmatprep.subr.bf16.mxu0 0
  %116 = vmatpush1.bf16.msra.mxu0 0
  %117 = vmatprep.subr.bf16.mxu0 0
  %118 = vmatpush1.bf16.msra.mxu0 0
  %119 = vmatprep.subr.bf16.mxu0 0
  %120 = vmatpush1.bf16.msra.mxu0 0
  %121 = vmatprep.subr.bf16.mxu0 0
  %122 = vmatpush1.bf16.msra.mxu0 0
  %123 = vmatprep.subr.bf16.mxu0 0
  %124 = vmatpush1.bf16.msra.mxu0 0
  %125 = vmatprep.subr.bf16.mxu0 0
  %126 = vmatpush1.bf16.msra.mxu0 0
  %127 = vmatprep.mubr.bf16.mxu0 0
  %128 = vmatmul.mubr.bf16.gmra.mrb[0].mxu0 %v45
  %v129 = vpop.f32.mrb[0].mxu0
  %v130 = vadd.f32 0.0, %v129
  %v131 = vpop.f32.mrb[0].mxu0
  %v132 = vpop.f32.mrb[0].mxu0
  %v133 = vadd.f32 0.0, %v132
  %v134 = vpop.f32.mrb[0].mxu0
  %135 = vdwg.mxu0
  %v136 = vadd.f32 %v21, %v130
  %v137 = vadd.f32 %v22, %v133
  %138 = vst [vmem:[#allocation2] sm:$0xff] %v136
  %139 = vst [vmem:[#allocation2 + $0x8] sm:$0xff] %v137
  // Predicated region
  $region18: #{transformer_forward.37} parent=0 // pred_check
    %p140 = pneg %p15
  $region19: #{transformer_forward.37} parent=0 // pred_check_branch
    %142 = sbr.rel (%p140) target = $region21
  $region20: #{transformer_forward.37} parent=0 // pred_region
    %v143 = vld [vmem:[#allocation2] sm:$0xff]
    %v144 = vld [vmem:[#allocation2 + $0x8] sm:$0xff]
    %v145 = vld [vmem:[%s2] sm:$0x1]
    %v147 = vlaneseq
    %v148 = vshrl.u32 %v147, 7
    %v149 = vsub.s32 0, %v148
    %v150 = vrot.slane %v145, %v149
    %v152 = vadd.f32 %v143, %v150
    %v153 = vadd.f32 %v144, %v150
    %v154 = vpack.c.bf16 %v153, %v152
    %v156 = vunpack.c.l.b16 %v154
    %v157 = vunpack.c.h.b16 %v154
    %v158 = vpack.c.b16 %v156, %v156
    %v159 = vpack.c.b16 %v157, %v157
    %162 = vst [vmem:[%s3] sm:$0xf] %v158
    %163 = vst [vmem:[%s3 + $0x4] sm:$0xf] %v159
  $region21: #{transformer_forward.37} parent=0 // pred_fallthru
    _
  // Predicated region
  $region22: #{transformer_forward.37} parent=0 // pred_check
    _
  $region23: #{transformer_forward.37} parent=0 // pred_check_branch
    %165 = sbr.rel (0) target = $region25
  $region24: #{transformer_forward.37} parent=0 // pred_region
    _
  $region25: #{transformer_forward.37} parent=0 // pred_fallthru
    _
  // Predicated region
  $region26: #{transformer_forward.37} parent=0 // pred_check
    _
  $region27: #{transformer_forward.37} parent=0 // pred_check_branch
    %167 = sbr.rel (0) target = $region29
  $region28: #{transformer_forward.37} parent=0 // pred_region
    _
  $region29: #{transformer_forward.37} parent=0 // pred_fallthru
    _

// kernel: transformer_forward.34
$region0: #{transformer_forward.34}
  #allocation0 [shape = 'u32[]', space=smem, size = 0x4, offset = 0x4, fixed_abs, tag = 'smem constant byte address 0x4 - core index']
  #allocation1 [shape = 'u32[144,128]{1,0:T(1,128)}', space=vmem, size = 0x12000, scoped, tag = 'internal scratch']
  #allocation2 [shape = 'f32[8,1]{1,0:T(8,128)}', space=vmem, size = 0x1000, scoped, tag = 'scratch operand']
  #allocation3 [shape = 'f32[8,1]{1,0:T(8,128)}', space=vmem, size = 0x1000, scoped, tag = 'scratch operand']
  #allocation4 [shape = 'f32[8,8]{1,0:T(8,128)}', space=vmem, size = 0x1000, scoped, tag = 'scratch operand']
  %s0 = inlined_call_operand.vmem [shape: bf16[8,8,8], index: 0, kind: input, shape index: {}]
  %s1 = inlined_call_operand.vmem [shape: bf16[8,8,8], index: 1, kind: input, shape index: {}]
  %s2 = inlined_call_operand.vmem [shape: bf16[8,8,8], index: 2, kind: input, shape index: {}]
  %s3 = inlined_call_operand.vmem [shape: bf16[8,8,8], index: 3, kind: output, shape index: {}]
  %s4 = sld [smem:[#allocation0]]
  $region57: #{transformer_forward.34} parent=0
    _
  %s6 = ssub.s32 1, %s4
  %s7 = scalar_select 0, %s6, %s4
  loop: start=0, step=1, limit=10
  $region2: #{transformer_forward.34} parent=0 // loop_pre_header
    _
  $region3: #{transformer_forward.34} parent=0 // loop_header
    %s9 = sphi 0, %s13
    %p10 = scmp.ge.s32.totalorder %s9, 10
    %s16 = sphi 0, %s35
    %s17 = sphi 0, %s31
    %s18 = sphi 0, %s27
    %s19 = sphi 0, %s16
    %s20 = sphi 0, %s17
    %s21 = sphi 0, %s18
    %s22 = sphi 0, %s19
    %s23 = sphi 0, %s20
    %s24 = sphi 0, %s21
    %s40 = sphi 0, %s42
    %s43 = sphi 0, %s40
    %s44 = sphi 0, %s43
    %s60 = sphi 0, %s44
    %s68 = sphi 0, %s70
    %s71 = sphi 0, %s68
    %s72 = sphi 0, %s71
    %s88 = sphi 0, %s72
    %s96 = sphi 0, %s98
    %s99 = sphi 0, %s96
    %s100 = sphi 0, %s99
    %s116 = sphi 0, %s100
    %s124 = sphi 0, %s126
    %s127 = sphi 0, %s124
    %s128 = sphi 0, %s127
    %s144 = sphi 0, %s128
  $region4: #{transformer_forward.34} parent=0 // loop_header_branch
    %12 = sbr.rel (%p10) target = $region8
  $region5: #{transformer_forward.34} parent=0 // loop_body
    %s14 = ssub.s32 %s9, 1
    %s15 = ssub.s32 %s9, 2
    %s25 = sadd.s32 1, %s18
    %p26 = scmp.ge.s32.totalorder %s25, 1
    %s27 = scalar_select %p26, 0, %s25
    %s28 = sadd.s32 1, %s17
    %s29 = scalar_select %p26, %s28, %s17
    %p30 = scmp.ge.s32.totalorder %s29, 1
    %s31 = scalar_select %p30, 0, %s29
    %s32 = sadd.s32 1, %s16
    %s33 = scalar_select %p30, %s32, %s16
    %p34 = scmp.ge.s32.totalorder %s33, 8
    %s35 = scalar_select %p34, 0, %s33
    %s36 = ssub.s32 %s16, %s35
    %s37 = ssub.s32 %s17, %s31
    %s38 = sor.u32 %s36, %s37
    %p39 = scmp.eq.s32.totalorder %s38, 0
    %s41 = sadd.s32 %s40, 1
    %s42 = scalar_select %p39, %s40, %s41
    %p45 = pneg %p39
    %p46 = scmp.eq.s32.totalorder %s9, 7
    %p47 = por %p45, %p46
    %p48 = scmp.ne.s32.totalorder %s40, %s43
    %p49 = scmp.eq.s32.totalorder %s9, 0
    %p50 = por %p48, %p49
    %p51 = scmp.ne.s32.totalorder %s40, %s43
    %p52 = scmp.eq.s32.totalorder %s14, 7
    %p53 = por %p51, %p52
    %p54 = scmp.ne.s32.totalorder %s43, %s44
    %p55 = scmp.eq.s32.totalorder %s14, 0
    %p56 = por %p54, %p55
    %p57 = scmp.ne.s32.totalorder %s43, %s44
    %p58 = scmp.eq.s32.totalorder %s15, 7
    %p59 = por %p57, %p58
    %p61 = scmp.ne.s32.totalorder %s44, %s60
    %p62 = scmp.eq.s32.totalorder %s15, 0
    %p63 = por %p61, %p62
    %s64 = ssub.s32 %s16, %s35
    %s65 = ssub.s32 %s18, %s27
    %s66 = sor.u32 %s64, %s65
    %p67 = scmp.eq.s32.totalorder %s66, 0
    %s69 = sadd.s32 %s68, 1
    %s70 = scalar_select %p67, %s68, %s69
    %p73 = pneg %p67
    %p74 = scmp.eq.s32.totalorder %s9, 7
    %p75 = por %p73, %p74
    %p76 = scmp.ne.s32.totalorder %s68, %s71
    %p77 = scmp.eq.s32.totalorder %s9, 0
    %p78 = por %p76, %p77
    %p79 = scmp.ne.s32.totalorder %s68, %s71
    %p80 = scmp.eq.s32.totalorder %s14, 7
    %p81 = por %p79, %p80
    %p82 = scmp.ne.s32.totalorder %s71, %s72
    %p83 = scmp.eq.s32.totalorder %s14, 0
    %p84 = por %p82, %p83
    %p85 = scmp.ne.s32.totalorder %s71, %s72
    %p86 = scmp.eq.s32.totalorder %s15, 7
    %p87 = por %p85, %p86
    %p89 = scmp.ne.s32.totalorder %s72, %s88
    %p90 = scmp.eq.s32.totalorder %s15, 0
    %p91 = por %p89, %p90
    %s92 = ssub.s32 %s16, %s35
    %s93 = ssub.s32 %s18, %s27
    %s94 = sor.u32 %s92, %s93
    %p95 = scmp.eq.s32.totalorder %s94, 0
    %s97 = sadd.s32 %s96, 1
    %s98 = scalar_select %p95, %s96, %s97
    %p101 = pneg %p95
    %p102 = scmp.eq.s32.totalorder %s9, 7
    %p103 = por %p101, %p102
    %p104 = scmp.ne.s32.totalorder %s96, %s99
    %p105 = scmp.eq.s32.totalorder %s9, 0
    %p106 = por %p104, %p105
    %p107 = scmp.ne.s32.totalorder %s96, %s99
    %p108 = scmp.eq.s32.totalorder %s14, 7
    %p109 = por %p107, %p108
    %p110 = scmp.ne.s32.totalorder %s99, %s100
    %p111 = scmp.eq.s32.totalorder %s14, 0
    %p112 = por %p110, %p111
    %p113 = scmp.ne.s32.totalorder %s99, %s100
    %p114 = scmp.eq.s32.totalorder %s15, 7
    %p115 = por %p113, %p114
    %p117 = scmp.ne.s32.totalorder %s100, %s116
    %p118 = scmp.eq.s32.totalorder %s15, 0
    %p119 = por %p117, %p118
    %s120 = ssub.s32 %s16, %s35
    %s121 = ssub.s32 %s17, %s31
    %s122 = sor.u32 %s120, %s121
    %p123 = scmp.eq.s32.totalorder %s122, 0
    %s125 = sadd.s32 %s124, 1
    %s126 = scalar_select %p123, %s124, %s125
    %p129 = pneg %p123
    %p130 = scmp.eq.s32.totalorder %s9, 7
    %p131 = por %p129, %p130
    %p132 = scmp.ne.s32.totalorder %s124, %s127
    %p133 = scmp.eq.s32.totalorder %s9, 0
    %p134 = por %p132, %p133
    %p135 = scmp.ne.s32.totalorder %s124, %s127
    %p136 = scmp.eq.s32.totalorder %s14, 7
    %p137 = por %p135, %p136
    %p138 = scmp.ne.s32.totalorder %s127, %s128
    %p139 = scmp.eq.s32.totalorder %s14, 0
    %p140 = por %p138, %p139
    %p141 = scmp.ne.s32.totalorder %s127, %s128
    %p142 = scmp.eq.s32.totalorder %s15, 7
    %p143 = por %p141, %p142
    %p145 = scmp.ne.s32.totalorder %s128, %s144
    %p146 = scmp.eq.s32.totalorder %s15, 0
    %p147 = por %p145, %p146
    %p148 = scmp.le.s32.totalorder 1, %s9
    %p149 = scmp.lt.s32.totalorder %s9, 9
    %p150 = pnand %p148, %p149
    %p151 = pneg %p150
    // Predicated region
    $region9: #{transformer_forward.34} parent=5 // pred_check
      _
    $region10: #{transformer_forward.34} parent=5 // pred_check_branch
      %153 = sbr.rel (%p150) target = $region12
    $region11: #{transformer_forward.34} parent=5 // pred_region
      %s154 = ssub.s32 %s9, 1
    $region12: #{transformer_forward.34} parent=5 // pred_fallthru
      _
    %p155 = scmp.lt.s32.totalorder %s9, 8
    // Predicated region
    $region13: #{transformer_forward.34} parent=5 // pred_check
      %p156 = pneg %p155
    $region14: #{transformer_forward.34} parent=5 // pred_check_branch
      %158 = sbr.rel (%p156) target = $region16
    $region15: #{transformer_forward.34} parent=5 // pred_region
      // Predicated region
      $region17: #{transformer_forward.34} parent=15 // pred_check
        %p159 = pneg %p50
      $region18: #{transformer_forward.34} parent=15 // pred_check_branch
        %161 = sbr.rel (%p159) target = $region20
      $region19: #{transformer_forward.34} parent=15 // pred_region
        %p162 = scmp.lt.s32.totalorder %s16, 7
        %s163 = scalar_select %p162, %s16, 7
        %p164 = scmp.lt.s32.totalorder %s17, 0
        %s165 = scalar_select %p164, %s17, 0
        %s166 = sadd.s32 %s165, %s163
        %s167 = smul.addr %s166, 4
        %s168 = scalar_lea.vmem %s0, %s167
      $region20: #{transformer_forward.34} parent=15 // pred_fallthru
        _
      // Predicated region
      $region21: #{transformer_forward.34} parent=15 // pred_check
        %p169 = pneg %p78
      $region22: #{transformer_forward.34} parent=15 // pred_check_branch
        %171 = sbr.rel (%p169) target = $region24
      $region23: #{transformer_forward.34} parent=15 // pred_region
        %p172 = scmp.lt.s32.totalorder %s16, 7
        %s173 = scalar_select %p172, %s16, 7
        %p174 = scmp.lt.s32.totalorder %s18, 0
        %s175 = scalar_select %p174, %s18, 0
        %s176 = sadd.s32 %s175, %s173
        %s177 = smul.addr %s176, 4
        %s178 = scalar_lea.vmem %s1, %s177
      $region24: #{transformer_forward.34} parent=15 // pred_fallthru
        _
      // Predicated region
      $region25: #{transformer_forward.34} parent=15 // pred_check
        %p179 = pneg %p106
      $region26: #{transformer_forward.34} parent=15 // pred_check_branch
        %181 = sbr.rel (%p179) target = $region28
      $region27: #{transformer_forward.34} parent=15 // pred_region
        %p182 = scmp.lt.s32.totalorder %s16, 7
        %s183 = scalar_select %p182, %s16, 7
        %p184 = scmp.lt.s32.totalorder %s18, 0
        %s185 = scalar_select %p184, %s18, 0
        %s186 = sadd.s32 %s185, %s183
        %s187 = smul.addr %s186, 4
        %s188 = scalar_lea.vmem %s2, %s187
      $region28: #{transformer_forward.34} parent=15 // pred_fallthru
        _
    $region16: #{transformer_forward.34} parent=5 // pred_fallthru
      _
    %p189 = scmp.le.s32.totalorder 1, %s9
    %p190 = scmp.lt.s32.totalorder %s9, 9
    %p191 = pnand %p189, %p190
    %p192 = pneg %p191
    // Predicated region
    $region29: #{transformer_forward.34} parent=5 // pred_check
      _
    $region30: #{transformer_forward.34} parent=5 // pred_check_branch
      %194 = sbr.rel (%p191) target = $region32
    $region31: #{transformer_forward.34} parent=5 // pred_region
      %s195 = ssub.s32 %s9, 1
      %p196 = scmp.lt.s32.totalorder %s19, 7
      %s197 = scalar_select %p196, %s19, 7
      %p198 = scmp.lt.s32.totalorder %s20, 0
      %s199 = scalar_select %p198, %s20, 0
      %s200 = sadd.s32 %s199, %s197
      %s201 = smul.addr %s200, 4
      %s202 = scalar_lea.vmem %s0, %s201
      %p203 = pneg %p56
      %p204 = pneg %p53
      %p205 = scmp.lt.s32.totalorder %s19, 7
      %s206 = scalar_select %p205, %s19, 7
      %p207 = scmp.lt.s32.totalorder %s21, 0
      %s208 = scalar_select %p207, %s21, 0
      %s209 = sadd.s32 %s208, %s206
      %s210 = smul.addr %s209, 4
      %s211 = scalar_lea.vmem %s1, %s210
      %p212 = pneg %p84
      %p213 = pneg %p81
      %p214 = scmp.lt.s32.totalorder %s19, 7
      %s215 = scalar_select %p214, %s19, 7
      %p216 = scmp.lt.s32.totalorder %s21, 0
      %s217 = scalar_select %p216, %s21, 0
      %s218 = sadd.s32 %s217, %s215
      %s219 = smul.addr %s218, 4
      %s220 = scalar_lea.vmem %s2, %s219
      %p221 = pneg %p112
      %p222 = pneg %p109
      %p223 = pneg %p140
      %p224 = pneg %p137
      %p225 = scmp.lt.s32.totalorder %s19, 7
      %s226 = scalar_select %p225, %s19, 7
      %p227 = scmp.lt.s32.totalorder %s20, 0
      %s228 = scalar_select %p227, %s20, 0
      %s229 = sadd.s32 %s228, %s226
      %s230 = smul.addr %s229, 4
      %s231 = scalar_lea.vmem %s3, %s230
      %p232 = scmp.lt.s32.totalorder %s19, 7
      %s233 = scalar_select %p232, %s19, 7
      %p234 = scmp.lt.s32.totalorder %s20, 0
      %s235 = scalar_select %p234, %s20, 0
      %s236 = sadd.s32 %s235, %s233
      %s237 = smul.addr %s236, 4
      %s238 = scalar_lea.vmem %s0, %s237
      %p239 = scmp.lt.s32.totalorder %s19, 7
      %s240 = scalar_select %p239, %s19, 7
      %p241 = scmp.lt.s32.totalorder %s21, 0
      %s242 = scalar_select %p241, %s21, 0
      %s243 = sadd.s32 %s242, %s240
      %s244 = smul.addr %s243, 4
      %s245 = scalar_lea.vmem %s1, %s244
      %p246 = scmp.lt.s32.totalorder %s19, 7
      %s247 = scalar_select %p246, %s19, 7
      %p248 = scmp.lt.s32.totalorder %s21, 0
      %s249 = scalar_select %p248, %s21, 0
      %s250 = sadd.s32 %s249, %s247
      %s251 = smul.addr %s250, 4
      %s252 = scalar_lea.vmem %s2, %s251
      %p253 = scmp.lt.s32.totalorder %s19, 7
      %s254 = scalar_select %p253, %s19, 7
      %p255 = scmp.lt.s32.totalorder %s20, 0
      %s256 = scalar_select %p255, %s20, 0
      %s257 = sadd.s32 %s256, %s254
      %s258 = smul.addr %s257, 4
      %s259 = scalar_lea.vmem %s3, %s258
      %p261 = scmp.eq.s32.totalorder %s21, 0
      // Predicated region
      $region33: #{transformer_forward.34} parent=31 // pred_check
        %p262 = pneg %p261
      $region34: #{transformer_forward.34} parent=31 // pred_check_branch
        %264 = sbr.rel (%p262) target = $region36
      $region35: #{transformer_forward.34} parent=31 // pred_region
        %vm265 = vcmask 7168
        %266 = vst.msk [vmem:[#allocation2] sm:$0xff] %vm265, -1e+30
        %267 = vst.msk [vmem:[#allocation3] sm:$0xff] %vm265, 0.0
        %vm268 = vcmask 64512
        %269 = vst.msk [vmem:[#allocation4] sm:$0xff] %vm268, 0.0
      $region36: #{transformer_forward.34} parent=31 // pred_fallthru
        _
      %s270 = smul.u32 %s21, 8
      %s271 = smul.u32 %s20, 8
      %s272 = sadd.s32 %s271, 7
      %p273 = scmp.le.s32.totalorder %s270, %s272
      // Predicated region
      $region37: #{transformer_forward.34} parent=31 // pred_check
        %p274 = pneg %p273
      $region38: #{transformer_forward.34} parent=31 // pred_check_branch
        %276 = sbr.rel (%p274) target = $region40
      $region39: #{transformer_forward.34} parent=31 // pred_region
        %v277 = vld [vmem:[%s238] sm:$0xf]
        %v278 = vld [vmem:[%s245] sm:$0xf]
        %v279 = vld [vmem:[%s252] sm:$0xf]
        %vm280 = vcmask 64512
        %v282 = vsel %vm280, %v277, 0
        %v285 = vsel %vm280, %v278, 0
        %287 = vmatprep.subr.bf16.mxu0 0
        %288 = vmatpush1.bf16.xpose.msra.mxu0 %v285
        %289 = vmatprep.subr.bf16.mxu0 0
        %290 = vmatpush1.bf16.xpose.msra.mxu0 0
        %291 = vmatprep.subr.bf16.mxu0 0
        %292 = vmatpush1.bf16.xpose.msra.mxu0 0
        %293 = vmatprep.subr.bf16.mxu0 0
        %294 = vmatpush1.bf16.xpose.msra.mxu0 0
        %295 = vmatprep.subr.bf16.mxu0 0
        %296 = vmatpush1.bf16.xpose.msra.mxu0 0
        %297 = vmatprep.subr.bf16.mxu0 0
        %298 = vmatpush1.bf16.xpose.msra.mxu0 0
        %299 = vmatprep.subr.bf16.mxu0 0
        %300 = vmatpush1.bf16.xpose.msra.mxu0 0
        %301 = vmatprep.subr.bf16.mxu0 0
        %302 = vmatpush1.bf16.xpose.msra.mxu0 0
        %303 = vmatprep.subr.bf16.mxu0 0
        %304 = vmatpush1.bf16.xpose.msra.mxu0 0
        %305 = vmatprep.subr.bf16.mxu0 0
        %306 = vmatpush1.bf16.xpose.msra.mxu0 0
        %307 = vmatprep.subr.bf16.mxu0 0
        %308 = vmatpush1.bf16.xpose.msra.mxu0 0
        %309 = vmatprep.subr.bf16.mxu0 0
        %310 = vmatpush1.bf16.xpose.msra.mxu0 0
        %311 = vmatprep.subr.bf16.mxu0 0
        %312 = vmatpush1.bf16.xpose.msra.mxu0 0
        %313 = vmatprep.subr.bf16.mxu0 0
        %314 = vmatpush1.bf16.xpose.msra.mxu0 0
        %315 = vmatprep.subr.bf16.mxu0 0
        %316 = vmatpush1.bf16.xpose.msra.mxu0 0
        %317 = vmatprep.subr.bf16.mxu0 0
        %318 = vmatpush1.bf16.xpose.msra.mxu0 0
        %319 = vmatprep.mubr.bf16.mxu0 0
        %320 = vmatmul.mubr.bf16.gmra.mrb[0].mxu0 %v282
        %v321 = vpop.f32.mrb[0].mxu0
        %v322 = vadd.f32 0.0, %v321
        %v323 = vpop.f32.mrb[0].mxu0
        %v324 = vpop.f32.mrb[0].mxu0
        %v325 = vpop.f32.mrb[0].mxu0
        %326 = vdwg.mxu0
        %v327 = vlaneseq
        %v328 = vshrl.u32 %v327, 7
        %v329 = vstv %s271
        %v330 = vadd.s32 %v329, %v328
        %v331 = vlaneseq
        %v332 = vand.u32 %v331, 127
        %v333 = vstv %s270
        %v334 = vadd.s32 %v333, %v332
        %vm335 = vcmp.lt.s32.totalorder %v334, 8
        %vm336 = vcmp.le.s32.totalorder %v334, %v330
        %vm337 = vmand %vm335, %vm336
        %v338 = vsel %vm337, %v322, -1e+30
        %v339 = vld [vmem:[#allocation2] sm:$0xff]
        %v340 = vsel %vm280, %v338, -inf
        %341 = vmax.xlane.f32.xlu0 %v340
        %v342 = vpop.xlane.xlu0 %341
        %v343 = vmax.f32 %v339, %v342
        %v344 = vsub.f32 %v339, %v343
        %v345 = vmul.f32 %v344, 1.442695
        %v346 = vpow.pop %v345
        %348 = vset.pattern.permute.xlu0 0
        %349 = vperm.xlu0 %348, %v343
        %v350 = vpop.permute.xlu0 %349
        %v352 = vsub.f32 %v338, %v350
        %v353 = vmul.f32 %v352, 1.442695
        %v354 = vpow.pop %v353
        %v355 = vld [vmem:[#allocation3] sm:$0xff]
        %v356 = vmul.f32 %v346, %v355
        %v357 = vsel %vm280, %v354, 0.0
        %358 = vadd.xlane.f32.xlu0 %v357
        %v359 = vpop.xlane.xlu0 %358
        %v360 = vadd.f32 %v356, %v359
        %vm361 = vcmask 7168
        %362 = vst.msk [vmem:[#allocation3] sm:$0xff] %vm361, %v360
        %v363 = vld [vmem:[#allocation4] sm:$0xff]
        %365 = vset.pattern.permute.xlu0 0
        %366 = vperm.xlu0 %365, %v346
        %v367 = vpop.permute.xlu0 %366
        %v369 = vmul.f32 %v367, %v363
        %v370 = vpack.c.bf16 %v354, %v354
        %v372 = vsel %vm280, %v370, 0
        %vm374 = vcmask 1043456
        %v376 = vsel %vm374, %v279, 0
        %378 = vmatprep.subr.bf16.mxu0 0
        %379 = vmatpush1.bf16.msra.mxu0 %v376
        %380 = vmatprep.subr.bf16.mxu0 0
        %381 = vmatpush1.bf16.msra.mxu0 0
        %382 = vmatprep.subr.bf16.mxu0 0
        %383 = vmatpush1.bf16.msra.mxu0 0
        %384 = vmatprep.subr.bf16.mxu0 0
        %385 = vmatpush1.bf16.msra.mxu0 0
        %386 = vmatprep.subr.bf16.mxu0 0
        %387 = vmatpush1.bf16.msra.mxu0 0
        %388 = vmatprep.subr.bf16.mxu0 0
        %389 = vmatpush1.bf16.msra.mxu0 0
        %390 = vmatprep.subr.bf16.mxu0 0
        %391 = vmatpush1.bf16.msra.mxu0 0
        %392 = vmatprep.subr.bf16.mxu0 0
        %393 = vmatpush1.bf16.msra.mxu0 0
        %394 = vmatprep.subr.bf16.mxu0 0
        %395 = vmatpush1.bf16.msra.mxu0 0
        %396 = vmatprep.subr.bf16.mxu0 0
        %397 = vmatpush1.bf16.msra.mxu0 0
        %398 = vmatprep.subr.bf16.mxu0 0
        %399 = vmatpush1.bf16.msra.mxu0 0
        %400 = vmatprep.subr.bf16.mxu0 0
        %401 = vmatpush1.bf16.msra.mxu0 0
        %402 = vmatprep.subr.bf16.mxu0 0
        %403 = vmatpush1.bf16.msra.mxu0 0
        %404 = vmatprep.subr.bf16.mxu0 0
        %405 = vmatpush1.bf16.msra.mxu0 0
        %406 = vmatprep.subr.bf16.mxu0 0
        %407 = vmatpush1.bf16.msra.mxu0 0
        %408 = vmatprep.subr.bf16.mxu0 0
        %409 = vmatpush1.bf16.msra.mxu0 0
        %410 = vmatprep.mubr.bf16.mxu0 0
        %411 = vmatmul.mubr.bf16.gmra.mrb[0].mxu0 %v372
        %v412 = vpop.f32.mrb[0].mxu0
        %v413 = vadd.f32 0.0, %v412
        %v414 = vpop.f32.mrb[0].mxu0
        %v415 = vpop.f32.mrb[0].mxu0
        %v416 = vpop.f32.mrb[0].mxu0
        %417 = vdwg.mxu0
        %v418 = vadd.f32 %v369, %v413
        %419 = vst.msk [vmem:[#allocation4] sm:$0xff] %vm280, %v418
        %420 = vst.msk [vmem:[#allocation2] sm:$0xff] %vm361, %v343
      $region40: #{transformer_forward.34} parent=31 // pred_fallthru
        _
      // Predicated region
      $region41: #{transformer_forward.34} parent=31 // pred_check
        %p421 = pneg %p261
      $region42: #{transformer_forward.34} parent=31 // pred_check_branch
        %423 = sbr.rel (%p421) target = $region44
      $region43: #{transformer_forward.34} parent=31 // pred_region
        %v424 = vld [vmem:[#allocation4] sm:$0xff]
        %v425 = vld [vmem:[#allocation3] sm:$0xff]
        %v426 = vrcp.pop %v425
        %428 = vset.pattern.permute.xlu0 0
        %429 = vperm.xlu0 %428, %v426
        %v430 = vpop.permute.xlu0 %429
        %v432 = vmul.f32 %v424, %v430
        %v433 = vpack.c.bf16 %v432, %v432
        %vm434 = vcmask 60416
        %435 = vst.msk [vmem:[%s259] sm:$0xf] %vm434, %v433
      $region44: #{transformer_forward.34} parent=31 // pred_fallthru
        _
      %p436 = scmp.lt.s32.totalorder %s19, 7
      %s437 = scalar_select %p436, %s19, 7
      %p438 = scmp.lt.s32.totalorder %s20, 0
      %s439 = scalar_select %p438, %s20, 0
      %s440 = sadd.s32 %s439, %s437
      %s441 = smul.addr %s440, 4
      %s442 = scalar_lea.vmem %s3, %s441
      // Predicated region
      $region45: #{transformer_forward.34} parent=31 // pred_check
        %p443 = pneg %p137
      $region46: #{transformer_forward.34} parent=31 // pred_check_branch
        %445 = sbr.rel (%p443) target = $region48
      $region47: #{transformer_forward.34} parent=31 // pred_region
        _
      $region48: #{transformer_forward.34} parent=31 // pred_fallthru
        _
    $region32: #{transformer_forward.34} parent=5 // pred_fallthru
      _
    %p446 = scmp.le.s32.totalorder 2, %s9
    // Predicated region
    $region49: #{transformer_forward.34} parent=5 // pred_check
      %p447 = pneg %p446
    $region50: #{transformer_forward.34} parent=5 // pred_check_branch
      %449 = sbr.rel (%p447) target = $region52
    $region51: #{transformer_forward.34} parent=5 // pred_region
      %s450 = ssub.s32 %s9, 2
      // Predicated region
      $region53: #{transformer_forward.34} parent=51 // pred_check
        %p451 = pneg %p143
      $region54: #{transformer_forward.34} parent=51 // pred_check_branch
        %453 = sbr.rel (%p451) target = $region56
      $region55: #{transformer_forward.34} parent=51 // pred_region
        %p454 = scmp.lt.s32.totalorder %s22, 7
        %s455 = scalar_select %p454, %s22, 7
        %p456 = scmp.lt.s32.totalorder %s23, 0
        %s457 = scalar_select %p456, %s23, 0
        %s458 = sadd.s32 %s457, %s455
        %s459 = smul.addr %s458, 4
        %s460 = scalar_lea.vmem %s3, %s459
      $region56: #{transformer_forward.34} parent=51 // pred_fallthru
        _
    $region52: #{transformer_forward.34} parent=5 // pred_fallthru
      _
  $region6: #{transformer_forward.34} parent=0 // loop_footer
    %s13 = sadd.s32 1, %s9
  $region7: #{transformer_forward.34} parent=0 // loop_footer_branch
    %8 = sbr.rel target = $region3
  $region8: #{transformer_forward.34} parent=0 // loop_exit
    _

// kernel: transformer_forward.42
$region0: #{transformer_forward.42}
  #allocation0 [shape = 'u32[]', space=smem, size = 0x4, offset = 0x4, fixed_abs, tag = 'smem constant byte address 0x4 - core index']
  #allocation1 [shape = 'u32[144,128]{1,0:T(1,128)}', space=vmem, size = 0x12000, scoped, tag = 'internal scratch']
  #allocation2 [shape = 'f32[16,128]{1,0:T(8,128)}', space=vmem, size = 0x2000, scoped, tag = 'scratch operand']
  %s0 = inlined_call_operand.vmem [shape: bf16[16,128], index: 0, kind: input, shape index: {}]
  %s1 = inlined_call_operand.vmem [shape: bf16[128,128], index: 1, kind: input, shape index: {}]
  %s2 = inlined_call_operand.vmem [shape: f32[1,128], index: 2, kind: input, shape index: {}]
  %s3 = inlined_call_operand.vmem [shape: bf16[16,128], index: 3, kind: output, shape index: {}]
  %s4 = sld [smem:[#allocation0]]
  $region30: #{transformer_forward.42} parent=0
    _
  %s6 = ssub.s32 1, %s4
  %s7 = scalar_select 0, %s6, %s4
  // Predicated region
  $region2: #{transformer_forward.42} parent=0 // pred_check
    _
  $region3: #{transformer_forward.42} parent=0 // pred_check_branch
    %9 = sbr.rel (0) target = $region5
  $region4: #{transformer_forward.42} parent=0 // pred_region
    _
  $region5: #{transformer_forward.42} parent=0 // pred_fallthru
    _
  // Predicated region
  $region6: #{transformer_forward.42} parent=0 // pred_check
    _
  $region7: #{transformer_forward.42} parent=0 // pred_check_branch
    %11 = sbr.rel (0) target = $region9
  $region8: #{transformer_forward.42} parent=0 // pred_region
    _
  $region9: #{transformer_forward.42} parent=0 // pred_fallthru
    _
  // Predicated region
  $region10: #{transformer_forward.42} parent=0 // pred_check
    _
  $region11: #{transformer_forward.42} parent=0 // pred_check_branch
    %13 = sbr.rel (0) target = $region13
  $region12: #{transformer_forward.42} parent=0 // pred_region
    _
  $region13: #{transformer_forward.42} parent=0 // pred_fallthru
    _
  %p15 = scmp.eq.s32.totalorder 0, 0
  // Predicated region
  $region14: #{transformer_forward.42} parent=0 // pred_check
    %p16 = pneg %p15
  $region15: #{transformer_forward.42} parent=0 // pred_check_branch
    %18 = sbr.rel (%p16) target = $region17
  $region16: #{transformer_forward.42} parent=0 // pred_region
    %19 = vst [vmem:[#allocation2] sm:$0xff] 0.0
    %20 = vst [vmem:[#allocation2 + $0x8] sm:$0xff] 0.0
  $region17: #{transformer_forward.42} parent=0 // pred_fallthru
    _
  %v21 = vld [vmem:[#allocation2] sm:$0xff]
  %v22 = vld [vmem:[#allocation2 + $0x8] sm:$0xff]
  %v23 = vld [vmem:[%s0] sm:$0xf]
  %v24 = vld [vmem:[%s0 + $0x4] sm:$0xf]
  %v25 = vld [vmem:[%s1] sm:$0xf]
  %v26 = vld [vmem:[%s1 + $0x4] sm:$0xf]
  %v27 = vld [vmem:[%s1 + $0x8] sm:$0xf]
  %v28 = vld [vmem:[%s1 + $0xc] sm:$0xf]
  %v29 = vld [vmem:[%s1 + $0x10] sm:$0xf]
  %v30 = vld [vmem:[%s1 + $0x14] sm:$0xf]
  %v31 = vld [vmem:[%s1 + $0x18] sm:$0xf]
  %v32 = vld [vmem:[%s1 + $0x1c] sm:$0xf]
  %v33 = vld [vmem:[%s1 + $0x20] sm:$0xf]
  %v34 = vld [vmem:[%s1 + $0x24] sm:$0xf]
  %v35 = vld [vmem:[%s1 + $0x28] sm:$0xf]
  %v36 = vld [vmem:[%s1 + $0x2c] sm:$0xf]
  %v37 = vld [vmem:[%s1 + $0x30] sm:$0xf]
  %v38 = vld [vmem:[%s1 + $0x34] sm:$0xf]
  %v39 = vld [vmem:[%s1 + $0x38] sm:$0xf]
  %v40 = vld [vmem:[%s1 + $0x3c] sm:$0xf]
  %v43 = vunpack.c.l.b16 %v23
  %v44 = vunpack.c.l.b16 %v24
  %v45 = vpack.c.b16 %v44, %v43
  %v63 = vunpack.c.l.b16 %v25
  %v64 = vunpack.c.l.b16 %v26
  %v65 = vunpack.c.l.b16 %v27
  %v66 = vunpack.c.l.b16 %v28
  %v67 = vunpack.c.l.b16 %v29
  %v68 = vunpack.c.l.b16 %v30
  %v69 = vunpack.c.l.b16 %v31
  %v70 = vunpack.c.l.b16 %v32
  %v71 = vunpack.c.l.b16 %v33
  %v72 = vunpack.c.l.b16 %v34
  %v73 = vunpack.c.l.b16 %v35
  %v74 = vunpack.c.l.b16 %v36
  %v75 = vunpack.c.l.b16 %v37
  %v76 = vunpack.c.l.b16 %v38
  %v77 = vunpack.c.l.b16 %v39
  %v78 = vunpack.c.l.b16 %v40
  %v79 = vpack.c.b16 %v64, %v63
  %v80 = vpack.c.b16 %v66, %v65
  %v81 = vpack.c.b16 %v68, %v67
  %v82 = vpack.c.b16 %v70, %v69
  %v83 = vpack.c.b16 %v72, %v71
  %v84 = vpack.c.b16 %v74, %v73
  %v85 = vpack.c.b16 %v76, %v75
  %v86 = vpack.c.b16 %v78, %v77
  %95 = vmatprep.subr.bf16.mxu0 0
  %96 = vmatpush1.bf16.msra.mxu0 %v79
  %97 = vmatprep.subr.bf16.mxu0 0
  %98 = vmatpush1.bf16.msra.mxu0 %v80
  %99 = vmatprep.subr.bf16.mxu0 0
  %100 = vmatpush1.bf16.msra.mxu0 %v81
  %101 = vmatprep.subr.bf16.mxu0 0
  %102 = vmatpush1.bf16.msra.mxu0 %v82
  %103 = vmatprep.subr.bf16.mxu0 0
  %104 = vmatpush1.bf16.msra.mxu0 %v83
  %105 = vmatprep.subr.bf16.mxu0 0
  %106 = vmatpush1.bf16.msra.mxu0 %v84
  %107 = vmatprep.subr.bf16.mxu0 0
  %108 = vmatpush1.bf16.msra.mxu0 %v85
  %109 = vmatprep.subr.bf16.mxu0 0
  %110 = vmatpush1.bf16.msra.mxu0 %v86
  %111 = vmatprep.subr.bf16.mxu0 0
  %112 = vmatpush1.bf16.msra.mxu0 0
  %113 = vmatprep.subr.bf16.mxu0 0
  %114 = vmatpush1.bf16.msra.mxu0 0
  %115 = vmatprep.subr.bf16.mxu0 0
  %116 = vmatpush1.bf16.msra.mxu0 0
  %117 = vmatprep.subr.bf16.mxu0 0
  %118 = vmatpush1.bf16.msra.mxu0 0
  %119 = vmatprep.subr.bf16.mxu0 0
  %120 = vmatpush1.bf16.msra.mxu0 0
  %121 = vmatprep.subr.bf16.mxu0 0
  %122 = vmatpush1.bf16.msra.mxu0 0
  %123 = vmatprep.subr.bf16.mxu0 0
  %124 = vmatpush1.bf16.msra.mxu0 0
  %125 = vmatprep.subr.bf16.mxu0 0
  %126 = vmatpush1.bf16.msra.mxu0 0
  %127 = vmatprep.mubr.bf16.mxu0 0
  %128 = vmatmul.mubr.bf16.gmra.mrb[0].mxu0 %v45
  %v129 = vpop.f32.mrb[0].mxu0
  %v130 = vadd.f32 0.0, %v129
  %v131 = vpop.f32.mrb[0].mxu0
  %v132 = vpop.f32.mrb[0].mxu0
  %v133 = vadd.f32 0.0, %v132
  %v134 = vpop.f32.mrb[0].mxu0
  %135 = vdwg.mxu0
  %v136 = vadd.f32 %v21, %v130
  %v137 = vadd.f32 %v22, %v133
  %138 = vst [vmem:[#allocation2] sm:$0xff] %v136
  %139 = vst [vmem:[#allocation2 + $0x8] sm:$0xff] %v137
  // Predicated region
  $region18: #{transformer_forward.42} parent=0 // pred_check
    %p140 = pneg %p15
  $region19: #{transformer_forward.42} parent=0 // pred_check_branch
    %142 = sbr.rel (%p140) target = $region21
  $region20: #{transformer_forward.42} parent=0 // pred_region
    %v143 = vld [vmem:[#allocation2] sm:$0xff]
    %v144 = vld [vmem:[#allocation2 + $0x8] sm:$0xff]
    %v145 = vld [vmem:[%s2] sm:$0x1]
    %v147 = vlaneseq
    %v148 = vshrl.u32 %v147, 7
    %v149 = vsub.s32 0, %v148
    %v150 = vrot.slane %v145, %v149
    %v152 = vadd.f32 %v143, %v150
    %v153 = vadd.f32 %v144, %v150
    %v154 = vmax.f32 %v152, 0.0
    %v155 = vmax.f32 %v153, 0.0
    %v156 = vpack.c.bf16 %v155, %v154
    %v158 = vunpack.c.l.b16 %v156
    %v159 = vunpack.c.h.b16 %v156
    %v160 = vpack.c.b16 %v158, %v158
    %v161 = vpack.c.b16 %v159, %v159
    %164 = vst [vmem:[%s3] sm:$0xf] %v160
    %165 = vst [vmem:[%s3 + $0x4] sm:$0xf] %v161
  $region21: #{transformer_forward.42} parent=0 // pred_fallthru
    _
  // Predicated region
  $region22: #{transformer_forward.42} parent=0 // pred_check
    _
  $region23: #{transformer_forward.42} parent=0 // pred_check_branch
    %167 = sbr.rel (0) target = $region25
  $region24: #{transformer_forward.42} parent=0 // pred_region
    _
  $region25: #{transformer_forward.42} parent=0 // pred_fallthru
    _
  // Predicated region
  $region26: #{transformer_forward.42} parent=0 // pred_check
    _
  $region27: #{transformer_forward.42} parent=0 // pred_check_branch
    %169 = sbr.rel (0) target = $region29
  $region28: #{transformer_forward.42} parent=0 // pred_region
    _
  $region29: #{transformer_forward.42} parent=0 // pred_fallthru
    _

// kernel: transformer_forward.43
$region0: #{transformer_forward.43}
  #allocation0 [shape = 'u32[]', space=smem, size = 0x4, offset = 0x4, fixed_abs, tag = 'smem constant byte address 0x4 - core index']
  #allocation1 [shape = 'u32[144,128]{1,0:T(1,128)}', space=vmem, size = 0x12000, scoped, tag = 'internal scratch']
  #allocation2 [shape = 'f32[16,128]{1,0:T(8,128)}', space=vmem, size = 0x2000, scoped, tag = 'scratch operand']
  %s0 = inlined_call_operand.vmem [shape: bf16[16,128], index: 0, kind: input, shape index: {}]
  %s1 = inlined_call_operand.vmem [shape: bf16[128,128], index: 1, kind: input, shape index: {}]
  %s2 = inlined_call_operand.vmem [shape: f32[1,128], index: 2, kind: input, shape index: {}]
  %s3 = inlined_call_operand.vmem [shape: f32[16,128], index: 3, kind: output, shape index: {}]
  %s4 = sld [smem:[#allocation0]]
  $region30: #{transformer_forward.43} parent=0
    _
  %s6 = ssub.s32 1, %s4
  %s7 = scalar_select 0, %s6, %s4
  // Predicated region
  $region2: #{transformer_forward.43} parent=0 // pred_check
    _
  $region3: #{transformer_forward.43} parent=0 // pred_check_branch
    %9 = sbr.rel (0) target = $region5
  $region4: #{transformer_forward.43} parent=0 // pred_region
    _
  $region5: #{transformer_forward.43} parent=0 // pred_fallthru
    _
  // Predicated region
  $region6: #{transformer_forward.43} parent=0 // pred_check
    _
  $region7: #{transformer_forward.43} parent=0 // pred_check_branch
    %11 = sbr.rel (0) target = $region9
  $region8: #{transformer_forward.43} parent=0 // pred_region
    _
  $region9: #{transformer_forward.43} parent=0 // pred_fallthru
    _
  // Predicated region
  $region10: #{transformer_forward.43} parent=0 // pred_check
    _
  $region11: #{transformer_forward.43} parent=0 // pred_check_branch
    %13 = sbr.rel (0) target = $region13
  $region12: #{transformer_forward.43} parent=0 // pred_region
    _
  $region13: #{transformer_forward.43} parent=0 // pred_fallthru
    _
  %p15 = scmp.eq.s32.totalorder 0, 0
  // Predicated region
  $region14: #{transformer_forward.43} parent=0 // pred_check
    %p16 = pneg %p15
  $region15: #{transformer_forward.43} parent=0 // pred_check_branch
    %18 = sbr.rel (%p16) target = $region17
  $region16: #{transformer_forward.43} parent=0 // pred_region
    %19 = vst [vmem:[#allocation2] sm:$0xff] 0.0
    %20 = vst [vmem:[#allocation2 + $0x8] sm:$0xff] 0.0
  $region17: #{transformer_forward.43} parent=0 // pred_fallthru
    _
  %v21 = vld [vmem:[#allocation2] sm:$0xff]
  %v22 = vld [vmem:[#allocation2 + $0x8] sm:$0xff]
  %v23 = vld [vmem:[%s0] sm:$0xf]
  %v24 = vld [vmem:[%s0 + $0x4] sm:$0xf]
  %v25 = vld [vmem:[%s1] sm:$0xf]
  %v26 = vld [vmem:[%s1 + $0x4] sm:$0xf]
  %v27 = vld [vmem:[%s1 + $0x8] sm:$0xf]
  %v28 = vld [vmem:[%s1 + $0xc] sm:$0xf]
  %v29 = vld [vmem:[%s1 + $0x10] sm:$0xf]
  %v30 = vld [vmem:[%s1 + $0x14] sm:$0xf]
  %v31 = vld [vmem:[%s1 + $0x18] sm:$0xf]
  %v32 = vld [vmem:[%s1 + $0x1c] sm:$0xf]
  %v33 = vld [vmem:[%s1 + $0x20] sm:$0xf]
  %v34 = vld [vmem:[%s1 + $0x24] sm:$0xf]
  %v35 = vld [vmem:[%s1 + $0x28] sm:$0xf]
  %v36 = vld [vmem:[%s1 + $0x2c] sm:$0xf]
  %v37 = vld [vmem:[%s1 + $0x30] sm:$0xf]
  %v38 = vld [vmem:[%s1 + $0x34] sm:$0xf]
  %v39 = vld [vmem:[%s1 + $0x38] sm:$0xf]
  %v40 = vld [vmem:[%s1 + $0x3c] sm:$0xf]
  %v43 = vunpack.c.l.b16 %v23
  %v44 = vunpack.c.l.b16 %v24
  %v45 = vpack.c.b16 %v44, %v43
  %v63 = vunpack.c.l.b16 %v25
  %v64 = vunpack.c.l.b16 %v26
  %v65 = vunpack.c.l.b16 %v27
  %v66 = vunpack.c.l.b16 %v28
  %v67 = vunpack.c.l.b16 %v29
  %v68 = vunpack.c.l.b16 %v30
  %v69 = vunpack.c.l.b16 %v31
  %v70 = vunpack.c.l.b16 %v32
  %v71 = vunpack.c.l.b16 %v33
  %v72 = vunpack.c.l.b16 %v34
  %v73 = vunpack.c.l.b16 %v35
  %v74 = vunpack.c.l.b16 %v36
  %v75 = vunpack.c.l.b16 %v37
  %v76 = vunpack.c.l.b16 %v38
  %v77 = vunpack.c.l.b16 %v39
  %v78 = vunpack.c.l.b16 %v40
  %v79 = vpack.c.b16 %v64, %v63
  %v80 = vpack.c.b16 %v66, %v65
  %v81 = vpack.c.b16 %v68, %v67
  %v82 = vpack.c.b16 %v70, %v69
  %v83 = vpack.c.b16 %v72, %v71
  %v84 = vpack.c.b16 %v74, %v73
  %v85 = vpack.c.b16 %v76, %v75
  %v86 = vpack.c.b16 %v78, %v77
  %95 = vmatprep.subr.bf16.mxu0 0
  %96 = vmatpush1.bf16.msra.mxu0 %v79
  %97 = vmatprep.subr.bf16.mxu0 0
  %98 = vmatpush1.bf16.msra.mxu0 %v80
  %99 = vmatprep.subr.bf16.mxu0 0
  %100 = vmatpush1.bf16.msra.mxu0 %v81
  %101 = vmatprep.subr.bf16.mxu0 0
  %102 = vmatpush1.bf16.msra.mxu0 %v82
  %103 = vmatprep.subr.bf16.mxu0 0
  %104 = vmatpush1.bf16.msra.mxu0 %v83
  %105 = vmatprep.subr.bf16.mxu0 0
  %106 = vmatpush1.bf16.msra.mxu0 %v84
  %107 = vmatprep.subr.bf16.mxu0 0
  %108 = vmatpush1.bf16.msra.mxu0 %v85
  %109 = vmatprep.subr.bf16.mxu0 0
  %110 = vmatpush1.bf16.msra.mxu0 %v86
  %111 = vmatprep.subr.bf16.mxu0 0
  %112 = vmatpush1.bf16.msra.mxu0 0
  %113 = vmatprep.subr.bf16.mxu0 0
  %114 = vmatpush1.bf16.msra.mxu0 0
  %115 = vmatprep.subr.bf16.mxu0 0
  %116 = vmatpush1.bf16.msra.mxu0 0
  %117 = vmatprep.subr.bf16.mxu0 0
  %118 = vmatpush1.bf16.msra.mxu0 0
  %119 = vmatprep.subr.bf16.mxu0 0
  %120 = vmatpush1.bf16.msra.mxu0 0
  %121 = vmatprep.subr.bf16.mxu0 0
  %122 = vmatpush1.bf16.msra.mxu0 0
  %123 = vmatprep.subr.bf16.mxu0 0
  %124 = vmatpush1.bf16.msra.mxu0 0
  %125 = vmatprep.subr.bf16.mxu0 0
  %126 = vmatpush1.bf16.msra.mxu0 0
  %127 = vmatprep.mubr.bf16.mxu0 0
  %128 = vmatmul.mubr.bf16.gmra.mrb[0].mxu0 %v45
  %v129 = vpop.f32.mrb[0].mxu0
  %v130 = vadd.f32 0.0, %v129
  %v131 = vpop.f32.mrb[0].mxu0
  %v132 = vpop.f32.mrb[0].mxu0
  %v133 = vadd.f32 0.0, %v132
  %v134 = vpop.f32.mrb[0].mxu0
  %135 = vdwg.mxu0
  %v136 = vadd.f32 %v21, %v130
  %v137 = vadd.f32 %v22, %v133
  %138 = vst [vmem:[#allocation2] sm:$0xff] %v136
  %139 = vst [vmem:[#allocation2 + $0x8] sm:$0xff] %v137
  // Predicated region
  $region18: #{transformer_forward.43} parent=0 // pred_check
    %p140 = pneg %p15
  $region19: #{transformer_forward.43} parent=0 // pred_check_branch
    %142 = sbr.rel (%p140) target = $region21
  $region20: #{transformer_forward.43} parent=0 // pred_region
    %v143 = vld [vmem:[#allocation2] sm:$0xff]
    %v144 = vld [vmem:[#allocation2 + $0x8] sm:$0xff]
    %v145 = vld [vmem:[%s2] sm:$0x1]
    %v147 = vlaneseq
    %v148 = vshrl.u32 %v147, 7
    %v149 = vsub.s32 0, %v148
    %v150 = vrot.slane %v145, %v149
    %v152 = vadd.f32 %v143, %v150
    %v153 = vadd.f32 %v144, %v150
    %154 = vst [vmem:[%s3] sm:$0xff] %v152
    %155 = vst [vmem:[%s3 + $0x8] sm:$0xff] %v153
  $region21: #{transformer_forward.43} parent=0 // pred_fallthru
    _
  // Predicated region
  $region22: #{transformer_forward.43} parent=0 // pred_check
    _
  $region23: #{transformer_forward.43} parent=0 // pred_check_branch
    %157 = sbr.rel (0) target = $region25
  $region24: #{transformer_forward.43} parent=0 // pred_region
    _
  $region25: #{transformer_forward.43} parent=0 // pred_fallthru
    _
  // Predicated region
  $region26: #{transformer_forward.43} parent=0 // pred_check
    _
  $region27: #{transformer_forward.43} parent=0 // pred_check_branch
    %159 = sbr.rel (0) target = $region29
  $region28: #{transformer_forward.43} parent=0 // pred_region
    _
  $region29: #{transformer_forward.43} parent=0 // pred_fallthru
    _

// kernel: transformer_forward.45
$region0: #{transformer_forward.45}
  #allocation0 [shape = 'u32[]', space=smem, size = 0x4, offset = 0x4, fixed_abs, tag = 'smem constant byte address 0x4 - core index']
  #allocation1 [shape = 'u32[144,128]{1,0:T(1,128)}', space=vmem, size = 0x12000, scoped, tag = 'internal scratch']
  #allocation2 [shape = 'f32[16,128]{1,0:T(8,128)}', space=vmem, size = 0x2000, scoped, tag = 'scratch operand']
  %s0 = inlined_call_operand.vmem [shape: bf16[16,128], index: 0, kind: input, shape index: {}]
  %s1 = inlined_call_operand.vmem [shape: bf16[128,128], index: 1, kind: input, shape index: {}]
  %s2 = inlined_call_operand.vmem [shape: f32[1,128], index: 2, kind: input, shape index: {}]
  %s3 = inlined_call_operand.vmem [shape: f32[16,128], index: 3, kind: output, shape index: {}]
  %s4 = sld [smem:[#allocation0]]
  $region30: #{transformer_forward.45} parent=0
    _
  %s6 = ssub.s32 1, %s4
  %s7 = scalar_select 0, %s6, %s4
  // Predicated region
  $region2: #{transformer_forward.45} parent=0 // pred_check
    _
  $region3: #{transformer_forward.45} parent=0 // pred_check_branch
    %9 = sbr.rel (0) target = $region5
  $region4: #{transformer_forward.45} parent=0 // pred_region
    _
  $region5: #{transformer_forward.45} parent=0 // pred_fallthru
    _
  // Predicated region
  $region6: #{transformer_forward.45} parent=0 // pred_check
    _
  $region7: #{transformer_forward.45} parent=0 // pred_check_branch
    %11 = sbr.rel (0) target = $region9
  $region8: #{transformer_forward.45} parent=0 // pred_region
    _
  $region9: #{transformer_forward.45} parent=0 // pred_fallthru
    _
  // Predicated region
  $region10: #{transformer_forward.45} parent=0 // pred_check
    _
  $region11: #{transformer_forward.45} parent=0 // pred_check_branch
    %13 = sbr.rel (0) target = $region13
  $region12: #{transformer_forward.45} parent=0 // pred_region
    _
  $region13: #{transformer_forward.45} parent=0 // pred_fallthru
    _
  %p15 = scmp.eq.s32.totalorder 0, 0
  // Predicated region
  $region14: #{transformer_forward.45} parent=0 // pred_check
    %p16 = pneg %p15
  $region15: #{transformer_forward.45} parent=0 // pred_check_branch
    %18 = sbr.rel (%p16) target = $region17
  $region16: #{transformer_forward.45} parent=0 // pred_region
    %19 = vst [vmem:[#allocation2] sm:$0xff] 0.0
    %20 = vst [vmem:[#allocation2 + $0x8] sm:$0xff] 0.0
  $region17: #{transformer_forward.45} parent=0 // pred_fallthru
    _
  %v21 = vld [vmem:[#allocation2] sm:$0xff]
  %v22 = vld [vmem:[#allocation2 + $0x8] sm:$0xff]
  %v23 = vld [vmem:[%s0] sm:$0xf]
  %v24 = vld [vmem:[%s0 + $0x4] sm:$0xf]
  %v25 = vld [vmem:[%s1] sm:$0xf]
  %v26 = vld [vmem:[%s1 + $0x4] sm:$0xf]
  %v27 = vld [vmem:[%s1 + $0x8] sm:$0xf]
  %v28 = vld [vmem:[%s1 + $0xc] sm:$0xf]
  %v29 = vld [vmem:[%s1 + $0x10] sm:$0xf]
  %v30 = vld [vmem:[%s1 + $0x14] sm:$0xf]
  %v31 = vld [vmem:[%s1 + $0x18] sm:$0xf]
  %v32 = vld [vmem:[%s1 + $0x1c] sm:$0xf]
  %v33 = vld [vmem:[%s1 + $0x20] sm:$0xf]
  %v34 = vld [vmem:[%s1 + $0x24] sm:$0xf]
  %v35 = vld [vmem:[%s1 + $0x28] sm:$0xf]
  %v36 = vld [vmem:[%s1 + $0x2c] sm:$0xf]
  %v37 = vld [vmem:[%s1 + $0x30] sm:$0xf]
  %v38 = vld [vmem:[%s1 + $0x34] sm:$0xf]
  %v39 = vld [vmem:[%s1 + $0x38] sm:$0xf]
  %v40 = vld [vmem:[%s1 + $0x3c] sm:$0xf]
  %v43 = vunpack.c.l.b16 %v23
  %v44 = vunpack.c.l.b16 %v24
  %v45 = vpack.c.b16 %v44, %v43
  %v63 = vunpack.c.l.b16 %v25
  %v64 = vunpack.c.l.b16 %v26
  %v65 = vunpack.c.l.b16 %v27
  %v66 = vunpack.c.l.b16 %v28
  %v67 = vunpack.c.l.b16 %v29
  %v68 = vunpack.c.l.b16 %v30
  %v69 = vunpack.c.l.b16 %v31
  %v70 = vunpack.c.l.b16 %v32
  %v71 = vunpack.c.l.b16 %v33
  %v72 = vunpack.c.l.b16 %v34
  %v73 = vunpack.c.l.b16 %v35
  %v74 = vunpack.c.l.b16 %v36
  %v75 = vunpack.c.l.b16 %v37
  %v76 = vunpack.c.l.b16 %v38
  %v77 = vunpack.c.l.b16 %v39
  %v78 = vunpack.c.l.b16 %v40
  %v79 = vpack.c.b16 %v64, %v63
  %v80 = vpack.c.b16 %v66, %v65
  %v81 = vpack.c.b16 %v68, %v67
  %v82 = vpack.c.b16 %v70, %v69
  %v83 = vpack.c.b16 %v72, %v71
  %v84 = vpack.c.b16 %v74, %v73
  %v85 = vpack.c.b16 %v76, %v75
  %v86 = vpack.c.b16 %v78, %v77
  %95 = vmatprep.subr.bf16.mxu0 0
  %96 = vmatpush1.bf16.msra.mxu0 %v79
  %97 = vmatprep.subr.bf16.mxu0 0
  %98 = vmatpush1.bf16.msra.mxu0 %v80
  %99 = vmatprep.subr.bf16.mxu0 0
  %100 = vmatpush1.bf16.msra.mxu0 %v81
  %101 = vmatprep.subr.bf16.mxu0 0
  %102 = vmatpush1.bf16.msra.mxu0 %v82
  %103 = vmatprep.subr.bf16.mxu0 0
  %104 = vmatpush1.bf16.msra.mxu0 %v83
  %105 = vmatprep.subr.bf16.mxu0 0
  %106 = vmatpush1.bf16.msra.mxu0 %v84
  %107 = vmatprep.subr.bf16.mxu0 0
  %108 = vmatpush1.bf16.msra.mxu0 %v85
  %109 = vmatprep.subr.bf16.mxu0 0
  %110 = vmatpush1.bf16.msra.mxu0 %v86
  %111 = vmatprep.subr.bf16.mxu0 0
  %112 = vmatpush1.bf16.msra.mxu0 0
  %113 = vmatprep.subr.bf16.mxu0 0
  %114 = vmatpush1.bf16.msra.mxu0 0
  %115 = vmatprep.subr.bf16.mxu0 0
  %116 = vmatpush1.bf16.msra.mxu0 0
  %117 = vmatprep.subr.bf16.mxu0 0
  %118 = vmatpush1.bf16.msra.mxu0 0
  %119 = vmatprep.subr.bf16.mxu0 0
  %120 = vmatpush1.bf16.msra.mxu0 0
  %121 = vmatprep.subr.bf16.mxu0 0
  %122 = vmatpush1.bf16.msra.mxu0 0
  %123 = vmatprep.subr.bf16.mxu0 0
  %124 = vmatpush1.bf16.msra.mxu0 0
  %125 = vmatprep.subr.bf16.mxu0 0
  %126 = vmatpush1.bf16.msra.mxu0 0
  %127 = vmatprep.mubr.bf16.mxu0 0
  %128 = vmatmul.mubr.bf16.gmra.mrb[0].mxu0 %v45
  %v129 = vpop.f32.mrb[0].mxu0
  %v130 = vadd.f32 0.0, %v129
  %v131 = vpop.f32.mrb[0].mxu0
  %v132 = vpop.f32.mrb[0].mxu0
  %v133 = vadd.f32 0.0, %v132
  %v134 = vpop.f32.mrb[0].mxu0
  %135 = vdwg.mxu0
  %v136 = vadd.f32 %v21, %v130
  %v137 = vadd.f32 %v22, %v133
  %138 = vst [vmem:[#allocation2] sm:$0xff] %v136
  %139 = vst [vmem:[#allocation2 + $0x8] sm:$0xff] %v137
  // Predicated region
  $region18: #{transformer_forward.45} parent=0 // pred_check
    %p140 = pneg %p15
  $region19: #{transformer_forward.45} parent=0 // pred_check_branch
    %142 = sbr.rel (%p140) target = $region21
  $region20: #{transformer_forward.45} parent=0 // pred_region
    %v143 = vld [vmem:[#allocation2] sm:$0xff]
    %v144 = vld [vmem:[#allocation2 + $0x8] sm:$0xff]
    %v145 = vld [vmem:[%s2] sm:$0x1]
    %v147 = vlaneseq
    %v148 = vshrl.u32 %v147, 7
    %v149 = vsub.s32 0, %v148
    %v150 = vrot.slane %v145, %v149
    %v152 = vadd.f32 %v143, %v150
    %v153 = vadd.f32 %v144, %v150
    %154 = vst [vmem:[%s3] sm:$0xff] %v152
    %155 = vst [vmem:[%s3 + $0x8] sm:$0xff] %v153
  $region21: #{transformer_forward.45} parent=0 // pred_fallthru
    _
  // Predicated region
  $region22: #{transformer_forward.45} parent=0 // pred_check
    _
  $region23: #{transformer_forward.45} parent=0 // pred_check_branch
    %157 = sbr.rel (0) target = $region25
  $region24: #{transformer_forward.45} parent=0 // pred_region
    _
  $region25: #{transformer_forward.45} parent=0 // pred_fallthru
    _
  // Predicated region
  $region26: #{transformer_forward.45} parent=0 // pred_check
    _
  $region27: #{transformer_forward.45} parent=0 // pred_check_branch
    %159 = sbr.rel (0) target = $region29
  $region28: #{transformer_forward.45} parent=0 // pred_region
    _
  $region29: #{transformer_forward.45} parent=0 // pred_fallthru
    _

</llo_original>
